<compile_context>
chip_gen: v5e
topology: v5e:2x2
jax: 0.10.0
libtpu: 0.0.40
codegen_flags: <defaults>
</compile_context>

<pallas_src>
import jax
import jax.numpy as jnp
from jax.experimental import pallas as pl
from jax.experimental.pallas import tpu as pltpu

# ---------------- small model config (consistent with KWT.__init__/forward) ----------------
INPUT_RES   = (16, 16)
PATCH_RES   = (4, 4)
CHANNELS    = 1
NUM_CLASSES = 10
DIM         = 32
DEPTH       = 2
HEADS       = 4
DIM_HEAD    = 8
MLP_DIM     = 64
BATCH       = 2

GH = INPUT_RES[0] // PATCH_RES[0]
GW = INPUT_RES[1] // PATCH_RES[1]
NUM_PATCHES = GH * GW                                   # 16
PATCH_DIM   = CHANNELS * PATCH_RES[0] * PATCH_RES[1]    # 16
INNER       = HEADS * DIM_HEAD                          # 32
SEQ         = NUM_PATCHES + 1                           # 17 (cls token + patches)
LN_EPS      = 1e-5
LANE        = 128                                       # lane-padded logits width
PAD_W       = MLP_DIM                                   # packing width for per-layer vectors


# ------------------------------------ kernel helpers ---------------------------------------
def _ln(v, w, b):
    mu = jnp.mean(v, axis=-1, keepdims=True)
    var = jnp.mean((v - mu) ** 2, axis=-1, keepdims=True)
    return (v - mu) * jax.lax.rsqrt(var + LN_EPS) * w + b


def _gelu_tanh(v):
    # tanh-approx GELU (EUP); within tolerance of nn.GELU()'s erf form
    return 0.5 * v * (1.0 + jnp.tanh(0.7978845608028654 * (v + 0.044715 * v * v * v)))


# ------------------------------------ fused Pallas kernel ----------------------------------
def _kwt_kernel(patches_ref, patchWb_ref, clspos_ref,
                qkvW_ref, outW_ref, ff1W_ref, ff2W_ref,
                vec_ref, head_ref, o_ref):
    B = patches_ref.shape[0] // NUM_PATCHES
    scale = DIM_HEAD ** -0.5

    # ---- patch embedding: (B*N, patch_dim) @ (patch_dim, dim) + bias ----
    pe = (jnp.dot(patches_ref[...], patchWb_ref[0:PATCH_DIM, :],
                  preferred_element_type=jnp.float32)
          + patchWb_ref[PATCH_DIM:PATCH_DIM + 1, :])                  # (B*N, DIM)

    # ---- [cls | patches] + positional embedding, flattened to (B*SEQ, DIM) ----
    cls_row = clspos_ref[0:1, :] + clspos_ref[1:2, :]                 # cls + pos[0]
    pos_pat = clspos_ref[2:2 + NUM_PATCHES, :]                        # pos[1:]
    rows = []
    for b in range(B):
        rows.append(cls_row)
        rows.append(pe[b * NUM_PATCHES:(b + 1) * NUM_PATCHES, :] + pos_pat)
    x = jnp.concatenate(rows, axis=0)                                 # (B*SEQ, DIM)

    # ---- transformer layers (static unroll over depth) ----
    for l in range(DEPTH):
        vec = vec_ref[l]                                              # (7, PAD_W)
        ln1w, ln1b = vec[0:1, :DIM], vec[1:2, :DIM]
        ln2w, ln2b = vec[2:3, :DIM], vec[3:4, :DIM]
        out_b, ff2_b = vec[4:5, :DIM], vec[5:6, :DIM]
        ff1_b = vec[6:7, :MLP_DIM]

        # -- PreNorm multi-head self-attention + residual --
        xn = _ln(x, ln1w, ln1b)
        qkv = jnp.dot(xn, qkvW_ref[l], preferred_element_type=jnp.float32)   # (B*SEQ, 3*INNER)

        per_sample = []
        for b in range(B):                                            # static unroll over batch
            base = b * SEQ
            heads = []
            for h in range(HEADS):                                    # static unroll over heads
                c0 = h * DIM_HEAD
                qh = qkv[base:base + SEQ, c0:c0 + DIM_HEAD]
                kh = qkv[base:base + SEQ, INNER + c0:INNER + c0 + DIM_HEAD]
                vh = qkv[base:base + SEQ, 2 * INNER + c0:2 * INNER + c0 + DIM_HEAD]
                dots = jnp.einsum('id,jd->ij', qh, kh,
                                  preferred_element_type=jnp.float32) * scale
                dots = dots - jnp.max(dots, axis=-1, keepdims=True)
                pexp = jnp.exp(dots)
                inv = pl.reciprocal(jnp.sum(pexp, axis=-1, keepdims=True), approx=True)
                pnorm = pexp * inv                                    # softmax over keys
                heads.append(jnp.dot(pnorm, vh, preferred_element_type=jnp.float32))
            per_sample.append(jnp.concatenate(heads, axis=-1))        # (SEQ, INNER)
        o_cat = jnp.concatenate(per_sample, axis=0)                   # (B*SEQ, INNER)
        x = x + jnp.dot(o_cat, outW_ref[l], preferred_element_type=jnp.float32) + out_b

        # -- PreNorm feed-forward (GELU) + residual --
        xn = _ln(x, ln2w, ln2b)
        h1 = jnp.dot(xn, ff1W_ref[l], preferred_element_type=jnp.float32) + ff1_b
        h1 = _gelu_tanh(h1)
        x = x + jnp.dot(h1, ff2W_ref[l], preferred_element_type=jnp.float32) + ff2_b

    # ---- cls pooling + LayerNorm + Linear head (lane-padded output) ----
    cls_rows = jnp.concatenate([x[b * SEQ:b * SEQ + 1, :] for b in range(B)], axis=0)  # (B, DIM)
    hlnw = head_ref[DIM + 1:DIM + 2, :DIM]
    hlnb = head_ref[DIM + 2:DIM + 3, :DIM]
    c = _ln(cls_rows, hlnw, hlnb)
    logits = (jnp.dot(c, head_ref[0:DIM, :], preferred_element_type=jnp.float32)
              + head_ref[DIM:DIM + 1, :])                             # (B, LANE)
    o_ref[...] = logits


# ------------------------------------ parameters -------------------------------------------
def init_params(key):
    ks = jax.random.split(key, 20)
    def nrm(k, shape, scale):
        return scale * jax.random.normal(k, shape, jnp.float32)
    p = {}
    p['patch_W'] = nrm(ks[0], (PATCH_DIM, DIM), 0.05)
    p['patch_b'] = nrm(ks[1], (DIM,), 0.05)
    p['cls']     = nrm(ks[2], (1, 1, DIM), 1.0)
    p['pos']     = nrm(ks[3], (1, SEQ, DIM), 1.0)
    p['qkv_W']   = nrm(ks[4], (DEPTH, DIM, 3 * INNER), 0.05)   # packed (q|k|v), head-major cols
    p['out_W']   = nrm(ks[5], (DEPTH, INNER, DIM), 0.05)
    p['out_b']   = nrm(ks[6], (DEPTH, DIM), 0.05)
    p['ln1_w']   = 1.0 + nrm(ks[7], (DEPTH, DIM), 0.05)
    p['ln1_b']   = nrm(ks[8], (DEPTH, DIM), 0.05)
    p['ln2_w']   = 1.0 + nrm(ks[9], (DEPTH, DIM), 0.05)
    p['ln2_b']   = nrm(ks[10], (DEPTH, DIM), 0.05)
    p['ff1_W']   = nrm(ks[11], (DEPTH, DIM, MLP_DIM), 0.05)
    p['ff1_b']   = nrm(ks[12], (DEPTH, MLP_DIM), 0.05)
    p['ff2_W']   = nrm(ks[13], (DEPTH, MLP_DIM, DIM), 0.05)
    p['ff2_b']   = nrm(ks[14], (DEPTH, DIM), 0.05)
    p['hln_w']   = 1.0 + nrm(ks[15], (DIM,), 0.05)
    p['hln_b']   = nrm(ks[16], (DIM,), 0.05)
    p['head_W']  = nrm(ks[17], (DIM, NUM_CLASSES), 0.2)
    p['head_b']  = nrm(ks[18], (NUM_CLASSES,), 0.05)
    return p


# ------------------------------------ wrapper -----------------------------------------------
def _to_patches(x_img):
    # Rearrange 'b c (h p1) (w p2) -> b (h w) (p1 p2 c)'
    B = x_img.shape[0]
    p1, p2 = PATCH_RES
    x = x_img.reshape(B, CHANNELS, GH, p1, GW, p2)
    x = x.transpose(0, 2, 4, 3, 5, 1)
    return x.reshape(B, NUM_PATCHES, PATCH_DIM)


def kwt_forward_pallas(x_img, p):
    B = x_img.shape[0]
    patches = _to_patches(x_img).reshape(B * NUM_PATCHES, PATCH_DIM)

    # ---- pack parameters into few contiguous operands (cuts DMA/operand count) ----
    patchWb = jnp.concatenate([p['patch_W'], p['patch_b'].reshape(1, DIM)], axis=0)   # (17, 32)
    clspos = jnp.concatenate([p['cls'].reshape(1, DIM), p['pos'].reshape(SEQ, DIM)], axis=0)

    def row(v):   # (DEPTH, w) -> (DEPTH, 1, PAD_W), zero-padded in lanes
        return jnp.pad(v, ((0, 0), (0, PAD_W - v.shape[-1]))).reshape(DEPTH, 1, PAD_W)
    vecs = jnp.concatenate([row(p['ln1_w']), row(p['ln1_b']),
                            row(p['ln2_w']), row(p['ln2_b']),
                            row(p['out_b']), row(p['ff2_b']),
                            row(p['ff1_b'])], axis=1)                                  # (DEPTH, 7, 64)

    def lane_pad(v):   # (r, w) -> (r, LANE)
        return jnp.pad(v, ((0, 0), (0, LANE - v.shape[-1])))
    head_pack = jnp.concatenate([
        lane_pad(p['head_W']),                         # rows 0..DIM-1 : head weights
        lane_pad(p['head_b'].reshape(1, NUM_CLASSES)), # row DIM       : head bias
        lane_pad(p['hln_w'].reshape(1, DIM)),          # row DIM+1     : head LN weight
        lane_pad(p['hln_b'].reshape(1, DIM)),          # row DIM+2     : head LN bias
    ], axis=0)                                          # (DIM+3, 128)

    args = (patches, patchWb, clspos,
            p['qkv_W'], p['out_W'], p['ff1_W'], p['ff2_W'],
            vecs, head_pack)

    out = pl.pallas_call(
        _kwt_kernel,
        out_shape=jax.ShapeDtypeStruct((B, LANE), jnp.float32),
        in_specs=[pl.BlockSpec(memory_space=pltpu.MemorySpace.VMEM)] * len(args),
        out_specs=pl.BlockSpec(memory_space=pltpu.MemorySpace.VMEM),
    )(*args)
    return out[:, :NUM_CLASSES]


# --------------------------- pure-JAX reference (torch semantics) ---------------------------
def kwt_reference(x_img, p):
    B = x_img.shape[0]
    hp = jax.lax.Precision.HIGHEST
    x = jnp.einsum('bnp,pd->bnd', _to_patches(x_img), p['patch_W'], precision=hp) + p['patch_b']
    cls = jnp.broadcast_to(p['cls'], (B, 1, DIM))
    x = jnp.concatenate([cls, x], axis=1) + p['pos'][:, :SEQ]
    scale = DIM_HEAD ** -0.5

    def ln(v, w, b):
        mu = v.mean(-1, keepdims=True)
        var = ((v - mu) ** 2).mean(-1, keepdims=True)
        return (v - mu) / jnp.sqrt(var + LN_EPS) * w + b

    for l in range(DEPTH):
        xn = ln(x, p['ln1_w'][l], p['ln1_b'][l])
        qkv = jnp.einsum('bnd,de->bne', xn, p['qkv_W'][l], precision=hp)
        q, k, v = jnp.split(qkv, 3, axis=-1)
        to_heads = lambda t: t.reshape(B, SEQ, HEADS, DIM_HEAD).transpose(0, 2, 1, 3)
        q, k, v = to_heads(q), to_heads(k), to_heads(v)
        dots = jnp.einsum('bhid,bhjd->bhij', q, k, precision=hp) * scale
        attn = jax.nn.softmax(dots, axis=-1)
        o = jnp.einsum('bhij,bhjd->bhid', attn, v, precision=hp)
        o = o.transpose(0, 2, 1, 3).reshape(B, SEQ, INNER)
        x = x + (jnp.einsum('bne,ed->bnd', o, p['out_W'][l], precision=hp) + p['out_b'][l])
        xn = ln(x, p['ln2_w'][l], p['ln2_b'][l])
        h1 = jax.nn.gelu(jnp.einsum('bnd,de->bne', xn, p['ff1_W'][l], precision=hp)
                         + p['ff1_b'][l], approximate=False)
        x = x + (jnp.einsum('bne,ed->bnd', h1, p['ff2_W'][l], precision=hp) + p['ff2_b'][l])

    c = ln(x[:, 0], p['hln_w'], p['hln_b'])
    return jnp.einsum('bd,dc->bc', c, p['head_W'], precision=hp) + p['head_b']


# ------------------------------------------ main --------------------------------------------
if __name__ == "__main__":
    key = jax.random.PRNGKey(0)
    pkey, xkey = jax.random.split(key)
    params = init_params(pkey)
    x_img = jax.random.normal(xkey, (BATCH, CHANNELS) + INPUT_RES, jnp.float32)

    out = jax.jit(kwt_forward_pallas)(x_img, params)
    out = jax.block_until_ready(out)

    ref = kwt_reference(x_img, params)
    assert out.shape == (BATCH, NUM_CLASSES)
    rel_err = float(jnp.max(jnp.abs(out - ref)) / (jnp.max(jnp.abs(ref)) + 1e-6))
    assert rel_err < 1e-2, f"mismatch vs reference, rel_err={rel_err}"
    print("KERNEL_OK")
</pallas_src>

<mosaic_0001>
module attributes {stable_mosaic.version = 11 : i64} {
  func.func @_kwt_kernel(%arg0: memref<32x16xf32, #tpu.memory_space<vmem>>, %arg1: memref<17x32xf32, #tpu.memory_space<vmem>>, %arg2: memref<18x32xf32, #tpu.memory_space<vmem>>, %arg3: memref<2x32x96xf32, #tpu.memory_space<vmem>>, %arg4: memref<2x32x32xf32, #tpu.memory_space<vmem>>, %arg5: memref<2x32x64xf32, #tpu.memory_space<vmem>>, %arg6: memref<2x64x32xf32, #tpu.memory_space<vmem>>, %arg7: memref<2x7x64xf32, #tpu.memory_space<vmem>>, %arg8: memref<35x128xf32, #tpu.memory_space<vmem>>, %arg9: memref<2x128xf32, #tpu.memory_space<vmem>>) attributes {dimension_semantics = [], scalar_prefetch = 0 : i64, scratch_operands = 0 : i64, tpu.core_type = #tpu.core_type<tc>} {
    %c0 = arith.constant 0 : index
    %c0_0 = arith.constant 0 : index
    %0 = vector.load %arg0[%c0, %c0_0] : memref<32x16xf32, #tpu.memory_space<vmem>>, vector<32x16xf32>
    %c0_1 = arith.constant 0 : index
    %c0_2 = arith.constant 0 : index
    %1 = vector.load %arg1[%c0_1, %c0_2] : memref<17x32xf32, #tpu.memory_space<vmem>>, vector<16x32xf32>
    %cst = arith.constant dense<0.000000e+00> : vector<32x32xf32>
    %2 = tpu.matmul %0, %1, %cst {dimension_numbers = #tpu.dot_dimension_numbers<[1], [0], [0], [1], [0, 0, 1, 1], [], []>} : vector<32x16xf32>, vector<16x32xf32>, vector<32x32xf32> -> vector<32x32xf32>
    %c16 = arith.constant 16 : index
    %c0_3 = arith.constant 0 : index
    %3 = vector.load %arg1[%c16, %c0_3] : memref<17x32xf32, #tpu.memory_space<vmem>>, vector<1x32xf32>
    %4 = vector.broadcast %3 : vector<1x32xf32> to vector<32x32xf32>
    %5 = arith.addf %2, %4 : vector<32x32xf32>
    %c0_4 = arith.constant 0 : index
    %c0_5 = arith.constant 0 : index
    %6 = vector.load %arg2[%c0_4, %c0_5] : memref<18x32xf32, #tpu.memory_space<vmem>>, vector<1x32xf32>
    %c1 = arith.constant 1 : index
    %c0_6 = arith.constant 0 : index
    %7 = vector.load %arg2[%c1, %c0_6] : memref<18x32xf32, #tpu.memory_space<vmem>>, vector<1x32xf32>
    %8 = arith.addf %6, %7 : vector<1x32xf32>
    %c2 = arith.constant 2 : index
    %c0_7 = arith.constant 0 : index
    %9 = vector.load %arg2[%c2, %c0_7] : memref<18x32xf32, #tpu.memory_space<vmem>>, vector<16x32xf32>
    %10 = vector.extract_strided_slice %5 {offsets = [0, 0], sizes = [16, 32], strides = [1, 1]} : vector<32x32xf32> to vector<16x32xf32>
    %11 = arith.addf %10, %9 : vector<16x32xf32>
    %12 = vector.extract_strided_slice %5 {offsets = [16, 0], sizes = [16, 32], strides = [1, 1]} : vector<32x32xf32> to vector<16x32xf32>
    %13 = arith.addf %12, %9 : vector<16x32xf32>
    %14 = tpu.concatenate %8, %11, %8, %13 in 0 : vector<1x32xf32>, vector<16x32xf32>, vector<1x32xf32>, vector<16x32xf32> -> vector<34x32xf32>
    %c0_8 = arith.constant 0 : index
    %c0_9 = arith.constant 0 : index
    %c0_10 = arith.constant 0 : index
    %15 = vector.load %arg7[%c0_8, %c0_9, %c0_10] : memref<2x7x64xf32, #tpu.memory_space<vmem>>, vector<1x7x64xf32>
    %16 = vector.shape_cast %15 : vector<1x7x64xf32> to vector<7x64xf32>
    %17 = vector.extract_strided_slice %16 {offsets = [0, 0], sizes = [1, 32], strides = [1, 1]} : vector<7x64xf32> to vector<1x32xf32>
    %18 = vector.extract_strided_slice %16 {offsets = [1, 0], sizes = [1, 32], strides = [1, 1]} : vector<7x64xf32> to vector<1x32xf32>
    %19 = vector.extract_strided_slice %16 {offsets = [2, 0], sizes = [1, 32], strides = [1, 1]} : vector<7x64xf32> to vector<1x32xf32>
    %20 = vector.extract_strided_slice %16 {offsets = [3, 0], sizes = [1, 32], strides = [1, 1]} : vector<7x64xf32> to vector<1x32xf32>
    %21 = vector.extract_strided_slice %16 {offsets = [4, 0], sizes = [1, 32], strides = [1, 1]} : vector<7x64xf32> to vector<1x32xf32>
    %22 = vector.extract_strided_slice %16 {offsets = [5, 0], sizes = [1, 32], strides = [1, 1]} : vector<7x64xf32> to vector<1x32xf32>
    %23 = vector.extract_strided_slice %16 {offsets = [6, 0], sizes = [1, 64], strides = [1, 1]} : vector<7x64xf32> to vector<1x64xf32>
    %cst_11 = arith.constant dense<0.000000e+00> : vector<34xf32>
    %24 = vector.multi_reduction <add>, %14, %cst_11 [1] : vector<34x32xf32> to vector<34xf32>
    %25 = vector.shape_cast %24 : vector<34xf32> to vector<34x1xf32>
    %cst_12 = arith.constant 3.200000e+01 : f32
    %26 = vector.broadcast %cst_12 : f32 to vector<34x1xf32>
    %27 = arith.divf %25, %26 : vector<34x1xf32>
    %28 = vector.broadcast %27 : vector<34x1xf32> to vector<34x32xf32>
    %29 = arith.subf %14, %28 : vector<34x32xf32>
    %30 = arith.mulf %29, %29 : vector<34x32xf32>
    %cst_13 = arith.constant dense<0.000000e+00> : vector<34xf32>
    %31 = vector.multi_reduction <add>, %30, %cst_13 [1] : vector<34x32xf32> to vector<34xf32>
    %32 = vector.shape_cast %31 : vector<34xf32> to vector<34x1xf32>
    %cst_14 = arith.constant 3.200000e+01 : f32
    %33 = vector.broadcast %cst_14 : f32 to vector<34x1xf32>
    %34 = arith.divf %32, %33 : vector<34x1xf32>
    %35 = vector.broadcast %27 : vector<34x1xf32> to vector<34x32xf32>
    %36 = arith.subf %14, %35 : vector<34x32xf32>
    %cst_15 = arith.constant 9.99999974E-6 : f32
    %37 = vector.broadcast %cst_15 : f32 to vector<34x1xf32>
    %38 = arith.addf %34, %37 : vector<34x1xf32>
    %39 = math.rsqrt %38 : vector<34x1xf32>
    %40 = vector.broadcast %39 : vector<34x1xf32> to vector<34x32xf32>
    %41 = arith.mulf %36, %40 : vector<34x32xf32>
    %42 = vector.broadcast %17 : vector<1x32xf32> to vector<34x32xf32>
    %43 = arith.mulf %41, %42 : vector<34x32xf32>
    %44 = vector.broadcast %18 : vector<1x32xf32> to vector<34x32xf32>
    %45 = arith.addf %43, %44 : vector<34x32xf32>
    %c0_16 = arith.constant 0 : index
    %c0_17 = arith.constant 0 : index
    %c0_18 = arith.constant 0 : index
    %46 = vector.load %arg3[%c0_16, %c0_17, %c0_18] : memref<2x32x96xf32, #tpu.memory_space<vmem>>, vector<1x32x96xf32>
    %47 = vector.shape_cast %46 : vector<1x32x96xf32> to vector<32x96xf32>
    %cst_19 = arith.constant dense<0.000000e+00> : vector<34x96xf32>
    %48 = tpu.matmul %45, %47, %cst_19 {dimension_numbers = #tpu.dot_dimension_numbers<[1], [0], [0], [1], [0, 0, 1, 1], [], []>} : vector<34x32xf32>, vector<32x96xf32>, vector<34x96xf32> -> vector<34x96xf32>
    %49 = vector.extract_strided_slice %48 {offsets = [0, 0], sizes = [17, 8], strides = [1, 1]} : vector<34x96xf32> to vector<17x8xf32>
    %50 = vector.extract_strided_slice %48 {offsets = [0, 32], sizes = [17, 8], strides = [1, 1]} : vector<34x96xf32> to vector<17x8xf32>
    %51 = vector.extract_strided_slice %48 {offsets = [0, 64], sizes = [17, 8], strides = [1, 1]} : vector<34x96xf32> to vector<17x8xf32>
    "tpu.trace_start"() <{level = 10 : i32, message = "id,jd->ij"}> : () -> ()
    %cst_20 = arith.constant dense<0.000000e+00> : vector<17x17xf32>
    %52 = tpu.matmul %49, %50, %cst_20 {dimension_numbers = #tpu.dot_dimension_numbers<[1], [1], [0], [0], [0, 0, 1, 0], [], []>} : vector<17x8xf32>, vector<17x8xf32>, vector<17x17xf32> -> vector<17x17xf32>
    "tpu.trace_stop"() : () -> ()
    %cst_21 = arith.constant 0.353553385 : f32
    %53 = vector.broadcast %cst_21 : f32 to vector<17x17xf32>
    %54 = arith.mulf %52, %53 : vector<17x17xf32>
    %cst_22 = arith.constant dense<0xFF800000> : vector<17xf32>
    %55 = vector.multi_reduction <maximumf>, %54, %cst_22 [1] : vector<17x17xf32> to vector<17xf32>
    %56 = vector.shape_cast %55 : vector<17xf32> to vector<17x1xf32>
    %57 = vector.broadcast %56 : vector<17x1xf32> to vector<17x17xf32>
    %58 = arith.subf %54, %57 : vector<17x17xf32>
    %59 = math.exp %58 : vector<17x17xf32>
    %cst_23 = arith.constant dense<0.000000e+00> : vector<17xf32>
    %60 = vector.multi_reduction <add>, %59, %cst_23 [1] : vector<17x17xf32> to vector<17xf32>
    %61 = vector.shape_cast %60 : vector<17xf32> to vector<17x1xf32>
    %62 = tpu.reciprocal %61 {approx = true} : vector<17x1xf32> -> vector<17x1xf32>
    %63 = vector.broadcast %62 : vector<17x1xf32> to vector<17x17xf32>
    %64 = arith.mulf %59, %63 : vector<17x17xf32>
    %cst_24 = arith.constant dense<0.000000e+00> : vector<17x8xf32>
    %65 = tpu.matmul %64, %51, %cst_24 {dimension_numbers = #tpu.dot_dimension_numbers<[1], [0], [0], [1], [0, 0, 1, 1], [], []>} : vector<17x17xf32>, vector<17x8xf32>, vector<17x8xf32> -> vector<17x8xf32>
    %66 = vector.extract_strided_slice %48 {offsets = [0, 8], sizes = [17, 8], strides = [1, 1]} : vector<34x96xf32> to vector<17x8xf32>
    %67 = vector.extract_strided_slice %48 {offsets = [0, 40], sizes = [17, 8], strides = [1, 1]} : vector<34x96xf32> to vector<17x8xf32>
    %68 = vector.extract_strided_slice %48 {offsets = [0, 72], sizes = [17, 8], strides = [1, 1]} : vector<34x96xf32> to vector<17x8xf32>
    "tpu.trace_start"() <{level = 10 : i32, message = "id,jd->ij"}> : () -> ()
    %cst_25 = arith.constant dense<0.000000e+00> : vector<17x17xf32>
    %69 = tpu.matmul %66, %67, %cst_25 {dimension_numbers = #tpu.dot_dimension_numbers<[1], [1], [0], [0], [0, 0, 1, 0], [], []>} : vector<17x8xf32>, vector<17x8xf32>, vector<17x17xf32> -> vector<17x17xf32>
    "tpu.trace_stop"() : () -> ()
    %cst_26 = arith.constant 0.353553385 : f32
    %70 = vector.broadcast %cst_26 : f32 to vector<17x17xf32>
    %71 = arith.mulf %69, %70 : vector<17x17xf32>
    %cst_27 = arith.constant dense<0xFF800000> : vector<17xf32>
    %72 = vector.multi_reduction <maximumf>, %71, %cst_27 [1] : vector<17x17xf32> to vector<17xf32>
    %73 = vector.shape_cast %72 : vector<17xf32> to vector<17x1xf32>
    %74 = vector.broadcast %73 : vector<17x1xf32> to vector<17x17xf32>
    %75 = arith.subf %71, %74 : vector<17x17xf32>
    %76 = math.exp %75 : vector<17x17xf32>
    %cst_28 = arith.constant dense<0.000000e+00> : vector<17xf32>
    %77 = vector.multi_reduction <add>, %76, %cst_28 [1] : vector<17x17xf32> to vector<17xf32>
    %78 = vector.shape_cast %77 : vector<17xf32> to vector<17x1xf32>
    %79 = tpu.reciprocal %78 {approx = true} : vector<17x1xf32> -> vector<17x1xf32>
    %80 = vector.broadcast %79 : vector<17x1xf32> to vector<17x17xf32>
    %81 = arith.mulf %76, %80 : vector<17x17xf32>
    %cst_29 = arith.constant dense<0.000000e+00> : vector<17x8xf32>
    %82 = tpu.matmul %81, %68, %cst_29 {dimension_numbers = #tpu.dot_dimension_numbers<[1], [0], [0], [1], [0, 0, 1, 1], [], []>} : vector<17x17xf32>, vector<17x8xf32>, vector<17x8xf32> -> vector<17x8xf32>
    %83 = vector.extract_strided_slice %48 {offsets = [0, 16], sizes = [17, 8], strides = [1, 1]} : vector<34x96xf32> to vector<17x8xf32>
    %84 = vector.extract_strided_slice %48 {offsets = [0, 48], sizes = [17, 8], strides = [1, 1]} : vector<34x96xf32> to vector<17x8xf32>
    %85 = vector.extract_strided_slice %48 {offsets = [0, 80], sizes = [17, 8], strides = [1, 1]} : vector<34x96xf32> to vector<17x8xf32>
    "tpu.trace_start"() <{level = 10 : i32, message = "id,jd->ij"}> : () -> ()
    %cst_30 = arith.constant dense<0.000000e+00> : vector<17x17xf32>
    %86 = tpu.matmul %83, %84, %cst_30 {dimension_numbers = #tpu.dot_dimension_numbers<[1], [1], [0], [0], [0, 0, 1, 0], [], []>} : vector<17x8xf32>, vector<17x8xf32>, vector<17x17xf32> -> vector<17x17xf32>
    "tpu.trace_stop"() : () -> ()
    %cst_31 = arith.constant 0.353553385 : f32
    %87 = vector.broadcast %cst_31 : f32 to vector<17x17xf32>
    %88 = arith.mulf %86, %87 : vector<17x17xf32>
    %cst_32 = arith.constant dense<0xFF800000> : vector<17xf32>
    %89 = vector.multi_reduction <maximumf>, %88, %cst_32 [1] : vector<17x17xf32> to vector<17xf32>
    %90 = vector.shape_cast %89 : vector<17xf32> to vector<17x1xf32>
    %91 = vector.broadcast %90 : vector<17x1xf32> to vector<17x17xf32>
    %92 = arith.subf %88, %91 : vector<17x17xf32>
    %93 = math.exp %92 : vector<17x17xf32>
    %cst_33 = arith.constant dense<0.000000e+00> : vector<17xf32>
    %94 = vector.multi_reduction <add>, %93, %cst_33 [1] : vector<17x17xf32> to vector<17xf32>
    %95 = vector.shape_cast %94 : vector<17xf32> to vector<17x1xf32>
    %96 = tpu.reciprocal %95 {approx = true} : vector<17x1xf32> -> vector<17x1xf32>
    %97 = vector.broadcast %96 : vector<17x1xf32> to vector<17x17xf32>
    %98 = arith.mulf %93, %97 : vector<17x17xf32>
    %cst_34 = arith.constant dense<0.000000e+00> : vector<17x8xf32>
    %99 = tpu.matmul %98, %85, %cst_34 {dimension_numbers = #tpu.dot_dimension_numbers<[1], [0], [0], [1], [0, 0, 1, 1], [], []>} : vector<17x17xf32>, vector<17x8xf32>, vector<17x8xf32> -> vector<17x8xf32>
    %100 = vector.extract_strided_slice %48 {offsets = [0, 24], sizes = [17, 8], strides = [1, 1]} : vector<34x96xf32> to vector<17x8xf32>
    %101 = vector.extract_strided_slice %48 {offsets = [0, 56], sizes = [17, 8], strides = [1, 1]} : vector<34x96xf32> to vector<17x8xf32>
    %102 = vector.extract_strided_slice %48 {offsets = [0, 88], sizes = [17, 8], strides = [1, 1]} : vector<34x96xf32> to vector<17x8xf32>
    "tpu.trace_start"() <{level = 10 : i32, message = "id,jd->ij"}> : () -> ()
    %cst_35 = arith.constant dense<0.000000e+00> : vector<17x17xf32>
    %103 = tpu.matmul %100, %101, %cst_35 {dimension_numbers = #tpu.dot_dimension_numbers<[1], [1], [0], [0], [0, 0, 1, 0], [], []>} : vector<17x8xf32>, vector<17x8xf32>, vector<17x17xf32> -> vector<17x17xf32>
    "tpu.trace_stop"() : () -> ()
    %cst_36 = arith.constant 0.353553385 : f32
    %104 = vector.broadcast %cst_36 : f32 to vector<17x17xf32>
    %105 = arith.mulf %103, %104 : vector<17x17xf32>
    %cst_37 = arith.constant dense<0xFF800000> : vector<17xf32>
    %106 = vector.multi_reduction <maximumf>, %105, %cst_37 [1] : vector<17x17xf32> to vector<17xf32>
    %107 = vector.shape_cast %106 : vector<17xf32> to vector<17x1xf32>
    %108 = vector.broadcast %107 : vector<17x1xf32> to vector<17x17xf32>
    %109 = arith.subf %105, %108 : vector<17x17xf32>
    %110 = math.exp %109 : vector<17x17xf32>
    %cst_38 = arith.constant dense<0.000000e+00> : vector<17xf32>
    %111 = vector.multi_reduction <add>, %110, %cst_38 [1] : vector<17x17xf32> to vector<17xf32>
    %112 = vector.shape_cast %111 : vector<17xf32> to vector<17x1xf32>
    %113 = tpu.reciprocal %112 {approx = true} : vector<17x1xf32> -> vector<17x1xf32>
    %114 = vector.broadcast %113 : vector<17x1xf32> to vector<17x17xf32>
    %115 = arith.mulf %110, %114 : vector<17x17xf32>
    %cst_39 = arith.constant dense<0.000000e+00> : vector<17x8xf32>
    %116 = tpu.matmul %115, %102, %cst_39 {dimension_numbers = #tpu.dot_dimension_numbers<[1], [0], [0], [1], [0, 0, 1, 1], [], []>} : vector<17x17xf32>, vector<17x8xf32>, vector<17x8xf32> -> vector<17x8xf32>
    %117 = tpu.concatenate %65, %82, %99, %116 in 1 : vector<17x8xf32>, vector<17x8xf32>, vector<17x8xf32>, vector<17x8xf32> -> vector<17x32xf32>
    %118 = vector.extract_strided_slice %48 {offsets = [17, 0], sizes = [17, 8], strides = [1, 1]} : vector<34x96xf32> to vector<17x8xf32>
    %119 = vector.extract_strided_slice %48 {offsets = [17, 32], sizes = [17, 8], strides = [1, 1]} : vector<34x96xf32> to vector<17x8xf32>
    %120 = vector.extract_strided_slice %48 {offsets = [17, 64], sizes = [17, 8], strides = [1, 1]} : vector<34x96xf32> to vector<17x8xf32>
    "tpu.trace_start"() <{level = 10 : i32, message = "id,jd->ij"}> : () -> ()
    %cst_40 = arith.constant dense<0.000000e+00> : vector<17x17xf32>
    %121 = tpu.matmul %118, %119, %cst_40 {dimension_numbers = #tpu.dot_dimension_numbers<[1], [1], [0], [0], [0, 0, 1, 0], [], []>} : vector<17x8xf32>, vector<17x8xf32>, vector<17x17xf32> -> vector<17x17xf32>
    "tpu.trace_stop"() : () -> ()
    %cst_41 = arith.constant 0.353553385 : f32
    %122 = vector.broadcast %cst_41 : f32 to vector<17x17xf32>
    %123 = arith.mulf %121, %122 : vector<17x17xf32>
    %cst_42 = arith.constant dense<0xFF800000> : vector<17xf32>
    %124 = vector.multi_reduction <maximumf>, %123, %cst_42 [1] : vector<17x17xf32> to vector<17xf32>
    %125 = vector.shape_cast %124 : vector<17xf32> to vector<17x1xf32>
    %126 = vector.broadcast %125 : vector<17x1xf32> to vector<17x17xf32>
    %127 = arith.subf %123, %126 : vector<17x17xf32>
    %128 = math.exp %127 : vector<17x17xf32>
    %cst_43 = arith.constant dense<0.000000e+00> : vector<17xf32>
    %129 = vector.multi_reduction <add>, %128, %cst_43 [1] : vector<17x17xf32> to vector<17xf32>
    %130 = vector.shape_cast %129 : vector<17xf32> to vector<17x1xf32>
    %131 = tpu.reciprocal %130 {approx = true} : vector<17x1xf32> -> vector<17x1xf32>
    %132 = vector.broadcast %131 : vector<17x1xf32> to vector<17x17xf32>
    %133 = arith.mulf %128, %132 : vector<17x17xf32>
    %cst_44 = arith.constant dense<0.000000e+00> : vector<17x8xf32>
    %134 = tpu.matmul %133, %120, %cst_44 {dimension_numbers = #tpu.dot_dimension_numbers<[1], [0], [0], [1], [0, 0, 1, 1], [], []>} : vector<17x17xf32>, vector<17x8xf32>, vector<17x8xf32> -> vector<17x8xf32>
    %135 = vector.extract_strided_slice %48 {offsets = [17, 8], sizes = [17, 8], strides = [1, 1]} : vector<34x96xf32> to vector<17x8xf32>
    %136 = vector.extract_strided_slice %48 {offsets = [17, 40], sizes = [17, 8], strides = [1, 1]} : vector<34x96xf32> to vector<17x8xf32>
    %137 = vector.extract_strided_slice %48 {offsets = [17, 72], sizes = [17, 8], strides = [1, 1]} : vector<34x96xf32> to vector<17x8xf32>
    "tpu.trace_start"() <{level = 10 : i32, message = "id,jd->ij"}> : () -> ()
    %cst_45 = arith.constant dense<0.000000e+00> : vector<17x17xf32>
    %138 = tpu.matmul %135, %136, %cst_45 {dimension_numbers = #tpu.dot_dimension_numbers<[1], [1], [0], [0], [0, 0, 1, 0], [], []>} : vector<17x8xf32>, vector<17x8xf32>, vector<17x17xf32> -> vector<17x17xf32>
    "tpu.trace_stop"() : () -> ()
    %cst_46 = arith.constant 0.353553385 : f32
    %139 = vector.broadcast %cst_46 : f32 to vector<17x17xf32>
    %140 = arith.mulf %138, %139 : vector<17x17xf32>
    %cst_47 = arith.constant dense<0xFF800000> : vector<17xf32>
    %141 = vector.multi_reduction <maximumf>, %140, %cst_47 [1] : vector<17x17xf32> to vector<17xf32>
    %142 = vector.shape_cast %141 : vector<17xf32> to vector<17x1xf32>
    %143 = vector.broadcast %142 : vector<17x1xf32> to vector<17x17xf32>
    %144 = arith.subf %140, %143 : vector<17x17xf32>
    %145 = math.exp %144 : vector<17x17xf32>
    %cst_48 = arith.constant dense<0.000000e+00> : vector<17xf32>
    %146 = vector.multi_reduction <add>, %145, %cst_48 [1] : vector<17x17xf32> to vector<17xf32>
    %147 = vector.shape_cast %146 : vector<17xf32> to vector<17x1xf32>
    %148 = tpu.reciprocal %147 {approx = true} : vector<17x1xf32> -> vector<17x1xf32>
    %149 = vector.broadcast %148 : vector<17x1xf32> to vector<17x17xf32>
    %150 = arith.mulf %145, %149 : vector<17x17xf32>
    %cst_49 = arith.constant dense<0.000000e+00> : vector<17x8xf32>
    %151 = tpu.matmul %150, %137, %cst_49 {dimension_numbers = #tpu.dot_dimension_numbers<[1], [0], [0], [1], [0, 0, 1, 1], [], []>} : vector<17x17xf32>, vector<17x8xf32>, vector<17x8xf32> -> vector<17x8xf32>
    %152 = vector.extract_strided_slice %48 {offsets = [17, 16], sizes = [17, 8], strides = [1, 1]} : vector<34x96xf32> to vector<17x8xf32>
    %153 = vector.extract_strided_slice %48 {offsets = [17, 48], sizes = [17, 8], strides = [1, 1]} : vector<34x96xf32> to vector<17x8xf32>
    %154 = vector.extract_strided_slice %48 {offsets = [17, 80], sizes = [17, 8], strides = [1, 1]} : vector<34x96xf32> to vector<17x8xf32>
    "tpu.trace_start"() <{level = 10 : i32, message = "id,jd->ij"}> : () -> ()
    %cst_50 = arith.constant dense<0.000000e+00> : vector<17x17xf32>
    %155 = tpu.matmul %152, %153, %cst_50 {dimension_numbers = #tpu.dot_dimension_numbers<[1], [1], [0], [0], [0, 0, 1, 0], [], []>} : vector<17x8xf32>, vector<17x8xf32>, vector<17x17xf32> -> vector<17x17xf32>
    "tpu.trace_stop"() : () -> ()
    %cst_51 = arith.constant 0.353553385 : f32
    %156 = vector.broadcast %cst_51 : f32 to vector<17x17xf32>
    %157 = arith.mulf %155, %156 : vector<17x17xf32>
    %cst_52 = arith.constant dense<0xFF800000> : vector<17xf32>
    %158 = vector.multi_reduction <maximumf>, %157, %cst_52 [1] : vector<17x17xf32> to vector<17xf32>
    %159 = vector.shape_cast %158 : vector<17xf32> to vector<17x1xf32>
    %160 = vector.broadcast %159 : vector<17x1xf32> to vector<17x17xf32>
    %161 = arith.subf %157, %160 : vector<17x17xf32>
    %162 = math.exp %161 : vector<17x17xf32>
    %cst_53 = arith.constant dense<0.000000e+00> : vector<17xf32>
    %163 = vector.multi_reduction <add>, %162, %cst_53 [1] : vector<17x17xf32> to vector<17xf32>
    %164 = vector.shape_cast %163 : vector<17xf32> to vector<17x1xf32>
    %165 = tpu.reciprocal %164 {approx = true} : vector<17x1xf32> -> vector<17x1xf32>
    %166 = vector.broadcast %165 : vector<17x1xf32> to vector<17x17xf32>
    %167 = arith.mulf %162, %166 : vector<17x17xf32>
    %cst_54 = arith.constant dense<0.000000e+00> : vector<17x8xf32>
    %168 = tpu.matmul %167, %154, %cst_54 {dimension_numbers = #tpu.dot_dimension_numbers<[1], [0], [0], [1], [0, 0, 1, 1], [], []>} : vector<17x17xf32>, vector<17x8xf32>, vector<17x8xf32> -> vector<17x8xf32>
    %169 = vector.extract_strided_slice %48 {offsets = [17, 24], sizes = [17, 8], strides = [1, 1]} : vector<34x96xf32> to vector<17x8xf32>
    %170 = vector.extract_strided_slice %48 {offsets = [17, 56], sizes = [17, 8], strides = [1, 1]} : vector<34x96xf32> to vector<17x8xf32>
    %171 = vector.extract_strided_slice %48 {offsets = [17, 88], sizes = [17, 8], strides = [1, 1]} : vector<34x96xf32> to vector<17x8xf32>
    "tpu.trace_start"() <{level = 10 : i32, message = "id,jd->ij"}> : () -> ()
    %cst_55 = arith.constant dense<0.000000e+00> : vector<17x17xf32>
    %172 = tpu.matmul %169, %170, %cst_55 {dimension_numbers = #tpu.dot_dimension_numbers<[1], [1], [0], [0], [0, 0, 1, 0], [], []>} : vector<17x8xf32>, vector<17x8xf32>, vector<17x17xf32> -> vector<17x17xf32>
    "tpu.trace_stop"() : () -> ()
    %cst_56 = arith.constant 0.353553385 : f32
    %173 = vector.broadcast %cst_56 : f32 to vector<17x17xf32>
    %174 = arith.mulf %172, %173 : vector<17x17xf32>
    %cst_57 = arith.constant dense<0xFF800000> : vector<17xf32>
    %175 = vector.multi_reduction <maximumf>, %174, %cst_57 [1] : vector<17x17xf32> to vector<17xf32>
    %176 = vector.shape_cast %175 : vector<17xf32> to vector<17x1xf32>
    %177 = vector.broadcast %176 : vector<17x1xf32> to vector<17x17xf32>
    %178 = arith.subf %174, %177 : vector<17x17xf32>
    %179 = math.exp %178 : vector<17x17xf32>
    %cst_58 = arith.constant dense<0.000000e+00> : vector<17xf32>
    %180 = vector.multi_reduction <add>, %179, %cst_58 [1] : vector<17x17xf32> to vector<17xf32>
    %181 = vector.shape_cast %180 : vector<17xf32> to vector<17x1xf32>
    %182 = tpu.reciprocal %181 {approx = true} : vector<17x1xf32> -> vector<17x1xf32>
    %183 = vector.broadcast %182 : vector<17x1xf32> to vector<17x17xf32>
    %184 = arith.mulf %179, %183 : vector<17x17xf32>
    %cst_59 = arith.constant dense<0.000000e+00> : vector<17x8xf32>
    %185 = tpu.matmul %184, %171, %cst_59 {dimension_numbers = #tpu.dot_dimension_numbers<[1], [0], [0], [1], [0, 0, 1, 1], [], []>} : vector<17x17xf32>, vector<17x8xf32>, vector<17x8xf32> -> vector<17x8xf32>
    %186 = tpu.concatenate %134, %151, %168, %185 in 1 : vector<17x8xf32>, vector<17x8xf32>, vector<17x8xf32>, vector<17x8xf32> -> vector<17x32xf32>
    %187 = tpu.concatenate %117, %186 in 0 : vector<17x32xf32>, vector<17x32xf32> -> vector<34x32xf32>
    %c0_60 = arith.constant 0 : index
    %c0_61 = arith.constant 0 : index
    %c0_62 = arith.constant 0 : index
    %188 = vector.load %arg4[%c0_60, %c0_61, %c0_62] : memref<2x32x32xf32, #tpu.memory_space<vmem>>, vector<1x32x32xf32>
    %189 = vector.shape_cast %188 : vector<1x32x32xf32> to vector<32x32xf32>
    %cst_63 = arith.constant dense<0.000000e+00> : vector<34x32xf32>
    %190 = tpu.matmul %187, %189, %cst_63 {dimension_numbers = #tpu.dot_dimension_numbers<[1], [0], [0], [1], [0, 0, 1, 1], [], []>} : vector<34x32xf32>, vector<32x32xf32>, vector<34x32xf32> -> vector<34x32xf32>
    %191 = arith.addf %14, %190 : vector<34x32xf32>
    %192 = vector.broadcast %21 : vector<1x32xf32> to vector<34x32xf32>
    %193 = arith.addf %191, %192 : vector<34x32xf32>
    %cst_64 = arith.constant dense<0.000000e+00> : vector<34xf32>
    %194 = vector.multi_reduction <add>, %193, %cst_64 [1] : vector<34x32xf32> to vector<34xf32>
    %195 = vector.shape_cast %194 : vector<34xf32> to vector<34x1xf32>
    %cst_65 = arith.constant 3.200000e+01 : f32
    %196 = vector.broadcast %cst_65 : f32 to vector<34x1xf32>
    %197 = arith.divf %195, %196 : vector<34x1xf32>
    %198 = vector.broadcast %197 : vector<34x1xf32> to vector<34x32xf32>
    %199 = arith.subf %193, %198 : vector<34x32xf32>
    %200 = arith.mulf %199, %199 : vector<34x32xf32>
    %cst_66 = arith.constant dense<0.000000e+00> : vector<34xf32>
    %201 = vector.multi_reduction <add>, %200, %cst_66 [1] : vector<34x32xf32> to vector<34xf32>
    %202 = vector.shape_cast %201 : vector<34xf32> to vector<34x1xf32>
    %cst_67 = arith.constant 3.200000e+01 : f32
    %203 = vector.broadcast %cst_67 : f32 to vector<34x1xf32>
    %204 = arith.divf %202, %203 : vector<34x1xf32>
    %205 = vector.broadcast %197 : vector<34x1xf32> to vector<34x32xf32>
    %206 = arith.subf %193, %205 : vector<34x32xf32>
    %cst_68 = arith.constant 9.99999974E-6 : f32
    %207 = vector.broadcast %cst_68 : f32 to vector<34x1xf32>
    %208 = arith.addf %204, %207 : vector<34x1xf32>
    %209 = math.rsqrt %208 : vector<34x1xf32>
    %210 = vector.broadcast %209 : vector<34x1xf32> to vector<34x32xf32>
    %211 = arith.mulf %206, %210 : vector<34x32xf32>
    %212 = vector.broadcast %19 : vector<1x32xf32> to vector<34x32xf32>
    %213 = arith.mulf %211, %212 : vector<34x32xf32>
    %214 = vector.broadcast %20 : vector<1x32xf32> to vector<34x32xf32>
    %215 = arith.addf %213, %214 : vector<34x32xf32>
    %c0_69 = arith.constant 0 : index
    %c0_70 = arith.constant 0 : index
    %c0_71 = arith.constant 0 : index
    %216 = vector.load %arg5[%c0_69, %c0_70, %c0_71] : memref<2x32x64xf32, #tpu.memory_space<vmem>>, vector<1x32x64xf32>
    %217 = vector.shape_cast %216 : vector<1x32x64xf32> to vector<32x64xf32>
    %cst_72 = arith.constant dense<0.000000e+00> : vector<34x64xf32>
    %218 = tpu.matmul %215, %217, %cst_72 {dimension_numbers = #tpu.dot_dimension_numbers<[1], [0], [0], [1], [0, 0, 1, 1], [], []>} : vector<34x32xf32>, vector<32x64xf32>, vector<34x64xf32> -> vector<34x64xf32>
    %219 = vector.broadcast %23 : vector<1x64xf32> to vector<34x64xf32>
    %220 = arith.addf %218, %219 : vector<34x64xf32>
    %cst_73 = arith.constant 5.000000e-01 : f32
    %221 = vector.broadcast %cst_73 : f32 to vector<34x64xf32>
    %222 = arith.mulf %221, %220 : vector<34x64xf32>
    %cst_74 = arith.constant 4.471500e-02 : f32
    %223 = vector.broadcast %cst_74 : f32 to vector<34x64xf32>
    %224 = arith.mulf %223, %220 : vector<34x64xf32>
    %225 = arith.mulf %224, %220 : vector<34x64xf32>
    %226 = arith.mulf %225, %220 : vector<34x64xf32>
    %227 = arith.addf %220, %226 : vector<34x64xf32>
    %cst_75 = arith.constant 0.797884583 : f32
    %228 = vector.broadcast %cst_75 : f32 to vector<34x64xf32>
    %229 = arith.mulf %228, %227 : vector<34x64xf32>
    %230 = math.tanh %229 : vector<34x64xf32>
    %cst_76 = arith.constant 1.000000e+00 : f32
    %231 = vector.broadcast %cst_76 : f32 to vector<34x64xf32>
    %232 = arith.addf %231, %230 : vector<34x64xf32>
    %233 = arith.mulf %222, %232 : vector<34x64xf32>
    %c0_77 = arith.constant 0 : index
    %c0_78 = arith.constant 0 : index
    %c0_79 = arith.constant 0 : index
    %234 = vector.load %arg6[%c0_77, %c0_78, %c0_79] : memref<2x64x32xf32, #tpu.memory_space<vmem>>, vector<1x64x32xf32>
    %235 = vector.shape_cast %234 : vector<1x64x32xf32> to vector<64x32xf32>
    %cst_80 = arith.constant dense<0.000000e+00> : vector<34x32xf32>
    %236 = tpu.matmul %233, %235, %cst_80 {dimension_numbers = #tpu.dot_dimension_numbers<[1], [0], [0], [1], [0, 0, 1, 1], [], []>} : vector<34x64xf32>, vector<64x32xf32>, vector<34x32xf32> -> vector<34x32xf32>
    %237 = arith.addf %193, %236 : vector<34x32xf32>
    %238 = vector.broadcast %22 : vector<1x32xf32> to vector<34x32xf32>
    %239 = arith.addf %237, %238 : vector<34x32xf32>
    %c1_81 = arith.constant 1 : index
    %c0_82 = arith.constant 0 : index
    %c0_83 = arith.constant 0 : index
    %240 = vector.load %arg7[%c1_81, %c0_82, %c0_83] : memref<2x7x64xf32, #tpu.memory_space<vmem>>, vector<1x7x64xf32>
    %241 = vector.shape_cast %240 : vector<1x7x64xf32> to vector<7x64xf32>
    %242 = vector.extract_strided_slice %241 {offsets = [0, 0], sizes = [1, 32], strides = [1, 1]} : vector<7x64xf32> to vector<1x32xf32>
    %243 = vector.extract_strided_slice %241 {offsets = [1, 0], sizes = [1, 32], strides = [1, 1]} : vector<7x64xf32> to vector<1x32xf32>
    %244 = vector.extract_strided_slice %241 {offsets = [2, 0], sizes = [1, 32], strides = [1, 1]} : vector<7x64xf32> to vector<1x32xf32>
    %245 = vector.extract_strided_slice %241 {offsets = [3, 0], sizes = [1, 32], strides = [1, 1]} : vector<7x64xf32> to vector<1x32xf32>
    %246 = vector.extract_strided_slice %241 {offsets = [4, 0], sizes = [1, 32], strides = [1, 1]} : vector<7x64xf32> to vector<1x32xf32>
    %247 = vector.extract_strided_slice %241 {offsets = [5, 0], sizes = [1, 32], strides = [1, 1]} : vector<7x64xf32> to vector<1x32xf32>
    %248 = vector.extract_strided_slice %241 {offsets = [6, 0], sizes = [1, 64], strides = [1, 1]} : vector<7x64xf32> to vector<1x64xf32>
    %cst_84 = arith.constant dense<0.000000e+00> : vector<34xf32>
    %249 = vector.multi_reduction <add>, %239, %cst_84 [1] : vector<34x32xf32> to vector<34xf32>
    %250 = vector.shape_cast %249 : vector<34xf32> to vector<34x1xf32>
    %cst_85 = arith.constant 3.200000e+01 : f32
    %251 = vector.broadcast %cst_85 : f32 to vector<34x1xf32>
    %252 = arith.divf %250, %251 : vector<34x1xf32>
    %253 = vector.broadcast %252 : vector<34x1xf32> to vector<34x32xf32>
    %254 = arith.subf %239, %253 : vector<34x32xf32>
    %255 = arith.mulf %254, %254 : vector<34x32xf32>
    %cst_86 = arith.constant dense<0.000000e+00> : vector<34xf32>
    %256 = vector.multi_reduction <add>, %255, %cst_86 [1] : vector<34x32xf32> to vector<34xf32>
    %257 = vector.shape_cast %256 : vector<34xf32> to vector<34x1xf32>
    %cst_87 = arith.constant 3.200000e+01 : f32
    %258 = vector.broadcast %cst_87 : f32 to vector<34x1xf32>
    %259 = arith.divf %257, %258 : vector<34x1xf32>
    %260 = vector.broadcast %252 : vector<34x1xf32> to vector<34x32xf32>
    %261 = arith.subf %239, %260 : vector<34x32xf32>
    %cst_88 = arith.constant 9.99999974E-6 : f32
    %262 = vector.broadcast %cst_88 : f32 to vector<34x1xf32>
    %263 = arith.addf %259, %262 : vector<34x1xf32>
    %264 = math.rsqrt %263 : vector<34x1xf32>
    %265 = vector.broadcast %264 : vector<34x1xf32> to vector<34x32xf32>
    %266 = arith.mulf %261, %265 : vector<34x32xf32>
    %267 = vector.broadcast %242 : vector<1x32xf32> to vector<34x32xf32>
    %268 = arith.mulf %266, %267 : vector<34x32xf32>
    %269 = vector.broadcast %243 : vector<1x32xf32> to vector<34x32xf32>
    %270 = arith.addf %268, %269 : vector<34x32xf32>
    %c1_89 = arith.constant 1 : index
    %c0_90 = arith.constant 0 : index
    %c0_91 = arith.constant 0 : index
    %271 = vector.load %arg3[%c1_89, %c0_90, %c0_91] : memref<2x32x96xf32, #tpu.memory_space<vmem>>, vector<1x32x96xf32>
    %272 = vector.shape_cast %271 : vector<1x32x96xf32> to vector<32x96xf32>
    %cst_92 = arith.constant dense<0.000000e+00> : vector<34x96xf32>
    %273 = tpu.matmul %270, %272, %cst_92 {dimension_numbers = #tpu.dot_dimension_numbers<[1], [0], [0], [1], [0, 0, 1, 1], [], []>} : vector<34x32xf32>, vector<32x96xf32>, vector<34x96xf32> -> vector<34x96xf32>
    %274 = vector.extract_strided_slice %273 {offsets = [0, 0], sizes = [17, 8], strides = [1, 1]} : vector<34x96xf32> to vector<17x8xf32>
    %275 = vector.extract_strided_slice %273 {offsets = [0, 32], sizes = [17, 8], strides = [1, 1]} : vector<34x96xf32> to vector<17x8xf32>
    %276 = vector.extract_strided_slice %273 {offsets = [0, 64], sizes = [17, 8], strides = [1, 1]} : vector<34x96xf32> to vector<17x8xf32>
    "tpu.trace_start"() <{level = 10 : i32, message = "id,jd->ij"}> : () -> ()
    %cst_93 = arith.constant dense<0.000000e+00> : vector<17x17xf32>
    %277 = tpu.matmul %274, %275, %cst_93 {dimension_numbers = #tpu.dot_dimension_numbers<[1], [1], [0], [0], [0, 0, 1, 0], [], []>} : vector<17x8xf32>, vector<17x8xf32>, vector<17x17xf32> -> vector<17x17xf32>
    "tpu.trace_stop"() : () -> ()
    %cst_94 = arith.constant 0.353553385 : f32
    %278 = vector.broadcast %cst_94 : f32 to vector<17x17xf32>
    %279 = arith.mulf %277, %278 : vector<17x17xf32>
    %cst_95 = arith.constant dense<0xFF800000> : vector<17xf32>
    %280 = vector.multi_reduction <maximumf>, %279, %cst_95 [1] : vector<17x17xf32> to vector<17xf32>
    %281 = vector.shape_cast %280 : vector<17xf32> to vector<17x1xf32>
    %282 = vector.broadcast %281 : vector<17x1xf32> to vector<17x17xf32>
    %283 = arith.subf %279, %282 : vector<17x17xf32>
    %284 = math.exp %283 : vector<17x17xf32>
    %cst_96 = arith.constant dense<0.000000e+00> : vector<17xf32>
    %285 = vector.multi_reduction <add>, %284, %cst_96 [1] : vector<17x17xf32> to vector<17xf32>
    %286 = vector.shape_cast %285 : vector<17xf32> to vector<17x1xf32>
    %287 = tpu.reciprocal %286 {approx = true} : vector<17x1xf32> -> vector<17x1xf32>
    %288 = vector.broadcast %287 : vector<17x1xf32> to vector<17x17xf32>
    %289 = arith.mulf %284, %288 : vector<17x17xf32>
    %cst_97 = arith.constant dense<0.000000e+00> : vector<17x8xf32>
    %290 = tpu.matmul %289, %276, %cst_97 {dimension_numbers = #tpu.dot_dimension_numbers<[1], [0], [0], [1], [0, 0, 1, 1], [], []>} : vector<17x17xf32>, vector<17x8xf32>, vector<17x8xf32> -> vector<17x8xf32>
    %291 = vector.extract_strided_slice %273 {offsets = [0, 8], sizes = [17, 8], strides = [1, 1]} : vector<34x96xf32> to vector<17x8xf32>
    %292 = vector.extract_strided_slice %273 {offsets = [0, 40], sizes = [17, 8], strides = [1, 1]} : vector<34x96xf32> to vector<17x8xf32>
    %293 = vector.extract_strided_slice %273 {offsets = [0, 72], sizes = [17, 8], strides = [1, 1]} : vector<34x96xf32> to vector<17x8xf32>
    "tpu.trace_start"() <{level = 10 : i32, message = "id,jd->ij"}> : () -> ()
    %cst_98 = arith.constant dense<0.000000e+00> : vector<17x17xf32>
    %294 = tpu.matmul %291, %292, %cst_98 {dimension_numbers = #tpu.dot_dimension_numbers<[1], [1], [0], [0], [0, 0, 1, 0], [], []>} : vector<17x8xf32>, vector<17x8xf32>, vector<17x17xf32> -> vector<17x17xf32>
    "tpu.trace_stop"() : () -> ()
    %cst_99 = arith.constant 0.353553385 : f32
    %295 = vector.broadcast %cst_99 : f32 to vector<17x17xf32>
    %296 = arith.mulf %294, %295 : vector<17x17xf32>
    %cst_100 = arith.constant dense<0xFF800000> : vector<17xf32>
    %297 = vector.multi_reduction <maximumf>, %296, %cst_100 [1] : vector<17x17xf32> to vector<17xf32>
    %298 = vector.shape_cast %297 : vector<17xf32> to vector<17x1xf32>
    %299 = vector.broadcast %298 : vector<17x1xf32> to vector<17x17xf32>
    %300 = arith.subf %296, %299 : vector<17x17xf32>
    %301 = math.exp %300 : vector<17x17xf32>
    %cst_101 = arith.constant dense<0.000000e+00> : vector<17xf32>
    %302 = vector.multi_reduction <add>, %301, %cst_101 [1] : vector<17x17xf32> to vector<17xf32>
    %303 = vector.shape_cast %302 : vector<17xf32> to vector<17x1xf32>
    %304 = tpu.reciprocal %303 {approx = true} : vector<17x1xf32> -> vector<17x1xf32>
    %305 = vector.broadcast %304 : vector<17x1xf32> to vector<17x17xf32>
    %306 = arith.mulf %301, %305 : vector<17x17xf32>
    %cst_102 = arith.constant dense<0.000000e+00> : vector<17x8xf32>
    %307 = tpu.matmul %306, %293, %cst_102 {dimension_numbers = #tpu.dot_dimension_numbers<[1], [0], [0], [1], [0, 0, 1, 1], [], []>} : vector<17x17xf32>, vector<17x8xf32>, vector<17x8xf32> -> vector<17x8xf32>
    %308 = vector.extract_strided_slice %273 {offsets = [0, 16], sizes = [17, 8], strides = [1, 1]} : vector<34x96xf32> to vector<17x8xf32>
    %309 = vector.extract_strided_slice %273 {offsets = [0, 48], sizes = [17, 8], strides = [1, 1]} : vector<34x96xf32> to vector<17x8xf32>
    %310 = vector.extract_strided_slice %273 {offsets = [0, 80], sizes = [17, 8], strides = [1, 1]} : vector<34x96xf32> to vector<17x8xf32>
    "tpu.trace_start"() <{level = 10 : i32, message = "id,jd->ij"}> : () -> ()
    %cst_103 = arith.constant dense<0.000000e+00> : vector<17x17xf32>
    %311 = tpu.matmul %308, %309, %cst_103 {dimension_numbers = #tpu.dot_dimension_numbers<[1], [1], [0], [0], [0, 0, 1, 0], [], []>} : vector<17x8xf32>, vector<17x8xf32>, vector<17x17xf32> -> vector<17x17xf32>
    "tpu.trace_stop"() : () -> ()
    %cst_104 = arith.constant 0.353553385 : f32
    %312 = vector.broadcast %cst_104 : f32 to vector<17x17xf32>
    %313 = arith.mulf %311, %312 : vector<17x17xf32>
    %cst_105 = arith.constant dense<0xFF800000> : vector<17xf32>
    %314 = vector.multi_reduction <maximumf>, %313, %cst_105 [1] : vector<17x17xf32> to vector<17xf32>
    %315 = vector.shape_cast %314 : vector<17xf32> to vector<17x1xf32>
    %316 = vector.broadcast %315 : vector<17x1xf32> to vector<17x17xf32>
    %317 = arith.subf %313, %316 : vector<17x17xf32>
    %318 = math.exp %317 : vector<17x17xf32>
    %cst_106 = arith.constant dense<0.000000e+00> : vector<17xf32>
    %319 = vector.multi_reduction <add>, %318, %cst_106 [1] : vector<17x17xf32> to vector<17xf32>
    %320 = vector.shape_cast %319 : vector<17xf32> to vector<17x1xf32>
    %321 = tpu.reciprocal %320 {approx = true} : vector<17x1xf32> -> vector<17x1xf32>
    %322 = vector.broadcast %321 : vector<17x1xf32> to vector<17x17xf32>
    %323 = arith.mulf %318, %322 : vector<17x17xf32>
    %cst_107 = arith.constant dense<0.000000e+00> : vector<17x8xf32>
    %324 = tpu.matmul %323, %310, %cst_107 {dimension_numbers = #tpu.dot_dimension_numbers<[1], [0], [0], [1], [0, 0, 1, 1], [], []>} : vector<17x17xf32>, vector<17x8xf32>, vector<17x8xf32> -> vector<17x8xf32>
    %325 = vector.extract_strided_slice %273 {offsets = [0, 24], sizes = [17, 8], strides = [1, 1]} : vector<34x96xf32> to vector<17x8xf32>
    %326 = vector.extract_strided_slice %273 {offsets = [0, 56], sizes = [17, 8], strides = [1, 1]} : vector<34x96xf32> to vector<17x8xf32>
    %327 = vector.extract_strided_slice %273 {offsets = [0, 88], sizes = [17, 8], strides = [1, 1]} : vector<34x96xf32> to vector<17x8xf32>
    "tpu.trace_start"() <{level = 10 : i32, message = "id,jd->ij"}> : () -> ()
    %cst_108 = arith.constant dense<0.000000e+00> : vector<17x17xf32>
    %328 = tpu.matmul %325, %326, %cst_108 {dimension_numbers = #tpu.dot_dimension_numbers<[1], [1], [0], [0], [0, 0, 1, 0], [], []>} : vector<17x8xf32>, vector<17x8xf32>, vector<17x17xf32> -> vector<17x17xf32>
    "tpu.trace_stop"() : () -> ()
    %cst_109 = arith.constant 0.353553385 : f32
    %329 = vector.broadcast %cst_109 : f32 to vector<17x17xf32>
    %330 = arith.mulf %328, %329 : vector<17x17xf32>
    %cst_110 = arith.constant dense<0xFF800000> : vector<17xf32>
    %331 = vector.multi_reduction <maximumf>, %330, %cst_110 [1] : vector<17x17xf32> to vector<17xf32>
    %332 = vector.shape_cast %331 : vector<17xf32> to vector<17x1xf32>
    %333 = vector.broadcast %332 : vector<17x1xf32> to vector<17x17xf32>
    %334 = arith.subf %330, %333 : vector<17x17xf32>
    %335 = math.exp %334 : vector<17x17xf32>
    %cst_111 = arith.constant dense<0.000000e+00> : vector<17xf32>
    %336 = vector.multi_reduction <add>, %335, %cst_111 [1] : vector<17x17xf32> to vector<17xf32>
    %337 = vector.shape_cast %336 : vector<17xf32> to vector<17x1xf32>
    %338 = tpu.reciprocal %337 {approx = true} : vector<17x1xf32> -> vector<17x1xf32>
    %339 = vector.broadcast %338 : vector<17x1xf32> to vector<17x17xf32>
    %340 = arith.mulf %335, %339 : vector<17x17xf32>
    %cst_112 = arith.constant dense<0.000000e+00> : vector<17x8xf32>
    %341 = tpu.matmul %340, %327, %cst_112 {dimension_numbers = #tpu.dot_dimension_numbers<[1], [0], [0], [1], [0, 0, 1, 1], [], []>} : vector<17x17xf32>, vector<17x8xf32>, vector<17x8xf32> -> vector<17x8xf32>
    %342 = tpu.concatenate %290, %307, %324, %341 in 1 : vector<17x8xf32>, vector<17x8xf32>, vector<17x8xf32>, vector<17x8xf32> -> vector<17x32xf32>
    %343 = vector.extract_strided_slice %273 {offsets = [17, 0], sizes = [17, 8], strides = [1, 1]} : vector<34x96xf32> to vector<17x8xf32>
    %344 = vector.extract_strided_slice %273 {offsets = [17, 32], sizes = [17, 8], strides = [1, 1]} : vector<34x96xf32> to vector<17x8xf32>
    %345 = vector.extract_strided_slice %273 {offsets = [17, 64], sizes = [17, 8], strides = [1, 1]} : vector<34x96xf32> to vector<17x8xf32>
    "tpu.trace_start"() <{level = 10 : i32, message = "id,jd->ij"}> : () -> ()
    %cst_113 = arith.constant dense<0.000000e+00> : vector<17x17xf32>
    %346 = tpu.matmul %343, %344, %cst_113 {dimension_numbers = #tpu.dot_dimension_numbers<[1], [1], [0], [0], [0, 0, 1, 0], [], []>} : vector<17x8xf32>, vector<17x8xf32>, vector<17x17xf32> -> vector<17x17xf32>
    "tpu.trace_stop"() : () -> ()
    %cst_114 = arith.constant 0.353553385 : f32
    %347 = vector.broadcast %cst_114 : f32 to vector<17x17xf32>
    %348 = arith.mulf %346, %347 : vector<17x17xf32>
    %cst_115 = arith.constant dense<0xFF800000> : vector<17xf32>
    %349 = vector.multi_reduction <maximumf>, %348, %cst_115 [1] : vector<17x17xf32> to vector<17xf32>
    %350 = vector.shape_cast %349 : vector<17xf32> to vector<17x1xf32>
    %351 = vector.broadcast %350 : vector<17x1xf32> to vector<17x17xf32>
    %352 = arith.subf %348, %351 : vector<17x17xf32>
    %353 = math.exp %352 : vector<17x17xf32>
    %cst_116 = arith.constant dense<0.000000e+00> : vector<17xf32>
    %354 = vector.multi_reduction <add>, %353, %cst_116 [1] : vector<17x17xf32> to vector<17xf32>
    %355 = vector.shape_cast %354 : vector<17xf32> to vector<17x1xf32>
    %356 = tpu.reciprocal %355 {approx = true} : vector<17x1xf32> -> vector<17x1xf32>
    %357 = vector.broadcast %356 : vector<17x1xf32> to vector<17x17xf32>
    %358 = arith.mulf %353, %357 : vector<17x17xf32>
    %cst_117 = arith.constant dense<0.000000e+00> : vector<17x8xf32>
    %359 = tpu.matmul %358, %345, %cst_117 {dimension_numbers = #tpu.dot_dimension_numbers<[1], [0], [0], [1], [0, 0, 1, 1], [], []>} : vector<17x17xf32>, vector<17x8xf32>, vector<17x8xf32> -> vector<17x8xf32>
    %360 = vector.extract_strided_slice %273 {offsets = [17, 8], sizes = [17, 8], strides = [1, 1]} : vector<34x96xf32> to vector<17x8xf32>
    %361 = vector.extract_strided_slice %273 {offsets = [17, 40], sizes = [17, 8], strides = [1, 1]} : vector<34x96xf32> to vector<17x8xf32>
    %362 = vector.extract_strided_slice %273 {offsets = [17, 72], sizes = [17, 8], strides = [1, 1]} : vector<34x96xf32> to vector<17x8xf32>
    "tpu.trace_start"() <{level = 10 : i32, message = "id,jd->ij"}> : () -> ()
    %cst_118 = arith.constant dense<0.000000e+00> : vector<17x17xf32>
    %363 = tpu.matmul %360, %361, %cst_118 {dimension_numbers = #tpu.dot_dimension_numbers<[1], [1], [0], [0], [0, 0, 1, 0], [], []>} : vector<17x8xf32>, vector<17x8xf32>, vector<17x17xf32> -> vector<17x17xf32>
    "tpu.trace_stop"() : () -> ()
    %cst_119 = arith.constant 0.353553385 : f32
    %364 = vector.broadcast %cst_119 : f32 to vector<17x17xf32>
    %365 = arith.mulf %363, %364 : vector<17x17xf32>
    %cst_120 = arith.constant dense<0xFF800000> : vector<17xf32>
    %366 = vector.multi_reduction <maximumf>, %365, %cst_120 [1] : vector<17x17xf32> to vector<17xf32>
    %367 = vector.shape_cast %366 : vector<17xf32> to vector<17x1xf32>
    %368 = vector.broadcast %367 : vector<17x1xf32> to vector<17x17xf32>
    %369 = arith.subf %365, %368 : vector<17x17xf32>
    %370 = math.exp %369 : vector<17x17xf32>
    %cst_121 = arith.constant dense<0.000000e+00> : vector<17xf32>
    %371 = vector.multi_reduction <add>, %370, %cst_121 [1] : vector<17x17xf32> to vector<17xf32>
    %372 = vector.shape_cast %371 : vector<17xf32> to vector<17x1xf32>
    %373 = tpu.reciprocal %372 {approx = true} : vector<17x1xf32> -> vector<17x1xf32>
    %374 = vector.broadcast %373 : vector<17x1xf32> to vector<17x17xf32>
    %375 = arith.mulf %370, %374 : vector<17x17xf32>
    %cst_122 = arith.constant dense<0.000000e+00> : vector<17x8xf32>
    %376 = tpu.matmul %375, %362, %cst_122 {dimension_numbers = #tpu.dot_dimension_numbers<[1], [0], [0], [1], [0, 0, 1, 1], [], []>} : vector<17x17xf32>, vector<17x8xf32>, vector<17x8xf32> -> vector<17x8xf32>
    %377 = vector.extract_strided_slice %273 {offsets = [17, 16], sizes = [17, 8], strides = [1, 1]} : vector<34x96xf32> to vector<17x8xf32>
    %378 = vector.extract_strided_slice %273 {offsets = [17, 48], sizes = [17, 8], strides = [1, 1]} : vector<34x96xf32> to vector<17x8xf32>
    %379 = vector.extract_strided_slice %273 {offsets = [17, 80], sizes = [17, 8], strides = [1, 1]} : vector<34x96xf32> to vector<17x8xf32>
    "tpu.trace_start"() <{level = 10 : i32, message = "id,jd->ij"}> : () -> ()
    %cst_123 = arith.constant dense<0.000000e+00> : vector<17x17xf32>
    %380 = tpu.matmul %377, %378, %cst_123 {dimension_numbers = #tpu.dot_dimension_numbers<[1], [1], [0], [0], [0, 0, 1, 0], [], []>} : vector<17x8xf32>, vector<17x8xf32>, vector<17x17xf32> -> vector<17x17xf32>
    "tpu.trace_stop"() : () -> ()
    %cst_124 = arith.constant 0.353553385 : f32
    %381 = vector.broadcast %cst_124 : f32 to vector<17x17xf32>
    %382 = arith.mulf %380, %381 : vector<17x17xf32>
    %cst_125 = arith.constant dense<0xFF800000> : vector<17xf32>
    %383 = vector.multi_reduction <maximumf>, %382, %cst_125 [1] : vector<17x17xf32> to vector<17xf32>
    %384 = vector.shape_cast %383 : vector<17xf32> to vector<17x1xf32>
    %385 = vector.broadcast %384 : vector<17x1xf32> to vector<17x17xf32>
    %386 = arith.subf %382, %385 : vector<17x17xf32>
    %387 = math.exp %386 : vector<17x17xf32>
    %cst_126 = arith.constant dense<0.000000e+00> : vector<17xf32>
    %388 = vector.multi_reduction <add>, %387, %cst_126 [1] : vector<17x17xf32> to vector<17xf32>
    %389 = vector.shape_cast %388 : vector<17xf32> to vector<17x1xf32>
    %390 = tpu.reciprocal %389 {approx = true} : vector<17x1xf32> -> vector<17x1xf32>
    %391 = vector.broadcast %390 : vector<17x1xf32> to vector<17x17xf32>
    %392 = arith.mulf %387, %391 : vector<17x17xf32>
    %cst_127 = arith.constant dense<0.000000e+00> : vector<17x8xf32>
    %393 = tpu.matmul %392, %379, %cst_127 {dimension_numbers = #tpu.dot_dimension_numbers<[1], [0], [0], [1], [0, 0, 1, 1], [], []>} : vector<17x17xf32>, vector<17x8xf32>, vector<17x8xf32> -> vector<17x8xf32>
    %394 = vector.extract_strided_slice %273 {offsets = [17, 24], sizes = [17, 8], strides = [1, 1]} : vector<34x96xf32> to vector<17x8xf32>
    %395 = vector.extract_strided_slice %273 {offsets = [17, 56], sizes = [17, 8], strides = [1, 1]} : vector<34x96xf32> to vector<17x8xf32>
    %396 = vector.extract_strided_slice %273 {offsets = [17, 88], sizes = [17, 8], strides = [1, 1]} : vector<34x96xf32> to vector<17x8xf32>
    "tpu.trace_start"() <{level = 10 : i32, message = "id,jd->ij"}> : () -> ()
    %cst_128 = arith.constant dense<0.000000e+00> : vector<17x17xf32>
    %397 = tpu.matmul %394, %395, %cst_128 {dimension_numbers = #tpu.dot_dimension_numbers<[1], [1], [0], [0], [0, 0, 1, 0], [], []>} : vector<17x8xf32>, vector<17x8xf32>, vector<17x17xf32> -> vector<17x17xf32>
    "tpu.trace_stop"() : () -> ()
    %cst_129 = arith.constant 0.353553385 : f32
    %398 = vector.broadcast %cst_129 : f32 to vector<17x17xf32>
    %399 = arith.mulf %397, %398 : vector<17x17xf32>
    %cst_130 = arith.constant dense<0xFF800000> : vector<17xf32>
    %400 = vector.multi_reduction <maximumf>, %399, %cst_130 [1] : vector<17x17xf32> to vector<17xf32>
    %401 = vector.shape_cast %400 : vector<17xf32> to vector<17x1xf32>
    %402 = vector.broadcast %401 : vector<17x1xf32> to vector<17x17xf32>
    %403 = arith.subf %399, %402 : vector<17x17xf32>
    %404 = math.exp %403 : vector<17x17xf32>
    %cst_131 = arith.constant dense<0.000000e+00> : vector<17xf32>
    %405 = vector.multi_reduction <add>, %404, %cst_131 [1] : vector<17x17xf32> to vector<17xf32>
    %406 = vector.shape_cast %405 : vector<17xf32> to vector<17x1xf32>
    %407 = tpu.reciprocal %406 {approx = true} : vector<17x1xf32> -> vector<17x1xf32>
    %408 = vector.broadcast %407 : vector<17x1xf32> to vector<17x17xf32>
    %409 = arith.mulf %404, %408 : vector<17x17xf32>
    %cst_132 = arith.constant dense<0.000000e+00> : vector<17x8xf32>
    %410 = tpu.matmul %409, %396, %cst_132 {dimension_numbers = #tpu.dot_dimension_numbers<[1], [0], [0], [1], [0, 0, 1, 1], [], []>} : vector<17x17xf32>, vector<17x8xf32>, vector<17x8xf32> -> vector<17x8xf32>
    %411 = tpu.concatenate %359, %376, %393, %410 in 1 : vector<17x8xf32>, vector<17x8xf32>, vector<17x8xf32>, vector<17x8xf32> -> vector<17x32xf32>
    %412 = tpu.concatenate %342, %411 in 0 : vector<17x32xf32>, vector<17x32xf32> -> vector<34x32xf32>
    %c1_133 = arith.constant 1 : index
    %c0_134 = arith.constant 0 : index
    %c0_135 = arith.constant 0 : index
    %413 = vector.load %arg4[%c1_133, %c0_134, %c0_135] : memref<2x32x32xf32, #tpu.memory_space<vmem>>, vector<1x32x32xf32>
    %414 = vector.shape_cast %413 : vector<1x32x32xf32> to vector<32x32xf32>
    %cst_136 = arith.constant dense<0.000000e+00> : vector<34x32xf32>
    %415 = tpu.matmul %412, %414, %cst_136 {dimension_numbers = #tpu.dot_dimension_numbers<[1], [0], [0], [1], [0, 0, 1, 1], [], []>} : vector<34x32xf32>, vector<32x32xf32>, vector<34x32xf32> -> vector<34x32xf32>
    %416 = arith.addf %239, %415 : vector<34x32xf32>
    %417 = vector.broadcast %246 : vector<1x32xf32> to vector<34x32xf32>
    %418 = arith.addf %416, %417 : vector<34x32xf32>
    %cst_137 = arith.constant dense<0.000000e+00> : vector<34xf32>
    %419 = vector.multi_reduction <add>, %418, %cst_137 [1] : vector<34x32xf32> to vector<34xf32>
    %420 = vector.shape_cast %419 : vector<34xf32> to vector<34x1xf32>
    %cst_138 = arith.constant 3.200000e+01 : f32
    %421 = vector.broadcast %cst_138 : f32 to vector<34x1xf32>
    %422 = arith.divf %420, %421 : vector<34x1xf32>
    %423 = vector.broadcast %422 : vector<34x1xf32> to vector<34x32xf32>
    %424 = arith.subf %418, %423 : vector<34x32xf32>
    %425 = arith.mulf %424, %424 : vector<34x32xf32>
    %cst_139 = arith.constant dense<0.000000e+00> : vector<34xf32>
    %426 = vector.multi_reduction <add>, %425, %cst_139 [1] : vector<34x32xf32> to vector<34xf32>
    %427 = vector.shape_cast %426 : vector<34xf32> to vector<34x1xf32>
    %cst_140 = arith.constant 3.200000e+01 : f32
    %428 = vector.broadcast %cst_140 : f32 to vector<34x1xf32>
    %429 = arith.divf %427, %428 : vector<34x1xf32>
    %430 = vector.broadcast %422 : vector<34x1xf32> to vector<34x32xf32>
    %431 = arith.subf %418, %430 : vector<34x32xf32>
    %cst_141 = arith.constant 9.99999974E-6 : f32
    %432 = vector.broadcast %cst_141 : f32 to vector<34x1xf32>
    %433 = arith.addf %429, %432 : vector<34x1xf32>
    %434 = math.rsqrt %433 : vector<34x1xf32>
    %435 = vector.broadcast %434 : vector<34x1xf32> to vector<34x32xf32>
    %436 = arith.mulf %431, %435 : vector<34x32xf32>
    %437 = vector.broadcast %244 : vector<1x32xf32> to vector<34x32xf32>
    %438 = arith.mulf %436, %437 : vector<34x32xf32>
    %439 = vector.broadcast %245 : vector<1x32xf32> to vector<34x32xf32>
    %440 = arith.addf %438, %439 : vector<34x32xf32>
    %c1_142 = arith.constant 1 : index
    %c0_143 = arith.constant 0 : index
    %c0_144 = arith.constant 0 : index
    %441 = vector.load %arg5[%c1_142, %c0_143, %c0_144] : memref<2x32x64xf32, #tpu.memory_space<vmem>>, vector<1x32x64xf32>
    %442 = vector.shape_cast %441 : vector<1x32x64xf32> to vector<32x64xf32>
    %cst_145 = arith.constant dense<0.000000e+00> : vector<34x64xf32>
    %443 = tpu.matmul %440, %442, %cst_145 {dimension_numbers = #tpu.dot_dimension_numbers<[1], [0], [0], [1], [0, 0, 1, 1], [], []>} : vector<34x32xf32>, vector<32x64xf32>, vector<34x64xf32> -> vector<34x64xf32>
    %444 = vector.broadcast %248 : vector<1x64xf32> to vector<34x64xf32>
    %445 = arith.addf %443, %444 : vector<34x64xf32>
    %cst_146 = arith.constant 5.000000e-01 : f32
    %446 = vector.broadcast %cst_146 : f32 to vector<34x64xf32>
    %447 = arith.mulf %446, %445 : vector<34x64xf32>
    %cst_147 = arith.constant 4.471500e-02 : f32
    %448 = vector.broadcast %cst_147 : f32 to vector<34x64xf32>
    %449 = arith.mulf %448, %445 : vector<34x64xf32>
    %450 = arith.mulf %449, %445 : vector<34x64xf32>
    %451 = arith.mulf %450, %445 : vector<34x64xf32>
    %452 = arith.addf %445, %451 : vector<34x64xf32>
    %cst_148 = arith.constant 0.797884583 : f32
    %453 = vector.broadcast %cst_148 : f32 to vector<34x64xf32>
    %454 = arith.mulf %453, %452 : vector<34x64xf32>
    %455 = math.tanh %454 : vector<34x64xf32>
    %cst_149 = arith.constant 1.000000e+00 : f32
    %456 = vector.broadcast %cst_149 : f32 to vector<34x64xf32>
    %457 = arith.addf %456, %455 : vector<34x64xf32>
    %458 = arith.mulf %447, %457 : vector<34x64xf32>
    %c1_150 = arith.constant 1 : index
    %c0_151 = arith.constant 0 : index
    %c0_152 = arith.constant 0 : index
    %459 = vector.load %arg6[%c1_150, %c0_151, %c0_152] : memref<2x64x32xf32, #tpu.memory_space<vmem>>, vector<1x64x32xf32>
    %460 = vector.shape_cast %459 : vector<1x64x32xf32> to vector<64x32xf32>
    %cst_153 = arith.constant dense<0.000000e+00> : vector<34x32xf32>
    %461 = tpu.matmul %458, %460, %cst_153 {dimension_numbers = #tpu.dot_dimension_numbers<[1], [0], [0], [1], [0, 0, 1, 1], [], []>} : vector<34x64xf32>, vector<64x32xf32>, vector<34x32xf32> -> vector<34x32xf32>
    %462 = arith.addf %418, %461 : vector<34x32xf32>
    %463 = vector.broadcast %247 : vector<1x32xf32> to vector<34x32xf32>
    %464 = arith.addf %462, %463 : vector<34x32xf32>
    %465 = vector.extract_strided_slice %464 {offsets = [0, 0], sizes = [1, 32], strides = [1, 1]} : vector<34x32xf32> to vector<1x32xf32>
    %466 = vector.extract_strided_slice %464 {offsets = [17, 0], sizes = [1, 32], strides = [1, 1]} : vector<34x32xf32> to vector<1x32xf32>
    %467 = tpu.concatenate %465, %466 in 0 : vector<1x32xf32>, vector<1x32xf32> -> vector<2x32xf32>
    %c33 = arith.constant 33 : index
    %c0_154 = arith.constant 0 : index
    %468 = vector.load %arg8[%c33, %c0_154] : memref<35x128xf32, #tpu.memory_space<vmem>>, vector<1x32xf32>
    %c34 = arith.constant 34 : index
    %c0_155 = arith.constant 0 : index
    %469 = vector.load %arg8[%c34, %c0_155] : memref<35x128xf32, #tpu.memory_space<vmem>>, vector<1x32xf32>
    %cst_156 = arith.constant dense<0.000000e+00> : vector<2xf32>
    %470 = vector.multi_reduction <add>, %467, %cst_156 [1] : vector<2x32xf32> to vector<2xf32>
    %471 = vector.shape_cast %470 : vector<2xf32> to vector<2x1xf32>
    %cst_157 = arith.constant 3.200000e+01 : f32
    %472 = vector.broadcast %cst_157 : f32 to vector<2x1xf32>
    %473 = arith.divf %471, %472 : vector<2x1xf32>
    %474 = vector.broadcast %473 : vector<2x1xf32> to vector<2x32xf32>
    %475 = arith.subf %467, %474 : vector<2x32xf32>
    %476 = arith.mulf %475, %475 : vector<2x32xf32>
    %cst_158 = arith.constant dense<0.000000e+00> : vector<2xf32>
    %477 = vector.multi_reduction <add>, %476, %cst_158 [1] : vector<2x32xf32> to vector<2xf32>
    %478 = vector.shape_cast %477 : vector<2xf32> to vector<2x1xf32>
    %cst_159 = arith.constant 3.200000e+01 : f32
    %479 = vector.broadcast %cst_159 : f32 to vector<2x1xf32>
    %480 = arith.divf %478, %479 : vector<2x1xf32>
    %481 = vector.broadcast %473 : vector<2x1xf32> to vector<2x32xf32>
    %482 = arith.subf %467, %481 : vector<2x32xf32>
    %cst_160 = arith.constant 9.99999974E-6 : f32
    %483 = vector.broadcast %cst_160 : f32 to vector<2x1xf32>
    %484 = arith.addf %480, %483 : vector<2x1xf32>
    %485 = math.rsqrt %484 : vector<2x1xf32>
    %486 = vector.broadcast %485 : vector<2x1xf32> to vector<2x32xf32>
    %487 = arith.mulf %482, %486 : vector<2x32xf32>
    %488 = vector.broadcast %468 : vector<1x32xf32> to vector<2x32xf32>
    %489 = arith.mulf %487, %488 : vector<2x32xf32>
    %490 = vector.broadcast %469 : vector<1x32xf32> to vector<2x32xf32>
    %491 = arith.addf %489, %490 : vector<2x32xf32>
    %c0_161 = arith.constant 0 : index
    %c0_162 = arith.constant 0 : index
    %492 = vector.load %arg8[%c0_161, %c0_162] : memref<35x128xf32, #tpu.memory_space<vmem>>, vector<32x128xf32>
    %cst_163 = arith.constant dense<0.000000e+00> : vector<2x128xf32>
    %493 = tpu.matmul %491, %492, %cst_163 {dimension_numbers = #tpu.dot_dimension_numbers<[1], [0], [0], [1], [0, 0, 1, 1], [], []>} : vector<2x32xf32>, vector<32x128xf32>, vector<2x128xf32> -> vector<2x128xf32>
    %c32 = arith.constant 32 : index
    %c0_164 = arith.constant 0 : index
    %494 = vector.load %arg8[%c32, %c0_164] : memref<35x128xf32, #tpu.memory_space<vmem>>, vector<1x128xf32>
    %495 = vector.broadcast %494 : vector<1x128xf32> to vector<2x128xf32>
    %496 = arith.addf %493, %495 : vector<2x128xf32>
    %c0_165 = arith.constant 0 : index
    %c0_166 = arith.constant 0 : index
    %497 = vector.load %arg9[%c0_165, %c0_166] : memref<2x128xf32, #tpu.memory_space<vmem>>, vector<2x128xf32>
    tpu.vector_store %arg9[%c0_165, %c0_166], %496 {strides = array<i32>} : memref<2x128xf32, #tpu.memory_space<vmem>>, vector<2x128xf32>,
    return
  }
}

</mosaic_0001>

<llo_original>
// kernel: kwt_forward_pallas.1
$region0: #{kwt_forward_pallas.1}
  #allocation0 [shape = 'u32[]', space=smem, size = 0x4, offset = 0x4, fixed_abs, tag = 'smem constant byte address 0x4 - core index']
  #allocation1 [shape = 'u32[72,128]{1,0:T(1,128)}', space=vmem, size = 0x9000, scoped, tag = 'internal scratch']
  %s0 = inlined_call_operand.vmem [shape: f32[32,16], index: 0, kind: input, shape index: {}]
  %s1 = inlined_call_operand.vmem [shape: f32[17,32], index: 1, kind: input, shape index: {}]
  %s2 = inlined_call_operand.vmem [shape: f32[18,32], index: 2, kind: input, shape index: {}]
  %s3 = inlined_call_operand.vmem [shape: f32[2,32,96], index: 3, kind: input, shape index: {}]
  %s4 = inlined_call_operand.vmem [shape: f32[2,32,32], index: 4, kind: input, shape index: {}]
  %s5 = inlined_call_operand.vmem [shape: f32[2,32,64], index: 5, kind: input, shape index: {}]
  %s6 = inlined_call_operand.vmem [shape: f32[2,64,32], index: 6, kind: input, shape index: {}]
  %s7 = inlined_call_operand.vmem [shape: f32[2,7,64], index: 7, kind: input, shape index: {}]
  %s8 = inlined_call_operand.vmem [shape: f32[35,128], index: 8, kind: input, shape index: {}]
  %s9 = inlined_call_operand.hbm [shape: f32[2,128], index: 9, kind: output, shape index: {}]
  %s10 = sld [smem:[#allocation0]]
  $region46: #{kwt_forward_pallas.1} parent=0
    _
  %s12 = ssub.s32 1, %s10
  %s13 = scalar_select 0, %s12, %s10
  $region1: #{kwt_forward_pallas.1} parent=0
    #allocation2 [shape = 'u8[1024]{0}', space=vmem, size = 0x400, scoped, tag = 'output window, operand 0, single buffered']
    #allocation3 [shape = 's32[1]{0}', space=sflag, size = 0x4, scoped, tag = 'scoped memory for kwt_forward_pallas.1']
    %14 = vsyncpa [#allocation3], 0
    // Predicated region
    $region2: #{kwt_forward_pallas.1} parent=1 // pred_check
      _
    $region3: #{kwt_forward_pallas.1} parent=1 // pred_check_branch
      %16 = sbr.rel (0) target = $region5
    $region4: #{kwt_forward_pallas.1} parent=1 // pred_region
      _
    $region5: #{kwt_forward_pallas.1} parent=1 // pred_fallthru
      _
    // Predicated region
    $region6: #{kwt_forward_pallas.1} parent=1 // pred_check
      _
    $region7: #{kwt_forward_pallas.1} parent=1 // pred_check_branch
      %18 = sbr.rel (0) target = $region9
    $region8: #{kwt_forward_pallas.1} parent=1 // pred_region
      _
    $region9: #{kwt_forward_pallas.1} parent=1 // pred_fallthru
      _
    // Predicated region
    $region10: #{kwt_forward_pallas.1} parent=1 // pred_check
      _
    $region11: #{kwt_forward_pallas.1} parent=1 // pred_check_branch
      %20 = sbr.rel (0) target = $region13
    $region12: #{kwt_forward_pallas.1} parent=1 // pred_region
      _
    $region13: #{kwt_forward_pallas.1} parent=1 // pred_fallthru
      _
    // Predicated region
    $region14: #{kwt_forward_pallas.1} parent=1 // pred_check
      _
    $region15: #{kwt_forward_pallas.1} parent=1 // pred_check_branch
      %22 = sbr.rel (0) target = $region17
    $region16: #{kwt_forward_pallas.1} parent=1 // pred_region
      _
    $region17: #{kwt_forward_pallas.1} parent=1 // pred_fallthru
      _
    // Predicated region
    $region18: #{kwt_forward_pallas.1} parent=1 // pred_check
      _
    $region19: #{kwt_forward_pallas.1} parent=1 // pred_check_branch
      %24 = sbr.rel (0) target = $region21
    $region20: #{kwt_forward_pallas.1} parent=1 // pred_region
      _
    $region21: #{kwt_forward_pallas.1} parent=1 // pred_fallthru
      _
    // Predicated region
    $region22: #{kwt_forward_pallas.1} parent=1 // pred_check
      _
    $region23: #{kwt_forward_pallas.1} parent=1 // pred_check_branch
      %26 = sbr.rel (0) target = $region25
    $region24: #{kwt_forward_pallas.1} parent=1 // pred_region
      _
    $region25: #{kwt_forward_pallas.1} parent=1 // pred_fallthru
      _
    // Predicated region
    $region26: #{kwt_forward_pallas.1} parent=1 // pred_check
      _
    $region27: #{kwt_forward_pallas.1} parent=1 // pred_check_branch
      %28 = sbr.rel (0) target = $region29
    $region28: #{kwt_forward_pallas.1} parent=1 // pred_region
      _
    $region29: #{kwt_forward_pallas.1} parent=1 // pred_fallthru
      _
    // Predicated region
    $region30: #{kwt_forward_pallas.1} parent=1 // pred_check
      _
    $region31: #{kwt_forward_pallas.1} parent=1 // pred_check_branch
      %30 = sbr.rel (0) target = $region33
    $region32: #{kwt_forward_pallas.1} parent=1 // pred_region
      _
    $region33: #{kwt_forward_pallas.1} parent=1 // pred_fallthru
      _
    // Predicated region
    $region34: #{kwt_forward_pallas.1} parent=1 // pred_check
      _
    $region35: #{kwt_forward_pallas.1} parent=1 // pred_check_branch
      %32 = sbr.rel (0) target = $region37
    $region36: #{kwt_forward_pallas.1} parent=1 // pred_region
      _
    $region37: #{kwt_forward_pallas.1} parent=1 // pred_fallthru
      _
    %v33 = vld [vmem:[%s0] sm:$0xff]
    %v34 = vld [vmem:[%s0 + $0x8] sm:$0xff]
    %v35 = vld [vmem:[%s0 + $0x10] sm:$0xff]
    %v36 = vld [vmem:[%s0 + $0x18] sm:$0xff]
    %v37 = vld [vmem:[%s1] sm:$0xff]
    %v38 = vld [vmem:[%s1 + $0x8] sm:$0xff]
    %v39 = vld [vmem:[%s1 + $0x10] sm:$0x1]
    %v40 = vperm.slane %v39, 0
    %vm41 = vcmask 130048
    %v43 = vsel %vm41, %v33, 0
    %v46 = vsel %vm41, %v34, 0
    %v49 = vsel %vm41, %v35, 0
    %v52 = vsel %vm41, %v36, 0
    %54 = vmatpush.msra.mxu0 0.0
    %55 = vmatpush.msra.mxu0 0.0
    %56 = vmatpush.msra.mxu0 0.0
    %57 = vmatpush.msra.mxu0 0.0
    %58 = vmatpush.msra.mxu0 0.0
    %59 = vmatpush.msra.mxu0 0.0
    %60 = vmatpush.msra.mxu0 0.0
    %61 = vmatpush.msra.mxu0 0.0
    %62 = vmatpush.msra.mxu0 0.0
    %63 = vmatpush.msra.mxu0 0.0
    %64 = vmatpush.msra.mxu0 0.0
    %65 = vmatpush.msra.mxu0 0.0
    %66 = vmatpush.msra.mxu0 0.0
    %67 = vmatpush.msra.mxu0 0.0
    %68 = vmatpush.msra.mxu0 %v38
    %69 = vmatpush.msra.mxu0 %v37
    %70 = vmatmul.f32.gmra.mxu0 %v43
    %v71 = vpop.f32.mrf.mxu0
    %v72 = vadd.f32 %v40, %v71
    %73 = vmatmul.f32.gmra.mxu0 %v46
    %v74 = vpop.f32.mrf.mxu0
    %v75 = vadd.f32 %v40, %v74
    %76 = vmatmul.f32.gmra.mxu0 %v49
    %v77 = vpop.f32.mrf.mxu0
    %v78 = vadd.f32 %v40, %v77
    %79 = vmatmul.f32.gmra.mxu0 %v52
    %v80 = vpop.f32.mrf.mxu0
    %v81 = vadd.f32 %v40, %v80
    %82 = vdwg.mxu0
    %v83 = vld [vmem:[%s2] sm:$0x1]
    %v84 = vld [vmem:[%s2 + $0x1] sm:$0x1]
    %v85 = vadd.f32 %v83, %v84
    %v86 = vld [vmem:[%s2 + $0x2] sm:$0xff]
    %v87 = vld [vmem:[%s2 + $0xa] sm:$0xff]
    %v88 = vadd.f32 %v72, %v86
    %v89 = vadd.f32 %v75, %v87
    %v90 = vadd.f32 %v78, %v86
    %v91 = vadd.f32 %v81, %v87
    %vm94 = vcmask 1040384
    %v95 = vrot.slane %v88, 7
    %v96 = vrot.slane %v89, 7
    %v97 = vsel %vm94, %v95, %v96
    %v102 = vrot.slane %v85, 7
    %vm106 = vcmask 1041408
    %v107 = vrot.slane %v90, 6
    %v108 = vrot.slane %v91, 6
    %v109 = vsel %vm106, %v107, %v108
    %v113 = vsel %vm94, %v85, %v95
    %v114 = vsel %vm94, %v96, %v102
    %v115 = vsel %vm106, %v114, %v107
    %v116 = vld [vmem:[%s7] sm:$0x7f]
    %vm117 = vcmask 261120
    %v118 = vsel %vm117, %v113, 0.0
    %119 = vadd.xlane.f32.xlu0 %v118
    %v120 = vpop.xlane.xlu0 %119
    %v121 = vsel %vm117, %v97, 0.0
    %122 = vadd.xlane.f32.xlu0 %v121
    %v123 = vpop.xlane.xlu0 %122
    %v124 = vsel %vm117, %v115, 0.0
    %125 = vadd.xlane.f32.xlu0 %v124
    %v126 = vpop.xlane.xlu0 %125
    %v127 = vsel %vm117, %v109, 0.0
    %128 = vadd.xlane.f32.xlu0 %v127
    %v129 = vpop.xlane.xlu0 %128
    %vm130 = vcmask 254976
    %v131 = vsel %vm130, %v108, 0.0
    %132 = vadd.xlane.f32.xlu0 %v131
    %v133 = vpop.xlane.xlu0 %132
    %v134 = vrcp.pop 32.0
    %v135 = vmul.f32 32.0, %v134
    %v136 = vsub.f32 1.0, %v135
    %v137 = vmul.f32 %v134, %v136
    %v138 = vadd.f32 %v134, %v137
    %vm139 = vweird.f32 %v134
    %v140 = vsel %vm139, %v134, %v138
    %v141 = vmul.f32 %v120, %v140
    %v142 = vmul.f32 %v123, %v140
    %v143 = vmul.f32 %v126, %v140
    %v144 = vmul.f32 %v129, %v140
    %v145 = vmul.f32 %v133, %v140
    %v146 = vsub.f32 %v113, %v141
    %v147 = vsub.f32 %v97, %v142
    %v148 = vsub.f32 %v115, %v143
    %v149 = vsub.f32 %v109, %v144
    %v150 = vsub.f32 %v108, %v145
    %v151 = vmul.f32 %v146, %v146
    %v152 = vmul.f32 %v147, %v147
    %v153 = vmul.f32 %v148, %v148
    %v154 = vmul.f32 %v149, %v149
    %v155 = vmul.f32 %v150, %v150
    %v156 = vsel %vm117, %v151, 0.0
    %157 = vadd.xlane.f32.xlu0 %v156
    %v158 = vpop.xlane.xlu0 %157
    %v159 = vsel %vm117, %v152, 0.0
    %160 = vadd.xlane.f32.xlu0 %v159
    %v161 = vpop.xlane.xlu0 %160
    %v162 = vsel %vm117, %v153, 0.0
    %163 = vadd.xlane.f32.xlu0 %v162
    %v164 = vpop.xlane.xlu0 %163
    %v165 = vsel %vm117, %v154, 0.0
    %166 = vadd.xlane.f32.xlu0 %v165
    %v167 = vpop.xlane.xlu0 %166
    %v168 = vsel %vm130, %v155, 0.0
    %169 = vadd.xlane.f32.xlu0 %v168
    %v170 = vpop.xlane.xlu0 %169
    %v171 = vmul.f32 %v158, %v140
    %v172 = vmul.f32 %v161, %v140
    %v173 = vmul.f32 %v164, %v140
    %v174 = vmul.f32 %v167, %v140
    %v175 = vmul.f32 %v170, %v140
    %v176 = vadd.f32 %v171, 1e-05
    %v177 = vadd.f32 %v172, 1e-05
    %v178 = vadd.f32 %v173, 1e-05
    %v179 = vadd.f32 %v174, 1e-05
    %v180 = vadd.f32 %v175, 1e-05
    %v181 = vrsqrt.pop %v176
    %v182 = vmul.f32 %v181, %v176
    %v183 = vmul.f32 %v182, %v181
    %v184 = vmul.f32 0.5, %v183
    %v185 = vsub.f32 1.5, %v184
    %v186 = vmul.f32 %v181, %v185
    %vm187 = vweird.f32 %v176
    %vm188 = vweird.f32 %v181
    %vm189 = vmor %vm187, %vm188
    %v190 = vsel %vm189, %v181, %v186
    %v191 = vrsqrt.pop %v177
    %v192 = vmul.f32 %v191, %v177
    %v193 = vmul.f32 %v192, %v191
    %v194 = vmul.f32 0.5, %v193
    %v195 = vsub.f32 1.5, %v194
    %v196 = vmul.f32 %v191, %v195
    %vm197 = vweird.f32 %v177
    %vm198 = vweird.f32 %v191
    %vm199 = vmor %vm197, %vm198
    %v200 = vsel %vm199, %v191, %v196
    %v201 = vrsqrt.pop %v178
    %v202 = vmul.f32 %v201, %v178
    %v203 = vmul.f32 %v202, %v201
    %v204 = vmul.f32 0.5, %v203
    %v205 = vsub.f32 1.5, %v204
    %v206 = vmul.f32 %v201, %v205
    %vm207 = vweird.f32 %v178
    %vm208 = vweird.f32 %v201
    %vm209 = vmor %vm207, %vm208
    %v210 = vsel %vm209, %v201, %v206
    %v211 = vrsqrt.pop %v179
    %v212 = vmul.f32 %v211, %v179
    %v213 = vmul.f32 %v212, %v211
    %v214 = vmul.f32 0.5, %v213
    %v215 = vsub.f32 1.5, %v214
    %v216 = vmul.f32 %v211, %v215
    %vm217 = vweird.f32 %v179
    %vm218 = vweird.f32 %v211
    %vm219 = vmor %vm217, %vm218
    %v220 = vsel %vm219, %v211, %v216
    %v221 = vrsqrt.pop %v180
    %v222 = vmul.f32 %v221, %v180
    %v223 = vmul.f32 %v222, %v221
    %v224 = vmul.f32 0.5, %v223
    %v225 = vsub.f32 1.5, %v224
    %v226 = vmul.f32 %v221, %v225
    %vm227 = vweird.f32 %v180
    %vm228 = vweird.f32 %v221
    %vm229 = vmor %vm227, %vm228
    %v230 = vsel %vm229, %v221, %v226
    %v231 = vmul.f32 %v146, %v190
    %v232 = vmul.f32 %v147, %v200
    %v233 = vmul.f32 %v148, %v210
    %v234 = vmul.f32 %v149, %v220
    %v235 = vmul.f32 %v150, %v230
    %v236 = vperm.slane %v116, 0
    %v237 = vmul.f32 %v231, %v236
    %v238 = vmul.f32 %v232, %v236
    %v239 = vmul.f32 %v233, %v236
    %v240 = vmul.f32 %v234, %v236
    %v241 = vmul.f32 %v235, %v236
    %v242 = vperm.slane %v116, 1
    %v243 = vadd.f32 %v237, %v242
    %v244 = vadd.f32 %v238, %v242
    %v245 = vadd.f32 %v239, %v242
    %v246 = vadd.f32 %v240, %v242
    %v247 = vadd.f32 %v241, %v242
    %v248 = vld [vmem:[%s3] sm:$0xff]
    %v249 = vld [vmem:[%s3 + $0x8] sm:$0xff]
    %v250 = vld [vmem:[%s3 + $0x10] sm:$0xff]
    %v251 = vld [vmem:[%s3 + $0x18] sm:$0xff]
    %v253 = vsel %vm117, %v243, 0
    %v256 = vsel %vm117, %v244, 0
    %v259 = vsel %vm117, %v245, 0
    %v262 = vsel %vm117, %v246, 0
    %v265 = vsel %vm117, %v247, 0
    %267 = vmatpush.msra.mxu0 0.0
    %268 = vmatpush.msra.mxu0 0.0
    %269 = vmatpush.msra.mxu0 0.0
    %270 = vmatpush.msra.mxu0 0.0
    %271 = vmatpush.msra.mxu0 0.0
    %272 = vmatpush.msra.mxu0 0.0
    %273 = vmatpush.msra.mxu0 0.0
    %274 = vmatpush.msra.mxu0 0.0
    %275 = vmatpush.msra.mxu0 0.0
    %276 = vmatpush.msra.mxu0 0.0
    %277 = vmatpush.msra.mxu0 0.0
    %278 = vmatpush.msra.mxu0 0.0
    %279 = vmatpush.msra.mxu0 %v251
    %280 = vmatpush.msra.mxu0 %v250
    %281 = vmatpush.msra.mxu0 %v249
    %282 = vmatpush.msra.mxu0 %v248
    %283 = vmatmul.f32.gmra.mxu0 %v253
    %v284 = vpop.f32.mrf.mxu0
    %v285 = vadd.f32 0.0, %v284
    %286 = vmatmul.f32.gmra.mxu0 %v256
    %v287 = vpop.f32.mrf.mxu0
    %v288 = vadd.f32 0.0, %v287
    %289 = vmatmul.f32.gmra.mxu0 %v259
    %v290 = vpop.f32.mrf.mxu0
    %v291 = vadd.f32 0.0, %v290
    %292 = vmatmul.f32.gmra.mxu0 %v262
    %v293 = vpop.f32.mrf.mxu0
    %v294 = vadd.f32 0.0, %v293
    %295 = vmatmul.f32.gmra.mxu0 %v265
    %v296 = vpop.f32.mrf.mxu0
    %v297 = vadd.f32 0.0, %v296
    %298 = vdwg.mxu0
    %302 = vrot.lane.b32.xlu0 %v285, 96
    %v303 = vpop.permute.xlu0 %302
    %304 = vrot.lane.b32.xlu0 %v288, 96
    %v305 = vpop.permute.xlu0 %304
    %306 = vrot.lane.b32.xlu0 %v291, 96
    %v307 = vpop.permute.xlu0 %306
    %vm308 = vcmask 64512
    %v309 = vsel %vm308, %v285, 0
    %v311 = vsel %vm308, %v288, 0
    %v313 = vsel %vm308, %v291, 0
    %v315 = vsel %vm308, %v303, 0
    %v317 = vsel %vm308, %v305, 0
    %v319 = vsel %vm308, %v307, 0
    %321 = vmatpush.xpose.msra.mxu0 0.0
    %322 = vmatpush.xpose.msra.mxu0 0.0
    %323 = vmatpush.xpose.msra.mxu0 0.0
    %324 = vmatpush.xpose.msra.mxu0 0.0
    %325 = vmatpush.xpose.msra.mxu0 0.0
    %326 = vmatpush.xpose.msra.mxu0 0.0
    %327 = vmatpush.xpose.msra.mxu0 0.0
    %328 = vmatpush.xpose.msra.mxu0 0.0
    %329 = vmatpush.xpose.msra.mxu0 0.0
    %330 = vmatpush.xpose.msra.mxu0 0.0
    %331 = vmatpush.xpose.msra.mxu0 0.0
    %332 = vmatpush.xpose.msra.mxu0 0.0
    %333 = vmatpush.xpose.msra.mxu0 0.0
    %334 = vmatpush.xpose.msra.mxu0 %v319
    %335 = vmatpush.xpose.msra.mxu0 %v317
    %336 = vmatpush.xpose.msra.mxu0 %v315
    %337 = vmatmul.f32.gmra.mxu0 %v309
    %v338 = vpop.f32.mrf.mxu0
    %v339 = vadd.f32 0.0, %v338
    %340 = vmatmul.f32.gmra.mxu0 %v311
    %v341 = vpop.f32.mrf.mxu0
    %v342 = vadd.f32 0.0, %v341
    %343 = vmatmul.f32.gmra.mxu0 %v313
    %v344 = vpop.f32.mrf.mxu0
    %v345 = vadd.f32 0.0, %v344
    %346 = vdwg.mxu0
    %v347 = vmul.f32 %v339, 0.35355338
    %v348 = vmul.f32 %v342, 0.35355338
    %v349 = vmul.f32 %v345, 0.35355338
    %vm350 = vcmask 138240
    %v351 = vsel %vm350, %v347, -inf
    %352 = vmax.xlane.f32.xlu0 %v351
    %v353 = vpop.xlane.xlu0 %352
    %v354 = vsel %vm350, %v348, -inf
    %355 = vmax.xlane.f32.xlu0 %v354
    %v356 = vpop.xlane.xlu0 %355
    %vm357 = vcmask 131072
    %v358 = vsel %vm357, %v349, -inf
    %359 = vmax.xlane.f32.xlu0 %v358
    %v360 = vpop.xlane.xlu0 %359
    %v361 = vsub.f32 %v347, %v353
    %v362 = vsub.f32 %v348, %v356
    %v363 = vsub.f32 %v349, %v360
    %v364 = vmul.f32 %v361, 1.442695
    %v365 = vpow.pop %v364
    %v366 = vmul.f32 %v362, 1.442695
    %v367 = vpow.pop %v366
    %v368 = vmul.f32 %v363, 1.442695
    %v369 = vpow.pop %v368
    %v370 = vsel %vm350, %v365, 0.0
    %371 = vadd.xlane.f32.xlu0 %v370
    %v372 = vpop.xlane.xlu0 %371
    %v373 = vsel %vm350, %v367, 0.0
    %374 = vadd.xlane.f32.xlu0 %v373
    %v375 = vpop.xlane.xlu0 %374
    %v376 = vsel %vm357, %v369, 0.0
    %377 = vadd.xlane.f32.xlu0 %v376
    %v378 = vpop.xlane.xlu0 %377
    %v379 = vrcp.pop %v372
    %v380 = vrcp.pop %v375
    %v381 = vrcp.pop %v378
    %v382 = vmul.f32 %v365, %v379
    %v383 = vmul.f32 %v367, %v380
    %v384 = vmul.f32 %v369, %v381
    %385 = vrot.lane.b32.xlu0 %v285, 64
    %v386 = vpop.permute.xlu0 %385
    %387 = vrot.lane.b32.xlu0 %v288, 64
    %v388 = vpop.permute.xlu0 %387
    %389 = vrot.lane.b32.xlu0 %v291, 64
    %v390 = vpop.permute.xlu0 %389
    %v394 = vsel %vm350, %v382, 0
    %v397 = vsel %vm350, %v383, 0
    %v400 = vsel %vm350, %v384, 0
    %v402 = vsel %vm94, %v390, 0
    %404 = vmatpush.msra.mxu0 0.0
    %405 = vmatpush.msra.mxu0 0.0
    %406 = vmatpush.msra.mxu0 0.0
    %407 = vmatpush.msra.mxu0 0.0
    %408 = vmatpush.msra.mxu0 0.0
    %409 = vmatpush.msra.mxu0 0.0
    %410 = vmatpush.msra.mxu0 0.0
    %411 = vmatpush.msra.mxu0 0.0
    %412 = vmatpush.msra.mxu0 0.0
    %413 = vmatpush.msra.mxu0 0.0
    %414 = vmatpush.msra.mxu0 0.0
    %415 = vmatpush.msra.mxu0 0.0
    %416 = vmatpush.msra.mxu0 0.0
    %417 = vmatpush.msra.mxu0 %v402
    %418 = vmatpush.msra.mxu0 %v388
    %419 = vmatpush.msra.mxu0 %v386
    %420 = vmatmul.f32.gmra.mxu0 %v394
    %v421 = vpop.f32.mrf.mxu0
    %v422 = vadd.f32 0.0, %v421
    %423 = vmatmul.f32.gmra.mxu0 %v397
    %v424 = vpop.f32.mrf.mxu0
    %v425 = vadd.f32 0.0, %v424
    %426 = vmatmul.f32.gmra.mxu0 %v400
    %v427 = vpop.f32.mrf.mxu0
    %v428 = vadd.f32 0.0, %v427
    %429 = vdwg.mxu0
    %430 = vrot.lane.b32.xlu0 %v285, 120
    %v431 = vpop.permute.xlu0 %430
    %432 = vrot.lane.b32.xlu0 %v288, 120
    %v433 = vpop.permute.xlu0 %432
    %434 = vrot.lane.b32.xlu0 %v291, 120
    %v435 = vpop.permute.xlu0 %434
    %436 = vrot.lane.b32.xlu0 %v285, 88
    %v437 = vpop.permute.xlu0 %436
    %438 = vrot.lane.b32.xlu0 %v288, 88
    %v439 = vpop.permute.xlu0 %438
    %440 = vrot.lane.b32.xlu0 %v291, 88
    %v441 = vpop.permute.xlu0 %440
    %v442 = vsel %vm308, %v431, 0
    %v444 = vsel %vm308, %v433, 0
    %v446 = vsel %vm308, %v435, 0
    %v448 = vsel %vm308, %v437, 0
    %v450 = vsel %vm308, %v439, 0
    %v452 = vsel %vm308, %v441, 0
    %454 = vmatpush.xpose.msra.mxu0 0.0
    %455 = vmatpush.xpose.msra.mxu0 0.0
    %456 = vmatpush.xpose.msra.mxu0 0.0
    %457 = vmatpush.xpose.msra.mxu0 0.0
    %458 = vmatpush.xpose.msra.mxu0 0.0
    %459 = vmatpush.xpose.msra.mxu0 0.0
    %460 = vmatpush.xpose.msra.mxu0 0.0
    %461 = vmatpush.xpose.msra.mxu0 0.0
    %462 = vmatpush.xpose.msra.mxu0 0.0
    %463 = vmatpush.xpose.msra.mxu0 0.0
    %464 = vmatpush.xpose.msra.mxu0 0.0
    %465 = vmatpush.xpose.msra.mxu0 0.0
    %466 = vmatpush.xpose.msra.mxu0 0.0
    %467 = vmatpush.xpose.msra.mxu0 %v452
    %468 = vmatpush.xpose.msra.mxu0 %v450
    %469 = vmatpush.xpose.msra.mxu0 %v448
    %470 = vmatmul.f32.gmra.mxu0 %v442
    %v471 = vpop.f32.mrf.mxu0
    %v472 = vadd.f32 0.0, %v471
    %473 = vmatmul.f32.gmra.mxu0 %v444
    %v474 = vpop.f32.mrf.mxu0
    %v475 = vadd.f32 0.0, %v474
    %476 = vmatmul.f32.gmra.mxu0 %v446
    %v477 = vpop.f32.mrf.mxu0
    %v478 = vadd.f32 0.0, %v477
    %479 = vdwg.mxu0
    %v480 = vmul.f32 %v472, 0.35355338
    %v481 = vmul.f32 %v475, 0.35355338
    %v482 = vmul.f32 %v478, 0.35355338
    %v483 = vsel %vm350, %v480, -inf
    %484 = vmax.xlane.f32.xlu0 %v483
    %v485 = vpop.xlane.xlu0 %484
    %v486 = vsel %vm350, %v481, -inf
    %487 = vmax.xlane.f32.xlu0 %v486
    %v488 = vpop.xlane.xlu0 %487
    %v489 = vsel %vm357, %v482, -inf
    %490 = vmax.xlane.f32.xlu0 %v489
    %v491 = vpop.xlane.xlu0 %490
    %v492 = vsub.f32 %v480, %v485
    %v493 = vsub.f32 %v481, %v488
    %v494 = vsub.f32 %v482, %v491
    %v495 = vmul.f32 %v492, 1.442695
    %v496 = vpow.pop %v495
    %v497 = vmul.f32 %v493, 1.442695
    %v498 = vpow.pop %v497
    %v499 = vmul.f32 %v494, 1.442695
    %v500 = vpow.pop %v499
    %v501 = vsel %vm350, %v496, 0.0
    %502 = vadd.xlane.f32.xlu0 %v501
    %v503 = vpop.xlane.xlu0 %502
    %v504 = vsel %vm350, %v498, 0.0
    %505 = vadd.xlane.f32.xlu0 %v504
    %v506 = vpop.xlane.xlu0 %505
    %v507 = vsel %vm357, %v500, 0.0
    %508 = vadd.xlane.f32.xlu0 %v507
    %v509 = vpop.xlane.xlu0 %508
    %v510 = vrcp.pop %v503
    %v511 = vrcp.pop %v506
    %v512 = vrcp.pop %v509
    %v513 = vmul.f32 %v496, %v510
    %v514 = vmul.f32 %v498, %v511
    %v515 = vmul.f32 %v500, %v512
    %516 = vrot.lane.b32.xlu0 %v285, 56
    %v517 = vpop.permute.xlu0 %516
    %518 = vrot.lane.b32.xlu0 %v288, 56
    %v519 = vpop.permute.xlu0 %518
    %520 = vrot.lane.b32.xlu0 %v291, 56
    %v521 = vpop.permute.xlu0 %520
    %v525 = vsel %vm350, %v513, 0
    %v528 = vsel %vm350, %v514, 0
    %v531 = vsel %vm350, %v515, 0
    %v533 = vsel %vm94, %v521, 0
    %535 = vmatpush.msra.mxu0 0.0
    %536 = vmatpush.msra.mxu0 0.0
    %537 = vmatpush.msra.mxu0 0.0
    %538 = vmatpush.msra.mxu0 0.0
    %539 = vmatpush.msra.mxu0 0.0
    %540 = vmatpush.msra.mxu0 0.0
    %541 = vmatpush.msra.mxu0 0.0
    %542 = vmatpush.msra.mxu0 0.0
    %543 = vmatpush.msra.mxu0 0.0
    %544 = vmatpush.msra.mxu0 0.0
    %545 = vmatpush.msra.mxu0 0.0
    %546 = vmatpush.msra.mxu0 0.0
    %547 = vmatpush.msra.mxu0 0.0
    %548 = vmatpush.msra.mxu0 %v533
    %549 = vmatpush.msra.mxu0 %v519
    %550 = vmatpush.msra.mxu0 %v517
    %551 = vmatmul.f32.gmra.mxu0 %v525
    %v552 = vpop.f32.mrf.mxu0
    %v553 = vadd.f32 0.0, %v552
    %554 = vmatmul.f32.gmra.mxu0 %v528
    %v555 = vpop.f32.mrf.mxu0
    %v556 = vadd.f32 0.0, %v555
    %557 = vmatmul.f32.gmra.mxu0 %v531
    %v558 = vpop.f32.mrf.mxu0
    %v559 = vadd.f32 0.0, %v558
    %560 = vdwg.mxu0
    %561 = vrot.lane.b32.xlu0 %v285, 112
    %v562 = vpop.permute.xlu0 %561
    %563 = vrot.lane.b32.xlu0 %v288, 112
    %v564 = vpop.permute.xlu0 %563
    %565 = vrot.lane.b32.xlu0 %v291, 112
    %v566 = vpop.permute.xlu0 %565
    %567 = vrot.lane.b32.xlu0 %v285, 80
    %v568 = vpop.permute.xlu0 %567
    %569 = vrot.lane.b32.xlu0 %v288, 80
    %v570 = vpop.permute.xlu0 %569
    %571 = vrot.lane.b32.xlu0 %v291, 80
    %v572 = vpop.permute.xlu0 %571
    %v573 = vsel %vm308, %v562, 0
    %v575 = vsel %vm308, %v564, 0
    %v577 = vsel %vm308, %v566, 0
    %v579 = vsel %vm308, %v568, 0
    %v581 = vsel %vm308, %v570, 0
    %v583 = vsel %vm308, %v572, 0
    %585 = vmatpush.xpose.msra.mxu0 0.0
    %586 = vmatpush.xpose.msra.mxu0 0.0
    %587 = vmatpush.xpose.msra.mxu0 0.0
    %588 = vmatpush.xpose.msra.mxu0 0.0
    %589 = vmatpush.xpose.msra.mxu0 0.0
    %590 = vmatpush.xpose.msra.mxu0 0.0
    %591 = vmatpush.xpose.msra.mxu0 0.0
    %592 = vmatpush.xpose.msra.mxu0 0.0
    %593 = vmatpush.xpose.msra.mxu0 0.0
    %594 = vmatpush.xpose.msra.mxu0 0.0
    %595 = vmatpush.xpose.msra.mxu0 0.0
    %596 = vmatpush.xpose.msra.mxu0 0.0
    %597 = vmatpush.xpose.msra.mxu0 0.0
    %598 = vmatpush.xpose.msra.mxu0 %v583
    %599 = vmatpush.xpose.msra.mxu0 %v581
    %600 = vmatpush.xpose.msra.mxu0 %v579
    %601 = vmatmul.f32.gmra.mxu0 %v573
    %v602 = vpop.f32.mrf.mxu0
    %v603 = vadd.f32 0.0, %v602
    %604 = vmatmul.f32.gmra.mxu0 %v575
    %v605 = vpop.f32.mrf.mxu0
    %v606 = vadd.f32 0.0, %v605
    %607 = vmatmul.f32.gmra.mxu0 %v577
    %v608 = vpop.f32.mrf.mxu0
    %v609 = vadd.f32 0.0, %v608
    %610 = vdwg.mxu0
    %v611 = vmul.f32 %v603, 0.35355338
    %v612 = vmul.f32 %v606, 0.35355338
    %v613 = vmul.f32 %v609, 0.35355338
    %v614 = vsel %vm350, %v611, -inf
    %615 = vmax.xlane.f32.xlu0 %v614
    %v616 = vpop.xlane.xlu0 %615
    %v617 = vsel %vm350, %v612, -inf
    %618 = vmax.xlane.f32.xlu0 %v617
    %v619 = vpop.xlane.xlu0 %618
    %v620 = vsel %vm357, %v613, -inf
    %621 = vmax.xlane.f32.xlu0 %v620
    %v622 = vpop.xlane.xlu0 %621
    %v623 = vsub.f32 %v611, %v616
    %v624 = vsub.f32 %v612, %v619
    %v625 = vsub.f32 %v613, %v622
    %v626 = vmul.f32 %v623, 1.442695
    %v627 = vpow.pop %v626
    %v628 = vmul.f32 %v624, 1.442695
    %v629 = vpow.pop %v628
    %v630 = vmul.f32 %v625, 1.442695
    %v631 = vpow.pop %v630
    %v632 = vsel %vm350, %v627, 0.0
    %633 = vadd.xlane.f32.xlu0 %v632
    %v634 = vpop.xlane.xlu0 %633
    %v635 = vsel %vm350, %v629, 0.0
    %636 = vadd.xlane.f32.xlu0 %v635
    %v637 = vpop.xlane.xlu0 %636
    %v638 = vsel %vm357, %v631, 0.0
    %639 = vadd.xlane.f32.xlu0 %v638
    %v640 = vpop.xlane.xlu0 %639
    %v641 = vrcp.pop %v634
    %v642 = vrcp.pop %v637
    %v643 = vrcp.pop %v640
    %v644 = vmul.f32 %v627, %v641
    %v645 = vmul.f32 %v629, %v642
    %v646 = vmul.f32 %v631, %v643
    %647 = vrot.lane.b32.xlu0 %v285, 48
    %v648 = vpop.permute.xlu0 %647
    %649 = vrot.lane.b32.xlu0 %v288, 48
    %v650 = vpop.permute.xlu0 %649
    %651 = vrot.lane.b32.xlu0 %v291, 48
    %v652 = vpop.permute.xlu0 %651
    %v656 = vsel %vm350, %v644, 0
    %v659 = vsel %vm350, %v645, 0
    %v662 = vsel %vm350, %v646, 0
    %v664 = vsel %vm94, %v652, 0
    %666 = vmatpush.msra.mxu0 0.0
    %667 = vmatpush.msra.mxu0 0.0
    %668 = vmatpush.msra.mxu0 0.0
    %669 = vmatpush.msra.mxu0 0.0
    %670 = vmatpush.msra.mxu0 0.0
    %671 = vmatpush.msra.mxu0 0.0
    %672 = vmatpush.msra.mxu0 0.0
    %673 = vmatpush.msra.mxu0 0.0
    %674 = vmatpush.msra.mxu0 0.0
    %675 = vmatpush.msra.mxu0 0.0
    %676 = vmatpush.msra.mxu0 0.0
    %677 = vmatpush.msra.mxu0 0.0
    %678 = vmatpush.msra.mxu0 0.0
    %679 = vmatpush.msra.mxu0 %v664
    %680 = vmatpush.msra.mxu0 %v650
    %681 = vmatpush.msra.mxu0 %v648
    %682 = vmatmul.f32.gmra.mxu0 %v656
    %v683 = vpop.f32.mrf.mxu0
    %v684 = vadd.f32 0.0, %v683
    %685 = vmatmul.f32.gmra.mxu0 %v659
    %v686 = vpop.f32.mrf.mxu0
    %v687 = vadd.f32 0.0, %v686
    %688 = vmatmul.f32.gmra.mxu0 %v662
    %v689 = vpop.f32.mrf.mxu0
    %v690 = vadd.f32 0.0, %v689
    %691 = vdwg.mxu0
    %692 = vrot.lane.b32.xlu0 %v285, 104
    %v693 = vpop.permute.xlu0 %692
    %694 = vrot.lane.b32.xlu0 %v288, 104
    %v695 = vpop.permute.xlu0 %694
    %696 = vrot.lane.b32.xlu0 %v291, 104
    %v697 = vpop.permute.xlu0 %696
    %698 = vrot.lane.b32.xlu0 %v285, 72
    %v699 = vpop.permute.xlu0 %698
    %700 = vrot.lane.b32.xlu0 %v288, 72
    %v701 = vpop.permute.xlu0 %700
    %702 = vrot.lane.b32.xlu0 %v291, 72
    %v703 = vpop.permute.xlu0 %702
    %v704 = vsel %vm308, %v693, 0
    %v706 = vsel %vm308, %v695, 0
    %v708 = vsel %vm308, %v697, 0
    %v710 = vsel %vm308, %v699, 0
    %v712 = vsel %vm308, %v701, 0
    %v714 = vsel %vm308, %v703, 0
    %716 = vmatpush.xpose.msra.mxu0 0.0
    %717 = vmatpush.xpose.msra.mxu0 0.0
    %718 = vmatpush.xpose.msra.mxu0 0.0
    %719 = vmatpush.xpose.msra.mxu0 0.0
    %720 = vmatpush.xpose.msra.mxu0 0.0
    %721 = vmatpush.xpose.msra.mxu0 0.0
    %722 = vmatpush.xpose.msra.mxu0 0.0
    %723 = vmatpush.xpose.msra.mxu0 0.0
    %724 = vmatpush.xpose.msra.mxu0 0.0
    %725 = vmatpush.xpose.msra.mxu0 0.0
    %726 = vmatpush.xpose.msra.mxu0 0.0
    %727 = vmatpush.xpose.msra.mxu0 0.0
    %728 = vmatpush.xpose.msra.mxu0 0.0
    %729 = vmatpush.xpose.msra.mxu0 %v714
    %730 = vmatpush.xpose.msra.mxu0 %v712
    %731 = vmatpush.xpose.msra.mxu0 %v710
    %732 = vmatmul.f32.gmra.mxu0 %v704
    %v733 = vpop.f32.mrf.mxu0
    %v734 = vadd.f32 0.0, %v733
    %735 = vmatmul.f32.gmra.mxu0 %v706
    %v736 = vpop.f32.mrf.mxu0
    %v737 = vadd.f32 0.0, %v736
    %738 = vmatmul.f32.gmra.mxu0 %v708
    %v739 = vpop.f32.mrf.mxu0
    %v740 = vadd.f32 0.0, %v739
    %741 = vdwg.mxu0
    %v742 = vmul.f32 %v734, 0.35355338
    %v743 = vmul.f32 %v737, 0.35355338
    %v744 = vmul.f32 %v740, 0.35355338
    %v745 = vsel %vm350, %v742, -inf
    %746 = vmax.xlane.f32.xlu0 %v745
    %v747 = vpop.xlane.xlu0 %746
    %v748 = vsel %vm350, %v743, -inf
    %749 = vmax.xlane.f32.xlu0 %v748
    %v750 = vpop.xlane.xlu0 %749
    %v751 = vsel %vm357, %v744, -inf
    %752 = vmax.xlane.f32.xlu0 %v751
    %v753 = vpop.xlane.xlu0 %752
    %v754 = vsub.f32 %v742, %v747
    %v755 = vsub.f32 %v743, %v750
    %v756 = vsub.f32 %v744, %v753
    %v757 = vmul.f32 %v754, 1.442695
    %v758 = vpow.pop %v757
    %v759 = vmul.f32 %v755, 1.442695
    %v760 = vpow.pop %v759
    %v761 = vmul.f32 %v756, 1.442695
    %v762 = vpow.pop %v761
    %v763 = vsel %vm350, %v758, 0.0
    %764 = vadd.xlane.f32.xlu0 %v763
    %v765 = vpop.xlane.xlu0 %764
    %v766 = vsel %vm350, %v760, 0.0
    %767 = vadd.xlane.f32.xlu0 %v766
    %v768 = vpop.xlane.xlu0 %767
    %v769 = vsel %vm357, %v762, 0.0
    %770 = vadd.xlane.f32.xlu0 %v769
    %v771 = vpop.xlane.xlu0 %770
    %v772 = vrcp.pop %v765
    %v773 = vrcp.pop %v768
    %v774 = vrcp.pop %v771
    %v775 = vmul.f32 %v758, %v772
    %v776 = vmul.f32 %v760, %v773
    %v777 = vmul.f32 %v762, %v774
    %778 = vrot.lane.b32.xlu0 %v285, 40
    %v779 = vpop.permute.xlu0 %778
    %780 = vrot.lane.b32.xlu0 %v288, 40
    %v781 = vpop.permute.xlu0 %780
    %782 = vrot.lane.b32.xlu0 %v291, 40
    %v783 = vpop.permute.xlu0 %782
    %v787 = vsel %vm350, %v775, 0
    %v790 = vsel %vm350, %v776, 0
    %v793 = vsel %vm350, %v777, 0
    %v795 = vsel %vm94, %v783, 0
    %797 = vmatpush.msra.mxu0 0.0
    %798 = vmatpush.msra.mxu0 0.0
    %799 = vmatpush.msra.mxu0 0.0
    %800 = vmatpush.msra.mxu0 0.0
    %801 = vmatpush.msra.mxu0 0.0
    %802 = vmatpush.msra.mxu0 0.0
    %803 = vmatpush.msra.mxu0 0.0
    %804 = vmatpush.msra.mxu0 0.0
    %805 = vmatpush.msra.mxu0 0.0
    %806 = vmatpush.msra.mxu0 0.0
    %807 = vmatpush.msra.mxu0 0.0
    %808 = vmatpush.msra.mxu0 0.0
    %809 = vmatpush.msra.mxu0 0.0
    %810 = vmatpush.msra.mxu0 %v795
    %811 = vmatpush.msra.mxu0 %v781
    %812 = vmatpush.msra.mxu0 %v779
    %813 = vmatmul.f32.gmra.mxu0 %v787
    %v814 = vpop.f32.mrf.mxu0
    %v815 = vadd.f32 0.0, %v814
    %816 = vmatmul.f32.gmra.mxu0 %v790
    %v817 = vpop.f32.mrf.mxu0
    %v818 = vadd.f32 0.0, %v817
    %819 = vmatmul.f32.gmra.mxu0 %v793
    %v820 = vpop.f32.mrf.mxu0
    %v821 = vadd.f32 0.0, %v820
    %822 = vdwg.mxu0
    %826 = vrot.lane.b32.xlu0 %v553, 8
    %v827 = vpop.permute.xlu0 %826
    %828 = vrot.lane.b32.xlu0 %v556, 8
    %v829 = vpop.permute.xlu0 %828
    %830 = vrot.lane.b32.xlu0 %v559, 8
    %v831 = vpop.permute.xlu0 %830
    %838 = vrot.lane.b32.xlu0 %v684, 16
    %v839 = vpop.permute.xlu0 %838
    %840 = vrot.lane.b32.xlu0 %v687, 16
    %v841 = vpop.permute.xlu0 %840
    %842 = vrot.lane.b32.xlu0 %v690, 16
    %v843 = vpop.permute.xlu0 %842
    %850 = vrot.lane.b32.xlu0 %v815, 24
    %v851 = vpop.permute.xlu0 %850
    %852 = vrot.lane.b32.xlu0 %v818, 24
    %v853 = vpop.permute.xlu0 %852
    %854 = vrot.lane.b32.xlu0 %v821, 24
    %v855 = vpop.permute.xlu0 %854
    %v859 = vsel %vm308, %v422, %v827
    %v860 = vsel %vm308, %v425, %v829
    %v861 = vsel %vm308, %v428, %v831
    %v862 = vsel %vm41, %v859, %v839
    %v863 = vsel %vm41, %v860, %v841
    %v864 = vsel %vm41, %v861, %v843
    %vm865 = vcmask 195584
    %v866 = vsel %vm865, %v862, %v851
    %v867 = vsel %vm865, %v863, %v853
    %v868 = vsel %vm865, %v864, %v855
    %vm871 = vcmask 1046528
    %v872 = vrot.slane %v291, 1
    %v873 = vrot.slane %v294, 1
    %v874 = vsel %vm871, %v872, %v873
    %v875 = vrot.slane %v297, 1
    %v876 = vsel %vm871, %v873, %v875
    %877 = vrot.lane.b32.xlu0 %v874, 96
    %v878 = vpop.permute.xlu0 %877
    %879 = vrot.lane.b32.xlu0 %v876, 96
    %v880 = vpop.permute.xlu0 %879
    %881 = vrot.lane.b32.xlu0 %v875, 96
    %v882 = vpop.permute.xlu0 %881
    %v883 = vsel %vm308, %v874, 0
    %v885 = vsel %vm308, %v876, 0
    %v887 = vsel %vm308, %v875, 0
    %v889 = vsel %vm308, %v878, 0
    %v891 = vsel %vm308, %v880, 0
    %v893 = vsel %vm308, %v882, 0
    %895 = vmatpush.xpose.msra.mxu0 0.0
    %896 = vmatpush.xpose.msra.mxu0 0.0
    %897 = vmatpush.xpose.msra.mxu0 0.0
    %898 = vmatpush.xpose.msra.mxu0 0.0
    %899 = vmatpush.xpose.msra.mxu0 0.0
    %900 = vmatpush.xpose.msra.mxu0 0.0
    %901 = vmatpush.xpose.msra.mxu0 0.0
    %902 = vmatpush.xpose.msra.mxu0 0.0
    %903 = vmatpush.xpose.msra.mxu0 0.0
    %904 = vmatpush.xpose.msra.mxu0 0.0
    %905 = vmatpush.xpose.msra.mxu0 0.0
    %906 = vmatpush.xpose.msra.mxu0 0.0
    %907 = vmatpush.xpose.msra.mxu0 0.0
    %908 = vmatpush.xpose.msra.mxu0 %v893
    %909 = vmatpush.xpose.msra.mxu0 %v891
    %910 = vmatpush.xpose.msra.mxu0 %v889
    %911 = vmatmul.f32.gmra.mxu0 %v883
    %v912 = vpop.f32.mrf.mxu0
    %v913 = vadd.f32 0.0, %v912
    %914 = vmatmul.f32.gmra.mxu0 %v885
    %v915 = vpop.f32.mrf.mxu0
    %v916 = vadd.f32 0.0, %v915
    %917 = vmatmul.f32.gmra.mxu0 %v887
    %v918 = vpop.f32.mrf.mxu0
    %v919 = vadd.f32 0.0, %v918
    %920 = vdwg.mxu0
    %v921 = vmul.f32 %v913, 0.35355338
    %v922 = vmul.f32 %v916, 0.35355338
    %v923 = vmul.f32 %v919, 0.35355338
    %v924 = vsel %vm350, %v921, -inf
    %925 = vmax.xlane.f32.xlu0 %v924
    %v926 = vpop.xlane.xlu0 %925
    %v927 = vsel %vm350, %v922, -inf
    %928 = vmax.xlane.f32.xlu0 %v927
    %v929 = vpop.xlane.xlu0 %928
    %v930 = vsel %vm357, %v923, -inf
    %931 = vmax.xlane.f32.xlu0 %v930
    %v932 = vpop.xlane.xlu0 %931
    %v933 = vsub.f32 %v921, %v926
    %v934 = vsub.f32 %v922, %v929
    %v935 = vsub.f32 %v923, %v932
    %v936 = vmul.f32 %v933, 1.442695
    %v937 = vpow.pop %v936
    %v938 = vmul.f32 %v934, 1.442695
    %v939 = vpow.pop %v938
    %v940 = vmul.f32 %v935, 1.442695
    %v941 = vpow.pop %v940
    %v942 = vsel %vm350, %v937, 0.0
    %943 = vadd.xlane.f32.xlu0 %v942
    %v944 = vpop.xlane.xlu0 %943
    %v945 = vsel %vm350, %v939, 0.0
    %946 = vadd.xlane.f32.xlu0 %v945
    %v947 = vpop.xlane.xlu0 %946
    %v948 = vsel %vm357, %v941, 0.0
    %949 = vadd.xlane.f32.xlu0 %v948
    %v950 = vpop.xlane.xlu0 %949
    %v951 = vrcp.pop %v944
    %v952 = vrcp.pop %v947
    %v953 = vrcp.pop %v950
    %v954 = vmul.f32 %v937, %v951
    %v955 = vmul.f32 %v939, %v952
    %v956 = vmul.f32 %v941, %v953
    %957 = vrot.lane.b32.xlu0 %v874, 64
    %v958 = vpop.permute.xlu0 %957
    %959 = vrot.lane.b32.xlu0 %v876, 64
    %v960 = vpop.permute.xlu0 %959
    %961 = vrot.lane.b32.xlu0 %v875, 64
    %v962 = vpop.permute.xlu0 %961
    %v966 = vsel %vm350, %v954, 0
    %v969 = vsel %vm350, %v955, 0
    %v972 = vsel %vm350, %v956, 0
    %v974 = vsel %vm94, %v962, 0
    %976 = vmatpush.msra.mxu0 0.0
    %977 = vmatpush.msra.mxu0 0.0
    %978 = vmatpush.msra.mxu0 0.0
    %979 = vmatpush.msra.mxu0 0.0
    %980 = vmatpush.msra.mxu0 0.0
    %981 = vmatpush.msra.mxu0 0.0
    %982 = vmatpush.msra.mxu0 0.0
    %983 = vmatpush.msra.mxu0 0.0
    %984 = vmatpush.msra.mxu0 0.0
    %985 = vmatpush.msra.mxu0 0.0
    %986 = vmatpush.msra.mxu0 0.0
    %987 = vmatpush.msra.mxu0 0.0
    %988 = vmatpush.msra.mxu0 0.0
    %989 = vmatpush.msra.mxu0 %v974
    %990 = vmatpush.msra.mxu0 %v960
    %991 = vmatpush.msra.mxu0 %v958
    %992 = vmatmul.f32.gmra.mxu0 %v966
    %v993 = vpop.f32.mrf.mxu0
    %v994 = vadd.f32 0.0, %v993
    %995 = vmatmul.f32.gmra.mxu0 %v969
    %v996 = vpop.f32.mrf.mxu0
    %v997 = vadd.f32 0.0, %v996
    %998 = vmatmul.f32.gmra.mxu0 %v972
    %v999 = vpop.f32.mrf.mxu0
    %v1000 = vadd.f32 0.0, %v999
    %1001 = vdwg.mxu0
    %1002 = vrot.lane.b32.xlu0 %v874, 120
    %v1003 = vpop.permute.xlu0 %1002
    %1004 = vrot.lane.b32.xlu0 %v876, 120
    %v1005 = vpop.permute.xlu0 %1004
    %1006 = vrot.lane.b32.xlu0 %v875, 120
    %v1007 = vpop.permute.xlu0 %1006
    %1008 = vrot.lane.b32.xlu0 %v874, 88
    %v1009 = vpop.permute.xlu0 %1008
    %1010 = vrot.lane.b32.xlu0 %v876, 88
    %v1011 = vpop.permute.xlu0 %1010
    %1012 = vrot.lane.b32.xlu0 %v875, 88
    %v1013 = vpop.permute.xlu0 %1012
    %v1014 = vsel %vm308, %v1003, 0
    %v1016 = vsel %vm308, %v1005, 0
    %v1018 = vsel %vm308, %v1007, 0
    %v1020 = vsel %vm308, %v1009, 0
    %v1022 = vsel %vm308, %v1011, 0
    %v1024 = vsel %vm308, %v1013, 0
    %1026 = vmatpush.xpose.msra.mxu0 0.0
    %1027 = vmatpush.xpose.msra.mxu0 0.0
    %1028 = vmatpush.xpose.msra.mxu0 0.0
    %1029 = vmatpush.xpose.msra.mxu0 0.0
    %1030 = vmatpush.xpose.msra.mxu0 0.0
    %1031 = vmatpush.xpose.msra.mxu0 0.0
    %1032 = vmatpush.xpose.msra.mxu0 0.0
    %1033 = vmatpush.xpose.msra.mxu0 0.0
    %1034 = vmatpush.xpose.msra.mxu0 0.0
    %1035 = vmatpush.xpose.msra.mxu0 0.0
    %1036 = vmatpush.xpose.msra.mxu0 0.0
    %1037 = vmatpush.xpose.msra.mxu0 0.0
    %1038 = vmatpush.xpose.msra.mxu0 0.0
    %1039 = vmatpush.xpose.msra.mxu0 %v1024
    %1040 = vmatpush.xpose.msra.mxu0 %v1022
    %1041 = vmatpush.xpose.msra.mxu0 %v1020
    %1042 = vmatmul.f32.gmra.mxu0 %v1014
    %v1043 = vpop.f32.mrf.mxu0
    %v1044 = vadd.f32 0.0, %v1043
    %1045 = vmatmul.f32.gmra.mxu0 %v1016
    %v1046 = vpop.f32.mrf.mxu0
    %v1047 = vadd.f32 0.0, %v1046
    %1048 = vmatmul.f32.gmra.mxu0 %v1018
    %v1049 = vpop.f32.mrf.mxu0
    %v1050 = vadd.f32 0.0, %v1049
    %1051 = vdwg.mxu0
    %v1052 = vmul.f32 %v1044, 0.35355338
    %v1053 = vmul.f32 %v1047, 0.35355338
    %v1054 = vmul.f32 %v1050, 0.35355338
    %v1055 = vsel %vm350, %v1052, -inf
    %1056 = vmax.xlane.f32.xlu0 %v1055
    %v1057 = vpop.xlane.xlu0 %1056
    %v1058 = vsel %vm350, %v1053, -inf
    %1059 = vmax.xlane.f32.xlu0 %v1058
    %v1060 = vpop.xlane.xlu0 %1059
    %v1061 = vsel %vm357, %v1054, -inf
    %1062 = vmax.xlane.f32.xlu0 %v1061
    %v1063 = vpop.xlane.xlu0 %1062
    %v1064 = vsub.f32 %v1052, %v1057
    %v1065 = vsub.f32 %v1053, %v1060
    %v1066 = vsub.f32 %v1054, %v1063
    %v1067 = vmul.f32 %v1064, 1.442695
    %v1068 = vpow.pop %v1067
    %v1069 = vmul.f32 %v1065, 1.442695
    %v1070 = vpow.pop %v1069
    %v1071 = vmul.f32 %v1066, 1.442695
    %v1072 = vpow.pop %v1071
    %v1073 = vsel %vm350, %v1068, 0.0
    %1074 = vadd.xlane.f32.xlu0 %v1073
    %v1075 = vpop.xlane.xlu0 %1074
    %v1076 = vsel %vm350, %v1070, 0.0
    %1077 = vadd.xlane.f32.xlu0 %v1076
    %v1078 = vpop.xlane.xlu0 %1077
    %v1079 = vsel %vm357, %v1072, 0.0
    %1080 = vadd.xlane.f32.xlu0 %v1079
    %v1081 = vpop.xlane.xlu0 %1080
    %v1082 = vrcp.pop %v1075
    %v1083 = vrcp.pop %v1078
    %v1084 = vrcp.pop %v1081
    %v1085 = vmul.f32 %v1068, %v1082
    %v1086 = vmul.f32 %v1070, %v1083
    %v1087 = vmul.f32 %v1072, %v1084
    %1088 = vrot.lane.b32.xlu0 %v874, 56
    %v1089 = vpop.permute.xlu0 %1088
    %1090 = vrot.lane.b32.xlu0 %v876, 56
    %v1091 = vpop.permute.xlu0 %1090
    %1092 = vrot.lane.b32.xlu0 %v875, 56
    %v1093 = vpop.permute.xlu0 %1092
    %v1097 = vsel %vm350, %v1085, 0
    %v1100 = vsel %vm350, %v1086, 0
    %v1103 = vsel %vm350, %v1087, 0
    %v1105 = vsel %vm94, %v1093, 0
    %1107 = vmatpush.msra.mxu0 0.0
    %1108 = vmatpush.msra.mxu0 0.0
    %1109 = vmatpush.msra.mxu0 0.0
    %1110 = vmatpush.msra.mxu0 0.0
    %1111 = vmatpush.msra.mxu0 0.0
    %1112 = vmatpush.msra.mxu0 0.0
    %1113 = vmatpush.msra.mxu0 0.0
    %1114 = vmatpush.msra.mxu0 0.0
    %1115 = vmatpush.msra.mxu0 0.0
    %1116 = vmatpush.msra.mxu0 0.0
    %1117 = vmatpush.msra.mxu0 0.0
    %1118 = vmatpush.msra.mxu0 0.0
    %1119 = vmatpush.msra.mxu0 0.0
    %1120 = vmatpush.msra.mxu0 %v1105
    %1121 = vmatpush.msra.mxu0 %v1091
    %1122 = vmatpush.msra.mxu0 %v1089
    %1123 = vmatmul.f32.gmra.mxu0 %v1097
    %v1124 = vpop.f32.mrf.mxu0
    %v1125 = vadd.f32 0.0, %v1124
    %1126 = vmatmul.f32.gmra.mxu0 %v1100
    %v1127 = vpop.f32.mrf.mxu0
    %v1128 = vadd.f32 0.0, %v1127
    %1129 = vmatmul.f32.gmra.mxu0 %v1103
    %v1130 = vpop.f32.mrf.mxu0
    %v1131 = vadd.f32 0.0, %v1130
    %1132 = vdwg.mxu0
    %1133 = vrot.lane.b32.xlu0 %v874, 112
    %v1134 = vpop.permute.xlu0 %1133
    %1135 = vrot.lane.b32.xlu0 %v876, 112
    %v1136 = vpop.permute.xlu0 %1135
    %1137 = vrot.lane.b32.xlu0 %v875, 112
    %v1138 = vpop.permute.xlu0 %1137
    %1139 = vrot.lane.b32.xlu0 %v874, 80
    %v1140 = vpop.permute.xlu0 %1139
    %1141 = vrot.lane.b32.xlu0 %v876, 80
    %v1142 = vpop.permute.xlu0 %1141
    %1143 = vrot.lane.b32.xlu0 %v875, 80
    %v1144 = vpop.permute.xlu0 %1143
    %v1145 = vsel %vm308, %v1134, 0
    %v1147 = vsel %vm308, %v1136, 0
    %v1149 = vsel %vm308, %v1138, 0
    %v1151 = vsel %vm308, %v1140, 0
    %v1153 = vsel %vm308, %v1142, 0
    %v1155 = vsel %vm308, %v1144, 0
    %1157 = vmatpush.xpose.msra.mxu0 0.0
    %1158 = vmatpush.xpose.msra.mxu0 0.0
    %1159 = vmatpush.xpose.msra.mxu0 0.0
    %1160 = vmatpush.xpose.msra.mxu0 0.0
    %1161 = vmatpush.xpose.msra.mxu0 0.0
    %1162 = vmatpush.xpose.msra.mxu0 0.0
    %1163 = vmatpush.xpose.msra.mxu0 0.0
    %1164 = vmatpush.xpose.msra.mxu0 0.0
    %1165 = vmatpush.xpose.msra.mxu0 0.0
    %1166 = vmatpush.xpose.msra.mxu0 0.0
    %1167 = vmatpush.xpose.msra.mxu0 0.0
    %1168 = vmatpush.xpose.msra.mxu0 0.0
    %1169 = vmatpush.xpose.msra.mxu0 0.0
    %1170 = vmatpush.xpose.msra.mxu0 %v1155
    %1171 = vmatpush.xpose.msra.mxu0 %v1153
    %1172 = vmatpush.xpose.msra.mxu0 %v1151
    %1173 = vmatmul.f32.gmra.mxu0 %v1145
    %v1174 = vpop.f32.mrf.mxu0
    %v1175 = vadd.f32 0.0, %v1174
    %1176 = vmatmul.f32.gmra.mxu0 %v1147
    %v1177 = vpop.f32.mrf.mxu0
    %v1178 = vadd.f32 0.0, %v1177
    %1179 = vmatmul.f32.gmra.mxu0 %v1149
    %v1180 = vpop.f32.mrf.mxu0
    %v1181 = vadd.f32 0.0, %v1180
    %1182 = vdwg.mxu0
    %v1183 = vmul.f32 %v1175, 0.35355338
    %v1184 = vmul.f32 %v1178, 0.35355338
    %v1185 = vmul.f32 %v1181, 0.35355338
    %v1186 = vsel %vm350, %v1183, -inf
    %1187 = vmax.xlane.f32.xlu0 %v1186
    %v1188 = vpop.xlane.xlu0 %1187
    %v1189 = vsel %vm350, %v1184, -inf
    %1190 = vmax.xlane.f32.xlu0 %v1189
    %v1191 = vpop.xlane.xlu0 %1190
    %v1192 = vsel %vm357, %v1185, -inf
    %1193 = vmax.xlane.f32.xlu0 %v1192
    %v1194 = vpop.xlane.xlu0 %1193
    %v1195 = vsub.f32 %v1183, %v1188
    %v1196 = vsub.f32 %v1184, %v1191
    %v1197 = vsub.f32 %v1185, %v1194
    %v1198 = vmul.f32 %v1195, 1.442695
    %v1199 = vpow.pop %v1198
    %v1200 = vmul.f32 %v1196, 1.442695
    %v1201 = vpow.pop %v1200
    %v1202 = vmul.f32 %v1197, 1.442695
    %v1203 = vpow.pop %v1202
    %v1204 = vsel %vm350, %v1199, 0.0
    %1205 = vadd.xlane.f32.xlu0 %v1204
    %v1206 = vpop.xlane.xlu0 %1205
    %v1207 = vsel %vm350, %v1201, 0.0
    %1208 = vadd.xlane.f32.xlu0 %v1207
    %v1209 = vpop.xlane.xlu0 %1208
    %v1210 = vsel %vm357, %v1203, 0.0
    %1211 = vadd.xlane.f32.xlu0 %v1210
    %v1212 = vpop.xlane.xlu0 %1211
    %v1213 = vrcp.pop %v1206
    %v1214 = vrcp.pop %v1209
    %v1215 = vrcp.pop %v1212
    %v1216 = vmul.f32 %v1199, %v1213
    %v1217 = vmul.f32 %v1201, %v1214
    %v1218 = vmul.f32 %v1203, %v1215
    %1219 = vrot.lane.b32.xlu0 %v874, 48
    %v1220 = vpop.permute.xlu0 %1219
    %1221 = vrot.lane.b32.xlu0 %v876, 48
    %v1222 = vpop.permute.xlu0 %1221
    %1223 = vrot.lane.b32.xlu0 %v875, 48
    %v1224 = vpop.permute.xlu0 %1223
    %v1228 = vsel %vm350, %v1216, 0
    %v1231 = vsel %vm350, %v1217, 0
    %v1234 = vsel %vm350, %v1218, 0
    %v1236 = vsel %vm94, %v1224, 0
    %1238 = vmatpush.msra.mxu0 0.0
    %1239 = vmatpush.msra.mxu0 0.0
    %1240 = vmatpush.msra.mxu0 0.0
    %1241 = vmatpush.msra.mxu0 0.0
    %1242 = vmatpush.msra.mxu0 0.0
    %1243 = vmatpush.msra.mxu0 0.0
    %1244 = vmatpush.msra.mxu0 0.0
    %1245 = vmatpush.msra.mxu0 0.0
    %1246 = vmatpush.msra.mxu0 0.0
    %1247 = vmatpush.msra.mxu0 0.0
    %1248 = vmatpush.msra.mxu0 0.0
    %1249 = vmatpush.msra.mxu0 0.0
    %1250 = vmatpush.msra.mxu0 0.0
    %1251 = vmatpush.msra.mxu0 %v1236
    %1252 = vmatpush.msra.mxu0 %v1222
    %1253 = vmatpush.msra.mxu0 %v1220
    %1254 = vmatmul.f32.gmra.mxu0 %v1228
    %v1255 = vpop.f32.mrf.mxu0
    %v1256 = vadd.f32 0.0, %v1255
    %1257 = vmatmul.f32.gmra.mxu0 %v1231
    %v1258 = vpop.f32.mrf.mxu0
    %v1259 = vadd.f32 0.0, %v1258
    %1260 = vmatmul.f32.gmra.mxu0 %v1234
    %v1261 = vpop.f32.mrf.mxu0
    %v1262 = vadd.f32 0.0, %v1261
    %1263 = vdwg.mxu0
    %1264 = vrot.lane.b32.xlu0 %v874, 104
    %v1265 = vpop.permute.xlu0 %1264
    %1266 = vrot.lane.b32.xlu0 %v876, 104
    %v1267 = vpop.permute.xlu0 %1266
    %1268 = vrot.lane.b32.xlu0 %v875, 104
    %v1269 = vpop.permute.xlu0 %1268
    %1270 = vrot.lane.b32.xlu0 %v874, 72
    %v1271 = vpop.permute.xlu0 %1270
    %1272 = vrot.lane.b32.xlu0 %v876, 72
    %v1273 = vpop.permute.xlu0 %1272
    %1274 = vrot.lane.b32.xlu0 %v875, 72
    %v1275 = vpop.permute.xlu0 %1274
    %v1276 = vsel %vm308, %v1265, 0
    %v1278 = vsel %vm308, %v1267, 0
    %v1280 = vsel %vm308, %v1269, 0
    %v1282 = vsel %vm308, %v1271, 0
    %v1284 = vsel %vm308, %v1273, 0
    %v1286 = vsel %vm308, %v1275, 0
    %1288 = vmatpush.xpose.msra.mxu0 0.0
    %1289 = vmatpush.xpose.msra.mxu0 0.0
    %1290 = vmatpush.xpose.msra.mxu0 0.0
    %1291 = vmatpush.xpose.msra.mxu0 0.0
    %1292 = vmatpush.xpose.msra.mxu0 0.0
    %1293 = vmatpush.xpose.msra.mxu0 0.0
    %1294 = vmatpush.xpose.msra.mxu0 0.0
    %1295 = vmatpush.xpose.msra.mxu0 0.0
    %1296 = vmatpush.xpose.msra.mxu0 0.0
    %1297 = vmatpush.xpose.msra.mxu0 0.0
    %1298 = vmatpush.xpose.msra.mxu0 0.0
    %1299 = vmatpush.xpose.msra.mxu0 0.0
    %1300 = vmatpush.xpose.msra.mxu0 0.0
    %1301 = vmatpush.xpose.msra.mxu0 %v1286
    %1302 = vmatpush.xpose.msra.mxu0 %v1284
    %1303 = vmatpush.xpose.msra.mxu0 %v1282
    %1304 = vmatmul.f32.gmra.mxu0 %v1276
    %v1305 = vpop.f32.mrf.mxu0
    %v1306 = vadd.f32 0.0, %v1305
    %1307 = vmatmul.f32.gmra.mxu0 %v1278
    %v1308 = vpop.f32.mrf.mxu0
    %v1309 = vadd.f32 0.0, %v1308
    %1310 = vmatmul.f32.gmra.mxu0 %v1280
    %v1311 = vpop.f32.mrf.mxu0
    %v1312 = vadd.f32 0.0, %v1311
    %1313 = vdwg.mxu0
    %v1314 = vmul.f32 %v1306, 0.35355338
    %v1315 = vmul.f32 %v1309, 0.35355338
    %v1316 = vmul.f32 %v1312, 0.35355338
    %v1317 = vsel %vm350, %v1314, -inf
    %1318 = vmax.xlane.f32.xlu0 %v1317
    %v1319 = vpop.xlane.xlu0 %1318
    %v1320 = vsel %vm350, %v1315, -inf
    %1321 = vmax.xlane.f32.xlu0 %v1320
    %v1322 = vpop.xlane.xlu0 %1321
    %v1323 = vsel %vm357, %v1316, -inf
    %1324 = vmax.xlane.f32.xlu0 %v1323
    %v1325 = vpop.xlane.xlu0 %1324
    %v1326 = vsub.f32 %v1314, %v1319
    %v1327 = vsub.f32 %v1315, %v1322
    %v1328 = vsub.f32 %v1316, %v1325
    %v1329 = vmul.f32 %v1326, 1.442695
    %v1330 = vpow.pop %v1329
    %v1331 = vmul.f32 %v1327, 1.442695
    %v1332 = vpow.pop %v1331
    %v1333 = vmul.f32 %v1328, 1.442695
    %v1334 = vpow.pop %v1333
    %v1335 = vsel %vm350, %v1330, 0.0
    %1336 = vadd.xlane.f32.xlu0 %v1335
    %v1337 = vpop.xlane.xlu0 %1336
    %v1338 = vsel %vm350, %v1332, 0.0
    %1339 = vadd.xlane.f32.xlu0 %v1338
    %v1340 = vpop.xlane.xlu0 %1339
    %v1341 = vsel %vm357, %v1334, 0.0
    %1342 = vadd.xlane.f32.xlu0 %v1341
    %v1343 = vpop.xlane.xlu0 %1342
    %v1344 = vrcp.pop %v1337
    %v1345 = vrcp.pop %v1340
    %v1346 = vrcp.pop %v1343
    %v1347 = vmul.f32 %v1330, %v1344
    %v1348 = vmul.f32 %v1332, %v1345
    %v1349 = vmul.f32 %v1334, %v1346
    %1350 = vrot.lane.b32.xlu0 %v874, 40
    %v1351 = vpop.permute.xlu0 %1350
    %1352 = vrot.lane.b32.xlu0 %v876, 40
    %v1353 = vpop.permute.xlu0 %1352
    %1354 = vrot.lane.b32.xlu0 %v875, 40
    %v1355 = vpop.permute.xlu0 %1354
    %v1359 = vsel %vm350, %v1347, 0
    %v1362 = vsel %vm350, %v1348, 0
    %v1365 = vsel %vm350, %v1349, 0
    %v1367 = vsel %vm94, %v1355, 0
    %1369 = vmatpush.msra.mxu0 0.0
    %1370 = vmatpush.msra.mxu0 0.0
    %1371 = vmatpush.msra.mxu0 0.0
    %1372 = vmatpush.msra.mxu0 0.0
    %1373 = vmatpush.msra.mxu0 0.0
    %1374 = vmatpush.msra.mxu0 0.0
    %1375 = vmatpush.msra.mxu0 0.0
    %1376 = vmatpush.msra.mxu0 0.0
    %1377 = vmatpush.msra.mxu0 0.0
    %1378 = vmatpush.msra.mxu0 0.0
    %1379 = vmatpush.msra.mxu0 0.0
    %1380 = vmatpush.msra.mxu0 0.0
    %1381 = vmatpush.msra.mxu0 0.0
    %1382 = vmatpush.msra.mxu0 %v1367
    %1383 = vmatpush.msra.mxu0 %v1353
    %1384 = vmatpush.msra.mxu0 %v1351
    %1385 = vmatmul.f32.gmra.mxu0 %v1359
    %v1386 = vpop.f32.mrf.mxu0
    %v1387 = vadd.f32 0.0, %v1386
    %1388 = vmatmul.f32.gmra.mxu0 %v1362
    %v1389 = vpop.f32.mrf.mxu0
    %v1390 = vadd.f32 0.0, %v1389
    %1391 = vmatmul.f32.gmra.mxu0 %v1365
    %v1392 = vpop.f32.mrf.mxu0
    %v1393 = vadd.f32 0.0, %v1392
    %1394 = vdwg.mxu0
    %1398 = vrot.lane.b32.xlu0 %v1125, 8
    %v1399 = vpop.permute.xlu0 %1398
    %1400 = vrot.lane.b32.xlu0 %v1128, 8
    %v1401 = vpop.permute.xlu0 %1400
    %1402 = vrot.lane.b32.xlu0 %v1131, 8
    %v1403 = vpop.permute.xlu0 %1402
    %1410 = vrot.lane.b32.xlu0 %v1256, 16
    %v1411 = vpop.permute.xlu0 %1410
    %1412 = vrot.lane.b32.xlu0 %v1259, 16
    %v1413 = vpop.permute.xlu0 %1412
    %1414 = vrot.lane.b32.xlu0 %v1262, 16
    %v1415 = vpop.permute.xlu0 %1414
    %1422 = vrot.lane.b32.xlu0 %v1387, 24
    %v1423 = vpop.permute.xlu0 %1422
    %1424 = vrot.lane.b32.xlu0 %v1390, 24
    %v1425 = vpop.permute.xlu0 %1424
    %1426 = vrot.lane.b32.xlu0 %v1393, 24
    %v1427 = vpop.permute.xlu0 %1426
    %v1431 = vsel %vm308, %v994, %v1399
    %v1432 = vsel %vm308, %v997, %v1401
    %v1433 = vsel %vm308, %v1000, %v1403
    %v1434 = vsel %vm41, %v1431, %v1411
    %v1435 = vsel %vm41, %v1432, %v1413
    %v1436 = vsel %vm41, %v1433, %v1415
    %v1437 = vsel %vm865, %v1434, %v1423
    %v1438 = vsel %vm865, %v1435, %v1425
    %v1439 = vsel %vm865, %v1436, %v1427
    %v1443 = vrot.slane %v1437, 7
    %v1444 = vrot.slane %v1438, 7
    %v1445 = vsel %vm94, %v1443, %v1444
    %v1446 = vrot.slane %v1439, 7
    %v1447 = vsel %vm94, %v1444, %v1446
    %v1449 = vsel %vm94, %v868, %v1443
    %v1450 = vld [vmem:[%s4] sm:$0xff]
    %v1451 = vld [vmem:[%s4 + $0x8] sm:$0xff]
    %v1452 = vld [vmem:[%s4 + $0x10] sm:$0xff]
    %v1453 = vld [vmem:[%s4 + $0x18] sm:$0xff]
    %v1455 = vsel %vm117, %v866, 0
    %v1458 = vsel %vm117, %v867, 0
    %v1461 = vsel %vm117, %v1449, 0
    %v1463 = vsel %vm117, %v1445, 0
    %v1465 = vsel %vm117, %v1447, 0
    %1467 = vmatpush.msra.mxu0 0.0
    %1468 = vmatpush.msra.mxu0 0.0
    %1469 = vmatpush.msra.mxu0 0.0
    %1470 = vmatpush.msra.mxu0 0.0
    %1471 = vmatpush.msra.mxu0 0.0
    %1472 = vmatpush.msra.mxu0 0.0
    %1473 = vmatpush.msra.mxu0 0.0
    %1474 = vmatpush.msra.mxu0 0.0
    %1475 = vmatpush.msra.mxu0 0.0
    %1476 = vmatpush.msra.mxu0 0.0
    %1477 = vmatpush.msra.mxu0 0.0
    %1478 = vmatpush.msra.mxu0 0.0
    %1479 = vmatpush.msra.mxu0 %v1453
    %1480 = vmatpush.msra.mxu0 %v1452
    %1481 = vmatpush.msra.mxu0 %v1451
    %1482 = vmatpush.msra.mxu0 %v1450
    %1483 = vmatmul.f32.gmra.mxu0 %v1455
    %v1484 = vpop.f32.mrf.mxu0
    %v1485 = vadd.f32 0.0, %v1484
    %1486 = vmatmul.f32.gmra.mxu0 %v1458
    %v1487 = vpop.f32.mrf.mxu0
    %v1488 = vadd.f32 0.0, %v1487
    %1489 = vmatmul.f32.gmra.mxu0 %v1461
    %v1490 = vpop.f32.mrf.mxu0
    %v1491 = vadd.f32 0.0, %v1490
    %1492 = vmatmul.f32.gmra.mxu0 %v1463
    %v1493 = vpop.f32.mrf.mxu0
    %v1494 = vadd.f32 0.0, %v1493
    %1495 = vmatmul.f32.gmra.mxu0 %v1465
    %v1496 = vpop.f32.mrf.mxu0
    %v1497 = vadd.f32 0.0, %v1496
    %1498 = vdwg.mxu0
    %v1499 = vadd.f32 %v113, %v1485
    %v1500 = vadd.f32 %v97, %v1488
    %v1501 = vadd.f32 %v115, %v1491
    %v1502 = vadd.f32 %v109, %v1494
    %v1503 = vadd.f32 %v108, %v1497
    %v1504 = vperm.slane %v116, 4
    %v1505 = vadd.f32 %v1499, %v1504
    %v1506 = vadd.f32 %v1500, %v1504
    %v1507 = vadd.f32 %v1501, %v1504
    %v1508 = vadd.f32 %v1502, %v1504
    %v1509 = vadd.f32 %v1503, %v1504
    %v1510 = vsel %vm117, %v1505, 0.0
    %1511 = vadd.xlane.f32.xlu0 %v1510
    %v1512 = vpop.xlane.xlu0 %1511
    %v1513 = vsel %vm117, %v1506, 0.0
    %1514 = vadd.xlane.f32.xlu0 %v1513
    %v1515 = vpop.xlane.xlu0 %1514
    %v1516 = vsel %vm117, %v1507, 0.0
    %1517 = vadd.xlane.f32.xlu0 %v1516
    %v1518 = vpop.xlane.xlu0 %1517
    %v1519 = vsel %vm117, %v1508, 0.0
    %1520 = vadd.xlane.f32.xlu0 %v1519
    %v1521 = vpop.xlane.xlu0 %1520
    %v1522 = vsel %vm130, %v1509, 0.0
    %1523 = vadd.xlane.f32.xlu0 %v1522
    %v1524 = vpop.xlane.xlu0 %1523
    %v1525 = vmul.f32 %v1512, %v140
    %v1526 = vmul.f32 %v1515, %v140
    %v1527 = vmul.f32 %v1518, %v140
    %v1528 = vmul.f32 %v1521, %v140
    %v1529 = vmul.f32 %v1524, %v140
    %v1530 = vsub.f32 %v1505, %v1525
    %v1531 = vsub.f32 %v1506, %v1526
    %v1532 = vsub.f32 %v1507, %v1527
    %v1533 = vsub.f32 %v1508, %v1528
    %v1534 = vsub.f32 %v1509, %v1529
    %v1535 = vmul.f32 %v1530, %v1530
    %v1536 = vmul.f32 %v1531, %v1531
    %v1537 = vmul.f32 %v1532, %v1532
    %v1538 = vmul.f32 %v1533, %v1533
    %v1539 = vmul.f32 %v1534, %v1534
    %v1540 = vsel %vm117, %v1535, 0.0
    %1541 = vadd.xlane.f32.xlu0 %v1540
    %v1542 = vpop.xlane.xlu0 %1541
    %v1543 = vsel %vm117, %v1536, 0.0
    %1544 = vadd.xlane.f32.xlu0 %v1543
    %v1545 = vpop.xlane.xlu0 %1544
    %v1546 = vsel %vm117, %v1537, 0.0
    %1547 = vadd.xlane.f32.xlu0 %v1546
    %v1548 = vpop.xlane.xlu0 %1547
    %v1549 = vsel %vm117, %v1538, 0.0
    %1550 = vadd.xlane.f32.xlu0 %v1549
    %v1551 = vpop.xlane.xlu0 %1550
    %v1552 = vsel %vm130, %v1539, 0.0
    %1553 = vadd.xlane.f32.xlu0 %v1552
    %v1554 = vpop.xlane.xlu0 %1553
    %v1555 = vmul.f32 %v1542, %v140
    %v1556 = vmul.f32 %v1545, %v140
    %v1557 = vmul.f32 %v1548, %v140
    %v1558 = vmul.f32 %v1551, %v140
    %v1559 = vmul.f32 %v1554, %v140
    %v1560 = vadd.f32 %v1555, 1e-05
    %v1561 = vadd.f32 %v1556, 1e-05
    %v1562 = vadd.f32 %v1557, 1e-05
    %v1563 = vadd.f32 %v1558, 1e-05
    %v1564 = vadd.f32 %v1559, 1e-05
    %v1565 = vrsqrt.pop %v1560
    %v1566 = vmul.f32 %v1565, %v1560
    %v1567 = vmul.f32 %v1566, %v1565
    %v1568 = vmul.f32 0.5, %v1567
    %v1569 = vsub.f32 1.5, %v1568
    %v1570 = vmul.f32 %v1565, %v1569
    %vm1571 = vweird.f32 %v1560
    %vm1572 = vweird.f32 %v1565
    %vm1573 = vmor %vm1571, %vm1572
    %v1574 = vsel %vm1573, %v1565, %v1570
    %v1575 = vrsqrt.pop %v1561
    %v1576 = vmul.f32 %v1575, %v1561
    %v1577 = vmul.f32 %v1576, %v1575
    %v1578 = vmul.f32 0.5, %v1577
    %v1579 = vsub.f32 1.5, %v1578
    %v1580 = vmul.f32 %v1575, %v1579
    %vm1581 = vweird.f32 %v1561
    %vm1582 = vweird.f32 %v1575
    %vm1583 = vmor %vm1581, %vm1582
    %v1584 = vsel %vm1583, %v1575, %v1580
    %v1585 = vrsqrt.pop %v1562
    %v1586 = vmul.f32 %v1585, %v1562
    %v1587 = vmul.f32 %v1586, %v1585
    %v1588 = vmul.f32 0.5, %v1587
    %v1589 = vsub.f32 1.5, %v1588
    %v1590 = vmul.f32 %v1585, %v1589
    %vm1591 = vweird.f32 %v1562
    %vm1592 = vweird.f32 %v1585
    %vm1593 = vmor %vm1591, %vm1592
    %v1594 = vsel %vm1593, %v1585, %v1590
    %v1595 = vrsqrt.pop %v1563
    %v1596 = vmul.f32 %v1595, %v1563
    %v1597 = vmul.f32 %v1596, %v1595
    %v1598 = vmul.f32 0.5, %v1597
    %v1599 = vsub.f32 1.5, %v1598
    %v1600 = vmul.f32 %v1595, %v1599
    %vm1601 = vweird.f32 %v1563
    %vm1602 = vweird.f32 %v1595
    %vm1603 = vmor %vm1601, %vm1602
    %v1604 = vsel %vm1603, %v1595, %v1600
    %v1605 = vrsqrt.pop %v1564
    %v1606 = vmul.f32 %v1605, %v1564
    %v1607 = vmul.f32 %v1606, %v1605
    %v1608 = vmul.f32 0.5, %v1607
    %v1609 = vsub.f32 1.5, %v1608
    %v1610 = vmul.f32 %v1605, %v1609
    %vm1611 = vweird.f32 %v1564
    %vm1612 = vweird.f32 %v1605
    %vm1613 = vmor %vm1611, %vm1612
    %v1614 = vsel %vm1613, %v1605, %v1610
    %v1615 = vmul.f32 %v1530, %v1574
    %v1616 = vmul.f32 %v1531, %v1584
    %v1617 = vmul.f32 %v1532, %v1594
    %v1618 = vmul.f32 %v1533, %v1604
    %v1619 = vmul.f32 %v1534, %v1614
    %v1620 = vperm.slane %v116, 2
    %v1621 = vmul.f32 %v1615, %v1620
    %v1622 = vmul.f32 %v1616, %v1620
    %v1623 = vmul.f32 %v1617, %v1620
    %v1624 = vmul.f32 %v1618, %v1620
    %v1625 = vmul.f32 %v1619, %v1620
    %v1626 = vperm.slane %v116, 3
    %v1627 = vadd.f32 %v1621, %v1626
    %v1628 = vadd.f32 %v1622, %v1626
    %v1629 = vadd.f32 %v1623, %v1626
    %v1630 = vadd.f32 %v1624, %v1626
    %v1631 = vadd.f32 %v1625, %v1626
    %v1632 = vld [vmem:[%s5] sm:$0xff]
    %v1633 = vld [vmem:[%s5 + $0x8] sm:$0xff]
    %v1634 = vld [vmem:[%s5 + $0x10] sm:$0xff]
    %v1635 = vld [vmem:[%s5 + $0x18] sm:$0xff]
    %v1636 = vperm.slane %v116, 6
    %v1638 = vsel %vm117, %v1627, 0
    %v1641 = vsel %vm117, %v1628, 0
    %v1644 = vsel %vm117, %v1629, 0
    %v1647 = vsel %vm117, %v1630, 0
    %v1650 = vsel %vm117, %v1631, 0
    %1652 = vmatpush.msra.mxu0 0.0
    %1653 = vmatpush.msra.mxu0 0.0
    %1654 = vmatpush.msra.mxu0 0.0
    %1655 = vmatpush.msra.mxu0 0.0
    %1656 = vmatpush.msra.mxu0 0.0
    %1657 = vmatpush.msra.mxu0 0.0
    %1658 = vmatpush.msra.mxu0 0.0
    %1659 = vmatpush.msra.mxu0 0.0
    %1660 = vmatpush.msra.mxu0 0.0
    %1661 = vmatpush.msra.mxu0 0.0
    %1662 = vmatpush.msra.mxu0 0.0
    %1663 = vmatpush.msra.mxu0 0.0
    %1664 = vmatpush.msra.mxu0 %v1635
    %1665 = vmatpush.msra.mxu0 %v1634
    %1666 = vmatpush.msra.mxu0 %v1633
    %1667 = vmatpush.msra.mxu0 %v1632
    %1668 = vmatmul.f32.gmra.mxu0 %v1638
    %v1669 = vpop.f32.mrf.mxu0
    %v1670 = vadd.f32 %v1636, %v1669
    %1671 = vmatmul.f32.gmra.mxu0 %v1641
    %v1672 = vpop.f32.mrf.mxu0
    %v1673 = vadd.f32 %v1636, %v1672
    %1674 = vmatmul.f32.gmra.mxu0 %v1644
    %v1675 = vpop.f32.mrf.mxu0
    %v1676 = vadd.f32 %v1636, %v1675
    %1677 = vmatmul.f32.gmra.mxu0 %v1647
    %v1678 = vpop.f32.mrf.mxu0
    %v1679 = vadd.f32 %v1636, %v1678
    %1680 = vmatmul.f32.gmra.mxu0 %v1650
    %v1681 = vpop.f32.mrf.mxu0
    %v1682 = vadd.f32 %v1636, %v1681
    %1683 = vdwg.mxu0
    %v1684 = vmul.f32 %v1670, 0.5
    %v1685 = vmul.f32 %v1673, 0.5
    %v1686 = vmul.f32 %v1676, 0.5
    %v1687 = vmul.f32 %v1679, 0.5
    %v1688 = vmul.f32 %v1682, 0.5
    %v1689 = vmul.f32 %v1670, 0.044715
    %v1690 = vmul.f32 %v1673, 0.044715
    %v1691 = vmul.f32 %v1676, 0.044715
    %v1692 = vmul.f32 %v1679, 0.044715
    %v1693 = vmul.f32 %v1682, 0.044715
    %v1694 = vmul.f32 %v1689, %v1670
    %v1695 = vmul.f32 %v1690, %v1673
    %v1696 = vmul.f32 %v1691, %v1676
    %v1697 = vmul.f32 %v1692, %v1679
    %v1698 = vmul.f32 %v1693, %v1682
    %v1699 = vmul.f32 %v1694, %v1670
    %v1700 = vmul.f32 %v1695, %v1673
    %v1701 = vmul.f32 %v1696, %v1676
    %v1702 = vmul.f32 %v1697, %v1679
    %v1703 = vmul.f32 %v1698, %v1682
    %v1704 = vadd.f32 %v1670, %v1699
    %v1705 = vadd.f32 %v1673, %v1700
    %v1706 = vadd.f32 %v1676, %v1701
    %v1707 = vadd.f32 %v1679, %v1702
    %v1708 = vadd.f32 %v1682, %v1703
    %v1709 = vmul.f32 %v1704, 0.7978846
    %v1710 = vmul.f32 %v1705, 0.7978846
    %v1711 = vmul.f32 %v1706, 0.7978846
    %v1712 = vmul.f32 %v1707, 0.7978846
    %v1713 = vmul.f32 %v1708, 0.7978846
    %v1714 = vtanh.pop %v1709
    %v1715 = vtanh.pop %v1710
    %v1716 = vtanh.pop %v1711
    %v1717 = vtanh.pop %v1712
    %v1718 = vtanh.pop %v1713
    %v1719 = vadd.f32 %v1714, 1.0
    %v1720 = vadd.f32 %v1715, 1.0
    %v1721 = vadd.f32 %v1716, 1.0
    %v1722 = vadd.f32 %v1717, 1.0
    %v1723 = vadd.f32 %v1718, 1.0
    %v1724 = vmul.f32 %v1684, %v1719
    %v1725 = vmul.f32 %v1685, %v1720
    %v1726 = vmul.f32 %v1686, %v1721
    %v1727 = vmul.f32 %v1687, %v1722
    %v1728 = vmul.f32 %v1688, %v1723
    %v1729 = vld [vmem:[%s6] sm:$0xff]
    %v1730 = vld [vmem:[%s6 + $0x8] sm:$0xff]
    %v1731 = vld [vmem:[%s6 + $0x10] sm:$0xff]
    %v1732 = vld [vmem:[%s6 + $0x18] sm:$0xff]
    %v1733 = vld [vmem:[%s6 + $0x20] sm:$0xff]
    %v1734 = vld [vmem:[%s6 + $0x28] sm:$0xff]
    %v1735 = vld [vmem:[%s6 + $0x30] sm:$0xff]
    %v1736 = vld [vmem:[%s6 + $0x38] sm:$0xff]
    %vm1737 = vcmask 523264
    %v1739 = vsel %vm1737, %v1724, 0
    %v1742 = vsel %vm1737, %v1725, 0
    %v1745 = vsel %vm1737, %v1726, 0
    %v1748 = vsel %vm1737, %v1727, 0
    %v1751 = vsel %vm1737, %v1728, 0
    %1753 = vmatpush.msra.mxu0 0.0
    %1754 = vmatpush.msra.mxu0 0.0
    %1755 = vmatpush.msra.mxu0 0.0
    %1756 = vmatpush.msra.mxu0 0.0
    %1757 = vmatpush.msra.mxu0 0.0
    %1758 = vmatpush.msra.mxu0 0.0
    %1759 = vmatpush.msra.mxu0 0.0
    %1760 = vmatpush.msra.mxu0 0.0
    %1761 = vmatpush.msra.mxu0 %v1736
    %1762 = vmatpush.msra.mxu0 %v1735
    %1763 = vmatpush.msra.mxu0 %v1734
    %1764 = vmatpush.msra.mxu0 %v1733
    %1765 = vmatpush.msra.mxu0 %v1732
    %1766 = vmatpush.msra.mxu0 %v1731
    %1767 = vmatpush.msra.mxu0 %v1730
    %1768 = vmatpush.msra.mxu0 %v1729
    %1769 = vmatmul.f32.gmra.mxu0 %v1739
    %v1770 = vpop.f32.mrf.mxu0
    %v1771 = vadd.f32 0.0, %v1770
    %1772 = vmatmul.f32.gmra.mxu0 %v1742
    %v1773 = vpop.f32.mrf.mxu0
    %v1774 = vadd.f32 0.0, %v1773
    %1775 = vmatmul.f32.gmra.mxu0 %v1745
    %v1776 = vpop.f32.mrf.mxu0
    %v1777 = vadd.f32 0.0, %v1776
    %1778 = vmatmul.f32.gmra.mxu0 %v1748
    %v1779 = vpop.f32.mrf.mxu0
    %v1780 = vadd.f32 0.0, %v1779
    %1781 = vmatmul.f32.gmra.mxu0 %v1751
    %v1782 = vpop.f32.mrf.mxu0
    %v1783 = vadd.f32 0.0, %v1782
    %1784 = vdwg.mxu0
    %v1785 = vadd.f32 %v1505, %v1771
    %v1786 = vadd.f32 %v1506, %v1774
    %v1787 = vadd.f32 %v1507, %v1777
    %v1788 = vadd.f32 %v1508, %v1780
    %v1789 = vadd.f32 %v1509, %v1783
    %v1790 = vperm.slane %v116, 5
    %v1791 = vadd.f32 %v1785, %v1790
    %v1792 = vadd.f32 %v1786, %v1790
    %v1793 = vadd.f32 %v1787, %v1790
    %v1794 = vadd.f32 %v1788, %v1790
    %v1795 = vadd.f32 %v1789, %v1790
    %s1796 = scalar_lea.vmem %s7, 8
    %v1797 = vld [vmem:[%s1796] sm:$0x7f]
    %v1798 = vsel %vm117, %v1791, 0.0
    %1799 = vadd.xlane.f32.xlu0 %v1798
    %v1800 = vpop.xlane.xlu0 %1799
    %v1801 = vsel %vm117, %v1792, 0.0
    %1802 = vadd.xlane.f32.xlu0 %v1801
    %v1803 = vpop.xlane.xlu0 %1802
    %v1804 = vsel %vm117, %v1793, 0.0
    %1805 = vadd.xlane.f32.xlu0 %v1804
    %v1806 = vpop.xlane.xlu0 %1805
    %v1807 = vsel %vm117, %v1794, 0.0
    %1808 = vadd.xlane.f32.xlu0 %v1807
    %v1809 = vpop.xlane.xlu0 %1808
    %v1810 = vsel %vm130, %v1795, 0.0
    %1811 = vadd.xlane.f32.xlu0 %v1810
    %v1812 = vpop.xlane.xlu0 %1811
    %v1813 = vmul.f32 %v1800, %v140
    %v1814 = vmul.f32 %v1803, %v140
    %v1815 = vmul.f32 %v1806, %v140
    %v1816 = vmul.f32 %v1809, %v140
    %v1817 = vmul.f32 %v1812, %v140
    %v1818 = vsub.f32 %v1791, %v1813
    %v1819 = vsub.f32 %v1792, %v1814
    %v1820 = vsub.f32 %v1793, %v1815
    %v1821 = vsub.f32 %v1794, %v1816
    %v1822 = vsub.f32 %v1795, %v1817
    %v1823 = vmul.f32 %v1818, %v1818
    %v1824 = vmul.f32 %v1819, %v1819
    %v1825 = vmul.f32 %v1820, %v1820
    %v1826 = vmul.f32 %v1821, %v1821
    %v1827 = vmul.f32 %v1822, %v1822
    %v1828 = vsel %vm117, %v1823, 0.0
    %1829 = vadd.xlane.f32.xlu0 %v1828
    %v1830 = vpop.xlane.xlu0 %1829
    %v1831 = vsel %vm117, %v1824, 0.0
    %1832 = vadd.xlane.f32.xlu0 %v1831
    %v1833 = vpop.xlane.xlu0 %1832
    %v1834 = vsel %vm117, %v1825, 0.0
    %1835 = vadd.xlane.f32.xlu0 %v1834
    %v1836 = vpop.xlane.xlu0 %1835
    %v1837 = vsel %vm117, %v1826, 0.0
    %1838 = vadd.xlane.f32.xlu0 %v1837
    %v1839 = vpop.xlane.xlu0 %1838
    %v1840 = vsel %vm130, %v1827, 0.0
    %1841 = vadd.xlane.f32.xlu0 %v1840
    %v1842 = vpop.xlane.xlu0 %1841
    %v1843 = vmul.f32 %v1830, %v140
    %v1844 = vmul.f32 %v1833, %v140
    %v1845 = vmul.f32 %v1836, %v140
    %v1846 = vmul.f32 %v1839, %v140
    %v1847 = vmul.f32 %v1842, %v140
    %v1848 = vadd.f32 %v1843, 1e-05
    %v1849 = vadd.f32 %v1844, 1e-05
    %v1850 = vadd.f32 %v1845, 1e-05
    %v1851 = vadd.f32 %v1846, 1e-05
    %v1852 = vadd.f32 %v1847, 1e-05
    %v1853 = vrsqrt.pop %v1848
    %v1854 = vmul.f32 %v1853, %v1848
    %v1855 = vmul.f32 %v1854, %v1853
    %v1856 = vmul.f32 0.5, %v1855
    %v1857 = vsub.f32 1.5, %v1856
    %v1858 = vmul.f32 %v1853, %v1857
    %vm1859 = vweird.f32 %v1848
    %vm1860 = vweird.f32 %v1853
    %vm1861 = vmor %vm1859, %vm1860
    %v1862 = vsel %vm1861, %v1853, %v1858
    %v1863 = vrsqrt.pop %v1849
    %v1864 = vmul.f32 %v1863, %v1849
    %v1865 = vmul.f32 %v1864, %v1863
    %v1866 = vmul.f32 0.5, %v1865
    %v1867 = vsub.f32 1.5, %v1866
    %v1868 = vmul.f32 %v1863, %v1867
    %vm1869 = vweird.f32 %v1849
    %vm1870 = vweird.f32 %v1863
    %vm1871 = vmor %vm1869, %vm1870
    %v1872 = vsel %vm1871, %v1863, %v1868
    %v1873 = vrsqrt.pop %v1850
    %v1874 = vmul.f32 %v1873, %v1850
    %v1875 = vmul.f32 %v1874, %v1873
    %v1876 = vmul.f32 0.5, %v1875
    %v1877 = vsub.f32 1.5, %v1876
    %v1878 = vmul.f32 %v1873, %v1877
    %vm1879 = vweird.f32 %v1850
    %vm1880 = vweird.f32 %v1873
    %vm1881 = vmor %vm1879, %vm1880
    %v1882 = vsel %vm1881, %v1873, %v1878
    %v1883 = vrsqrt.pop %v1851
    %v1884 = vmul.f32 %v1883, %v1851
    %v1885 = vmul.f32 %v1884, %v1883
    %v1886 = vmul.f32 0.5, %v1885
    %v1887 = vsub.f32 1.5, %v1886
    %v1888 = vmul.f32 %v1883, %v1887
    %vm1889 = vweird.f32 %v1851
    %vm1890 = vweird.f32 %v1883
    %vm1891 = vmor %vm1889, %vm1890
    %v1892 = vsel %vm1891, %v1883, %v1888
    %v1893 = vrsqrt.pop %v1852
    %v1894 = vmul.f32 %v1893, %v1852
    %v1895 = vmul.f32 %v1894, %v1893
    %v1896 = vmul.f32 0.5, %v1895
    %v1897 = vsub.f32 1.5, %v1896
    %v1898 = vmul.f32 %v1893, %v1897
    %vm1899 = vweird.f32 %v1852
    %vm1900 = vweird.f32 %v1893
    %vm1901 = vmor %vm1899, %vm1900
    %v1902 = vsel %vm1901, %v1893, %v1898
    %v1903 = vmul.f32 %v1818, %v1862
    %v1904 = vmul.f32 %v1819, %v1872
    %v1905 = vmul.f32 %v1820, %v1882
    %v1906 = vmul.f32 %v1821, %v1892
    %v1907 = vmul.f32 %v1822, %v1902
    %v1908 = vperm.slane %v1797, 0
    %v1909 = vmul.f32 %v1903, %v1908
    %v1910 = vmul.f32 %v1904, %v1908
    %v1911 = vmul.f32 %v1905, %v1908
    %v1912 = vmul.f32 %v1906, %v1908
    %v1913 = vmul.f32 %v1907, %v1908
    %v1914 = vperm.slane %v1797, 1
    %v1915 = vadd.f32 %v1909, %v1914
    %v1916 = vadd.f32 %v1910, %v1914
    %v1917 = vadd.f32 %v1911, %v1914
    %v1918 = vadd.f32 %v1912, %v1914
    %v1919 = vadd.f32 %v1913, %v1914
    %s1920 = scalar_lea.vmem %s3, 32
    %v1921 = vld [vmem:[%s1920] sm:$0xff]
    %v1922 = vld [vmem:[%s1920 + $0x8] sm:$0xff]
    %v1923 = vld [vmem:[%s1920 + $0x10] sm:$0xff]
    %v1924 = vld [vmem:[%s1920 + $0x18] sm:$0xff]
    %v1926 = vsel %vm117, %v1915, 0
    %v1929 = vsel %vm117, %v1916, 0
    %v1932 = vsel %vm117, %v1917, 0
    %v1935 = vsel %vm117, %v1918, 0
    %v1938 = vsel %vm117, %v1919, 0
    %1940 = vmatpush.msra.mxu0 0.0
    %1941 = vmatpush.msra.mxu0 0.0
    %1942 = vmatpush.msra.mxu0 0.0
    %1943 = vmatpush.msra.mxu0 0.0
    %1944 = vmatpush.msra.mxu0 0.0
    %1945 = vmatpush.msra.mxu0 0.0
    %1946 = vmatpush.msra.mxu0 0.0
    %1947 = vmatpush.msra.mxu0 0.0
    %1948 = vmatpush.msra.mxu0 0.0
    %1949 = vmatpush.msra.mxu0 0.0
    %1950 = vmatpush.msra.mxu0 0.0
    %1951 = vmatpush.msra.mxu0 0.0
    %1952 = vmatpush.msra.mxu0 %v1924
    %1953 = vmatpush.msra.mxu0 %v1923
    %1954 = vmatpush.msra.mxu0 %v1922
    %1955 = vmatpush.msra.mxu0 %v1921
    %1956 = vmatmul.f32.gmra.mxu0 %v1926
    %v1957 = vpop.f32.mrf.mxu0
    %v1958 = vadd.f32 0.0, %v1957
    %1959 = vmatmul.f32.gmra.mxu0 %v1929
    %v1960 = vpop.f32.mrf.mxu0
    %v1961 = vadd.f32 0.0, %v1960
    %1962 = vmatmul.f32.gmra.mxu0 %v1932
    %v1963 = vpop.f32.mrf.mxu0
    %v1964 = vadd.f32 0.0, %v1963
    %1965 = vmatmul.f32.gmra.mxu0 %v1935
    %v1966 = vpop.f32.mrf.mxu0
    %v1967 = vadd.f32 0.0, %v1966
    %1968 = vmatmul.f32.gmra.mxu0 %v1938
    %v1969 = vpop.f32.mrf.mxu0
    %v1970 = vadd.f32 0.0, %v1969
    %1971 = vdwg.mxu0
    %1975 = vrot.lane.b32.xlu0 %v1958, 96
    %v1976 = vpop.permute.xlu0 %1975
    %1977 = vrot.lane.b32.xlu0 %v1961, 96
    %v1978 = vpop.permute.xlu0 %1977
    %1979 = vrot.lane.b32.xlu0 %v1964, 96
    %v1980 = vpop.permute.xlu0 %1979
    %v1981 = vsel %vm308, %v1958, 0
    %v1983 = vsel %vm308, %v1961, 0
    %v1985 = vsel %vm308, %v1964, 0
    %v1987 = vsel %vm308, %v1976, 0
    %v1989 = vsel %vm308, %v1978, 0
    %v1991 = vsel %vm308, %v1980, 0
    %1993 = vmatpush.xpose.msra.mxu0 0.0
    %1994 = vmatpush.xpose.msra.mxu0 0.0
    %1995 = vmatpush.xpose.msra.mxu0 0.0
    %1996 = vmatpush.xpose.msra.mxu0 0.0
    %1997 = vmatpush.xpose.msra.mxu0 0.0
    %1998 = vmatpush.xpose.msra.mxu0 0.0
    %1999 = vmatpush.xpose.msra.mxu0 0.0
    %2000 = vmatpush.xpose.msra.mxu0 0.0
    %2001 = vmatpush.xpose.msra.mxu0 0.0
    %2002 = vmatpush.xpose.msra.mxu0 0.0
    %2003 = vmatpush.xpose.msra.mxu0 0.0
    %2004 = vmatpush.xpose.msra.mxu0 0.0
    %2005 = vmatpush.xpose.msra.mxu0 0.0
    %2006 = vmatpush.xpose.msra.mxu0 %v1991
    %2007 = vmatpush.xpose.msra.mxu0 %v1989
    %2008 = vmatpush.xpose.msra.mxu0 %v1987
    %2009 = vmatmul.f32.gmra.mxu0 %v1981
    %v2010 = vpop.f32.mrf.mxu0
    %v2011 = vadd.f32 0.0, %v2010
    %2012 = vmatmul.f32.gmra.mxu0 %v1983
    %v2013 = vpop.f32.mrf.mxu0
    %v2014 = vadd.f32 0.0, %v2013
    %2015 = vmatmul.f32.gmra.mxu0 %v1985
    %v2016 = vpop.f32.mrf.mxu0
    %v2017 = vadd.f32 0.0, %v2016
    %2018 = vdwg.mxu0
    %v2019 = vmul.f32 %v2011, 0.35355338
    %v2020 = vmul.f32 %v2014, 0.35355338
    %v2021 = vmul.f32 %v2017, 0.35355338
    %v2022 = vsel %vm350, %v2019, -inf
    %2023 = vmax.xlane.f32.xlu0 %v2022
    %v2024 = vpop.xlane.xlu0 %2023
    %v2025 = vsel %vm350, %v2020, -inf
    %2026 = vmax.xlane.f32.xlu0 %v2025
    %v2027 = vpop.xlane.xlu0 %2026
    %v2028 = vsel %vm357, %v2021, -inf
    %2029 = vmax.xlane.f32.xlu0 %v2028
    %v2030 = vpop.xlane.xlu0 %2029
    %v2031 = vsub.f32 %v2019, %v2024
    %v2032 = vsub.f32 %v2020, %v2027
    %v2033 = vsub.f32 %v2021, %v2030
    %v2034 = vmul.f32 %v2031, 1.442695
    %v2035 = vpow.pop %v2034
    %v2036 = vmul.f32 %v2032, 1.442695
    %v2037 = vpow.pop %v2036
    %v2038 = vmul.f32 %v2033, 1.442695
    %v2039 = vpow.pop %v2038
    %v2040 = vsel %vm350, %v2035, 0.0
    %2041 = vadd.xlane.f32.xlu0 %v2040
    %v2042 = vpop.xlane.xlu0 %2041
    %v2043 = vsel %vm350, %v2037, 0.0
    %2044 = vadd.xlane.f32.xlu0 %v2043
    %v2045 = vpop.xlane.xlu0 %2044
    %v2046 = vsel %vm357, %v2039, 0.0
    %2047 = vadd.xlane.f32.xlu0 %v2046
    %v2048 = vpop.xlane.xlu0 %2047
    %v2049 = vrcp.pop %v2042
    %v2050 = vrcp.pop %v2045
    %v2051 = vrcp.pop %v2048
    %v2052 = vmul.f32 %v2035, %v2049
    %v2053 = vmul.f32 %v2037, %v2050
    %v2054 = vmul.f32 %v2039, %v2051
    %2055 = vrot.lane.b32.xlu0 %v1958, 64
    %v2056 = vpop.permute.xlu0 %2055
    %2057 = vrot.lane.b32.xlu0 %v1961, 64
    %v2058 = vpop.permute.xlu0 %2057
    %2059 = vrot.lane.b32.xlu0 %v1964, 64
    %v2060 = vpop.permute.xlu0 %2059
    %v2064 = vsel %vm350, %v2052, 0
    %v2067 = vsel %vm350, %v2053, 0
    %v2070 = vsel %vm350, %v2054, 0
    %v2072 = vsel %vm94, %v2060, 0
    %2074 = vmatpush.msra.mxu0 0.0
    %2075 = vmatpush.msra.mxu0 0.0
    %2076 = vmatpush.msra.mxu0 0.0
    %2077 = vmatpush.msra.mxu0 0.0
    %2078 = vmatpush.msra.mxu0 0.0
    %2079 = vmatpush.msra.mxu0 0.0
    %2080 = vmatpush.msra.mxu0 0.0
    %2081 = vmatpush.msra.mxu0 0.0
    %2082 = vmatpush.msra.mxu0 0.0
    %2083 = vmatpush.msra.mxu0 0.0
    %2084 = vmatpush.msra.mxu0 0.0
    %2085 = vmatpush.msra.mxu0 0.0
    %2086 = vmatpush.msra.mxu0 0.0
    %2087 = vmatpush.msra.mxu0 %v2072
    %2088 = vmatpush.msra.mxu0 %v2058
    %2089 = vmatpush.msra.mxu0 %v2056
    %2090 = vmatmul.f32.gmra.mxu0 %v2064
    %v2091 = vpop.f32.mrf.mxu0
    %v2092 = vadd.f32 0.0, %v2091
    %2093 = vmatmul.f32.gmra.mxu0 %v2067
    %v2094 = vpop.f32.mrf.mxu0
    %v2095 = vadd.f32 0.0, %v2094
    %2096 = vmatmul.f32.gmra.mxu0 %v2070
    %v2097 = vpop.f32.mrf.mxu0
    %v2098 = vadd.f32 0.0, %v2097
    %2099 = vdwg.mxu0
    %2100 = vrot.lane.b32.xlu0 %v1958, 120
    %v2101 = vpop.permute.xlu0 %2100
    %2102 = vrot.lane.b32.xlu0 %v1961, 120
    %v2103 = vpop.permute.xlu0 %2102
    %2104 = vrot.lane.b32.xlu0 %v1964, 120
    %v2105 = vpop.permute.xlu0 %2104
    %2106 = vrot.lane.b32.xlu0 %v1958, 88
    %v2107 = vpop.permute.xlu0 %2106
    %2108 = vrot.lane.b32.xlu0 %v1961, 88
    %v2109 = vpop.permute.xlu0 %2108
    %2110 = vrot.lane.b32.xlu0 %v1964, 88
    %v2111 = vpop.permute.xlu0 %2110
    %v2112 = vsel %vm308, %v2101, 0
    %v2114 = vsel %vm308, %v2103, 0
    %v2116 = vsel %vm308, %v2105, 0
    %v2118 = vsel %vm308, %v2107, 0
    %v2120 = vsel %vm308, %v2109, 0
    %v2122 = vsel %vm308, %v2111, 0
    %2124 = vmatpush.xpose.msra.mxu0 0.0
    %2125 = vmatpush.xpose.msra.mxu0 0.0
    %2126 = vmatpush.xpose.msra.mxu0 0.0
    %2127 = vmatpush.xpose.msra.mxu0 0.0
    %2128 = vmatpush.xpose.msra.mxu0 0.0
    %2129 = vmatpush.xpose.msra.mxu0 0.0
    %2130 = vmatpush.xpose.msra.mxu0 0.0
    %2131 = vmatpush.xpose.msra.mxu0 0.0
    %2132 = vmatpush.xpose.msra.mxu0 0.0
    %2133 = vmatpush.xpose.msra.mxu0 0.0
    %2134 = vmatpush.xpose.msra.mxu0 0.0
    %2135 = vmatpush.xpose.msra.mxu0 0.0
    %2136 = vmatpush.xpose.msra.mxu0 0.0
    %2137 = vmatpush.xpose.msra.mxu0 %v2122
    %2138 = vmatpush.xpose.msra.mxu0 %v2120
    %2139 = vmatpush.xpose.msra.mxu0 %v2118
    %2140 = vmatmul.f32.gmra.mxu0 %v2112
    %v2141 = vpop.f32.mrf.mxu0
    %v2142 = vadd.f32 0.0, %v2141
    %2143 = vmatmul.f32.gmra.mxu0 %v2114
    %v2144 = vpop.f32.mrf.mxu0
    %v2145 = vadd.f32 0.0, %v2144
    %2146 = vmatmul.f32.gmra.mxu0 %v2116
    %v2147 = vpop.f32.mrf.mxu0
    %v2148 = vadd.f32 0.0, %v2147
    %2149 = vdwg.mxu0
    %v2150 = vmul.f32 %v2142, 0.35355338
    %v2151 = vmul.f32 %v2145, 0.35355338
    %v2152 = vmul.f32 %v2148, 0.35355338
    %v2153 = vsel %vm350, %v2150, -inf
    %2154 = vmax.xlane.f32.xlu0 %v2153
    %v2155 = vpop.xlane.xlu0 %2154
    %v2156 = vsel %vm350, %v2151, -inf
    %2157 = vmax.xlane.f32.xlu0 %v2156
    %v2158 = vpop.xlane.xlu0 %2157
    %v2159 = vsel %vm357, %v2152, -inf
    %2160 = vmax.xlane.f32.xlu0 %v2159
    %v2161 = vpop.xlane.xlu0 %2160
    %v2162 = vsub.f32 %v2150, %v2155
    %v2163 = vsub.f32 %v2151, %v2158
    %v2164 = vsub.f32 %v2152, %v2161
    %v2165 = vmul.f32 %v2162, 1.442695
    %v2166 = vpow.pop %v2165
    %v2167 = vmul.f32 %v2163, 1.442695
    %v2168 = vpow.pop %v2167
    %v2169 = vmul.f32 %v2164, 1.442695
    %v2170 = vpow.pop %v2169
    %v2171 = vsel %vm350, %v2166, 0.0
    %2172 = vadd.xlane.f32.xlu0 %v2171
    %v2173 = vpop.xlane.xlu0 %2172
    %v2174 = vsel %vm350, %v2168, 0.0
    %2175 = vadd.xlane.f32.xlu0 %v2174
    %v2176 = vpop.xlane.xlu0 %2175
    %v2177 = vsel %vm357, %v2170, 0.0
    %2178 = vadd.xlane.f32.xlu0 %v2177
    %v2179 = vpop.xlane.xlu0 %2178
    %v2180 = vrcp.pop %v2173
    %v2181 = vrcp.pop %v2176
    %v2182 = vrcp.pop %v2179
    %v2183 = vmul.f32 %v2166, %v2180
    %v2184 = vmul.f32 %v2168, %v2181
    %v2185 = vmul.f32 %v2170, %v2182
    %2186 = vrot.lane.b32.xlu0 %v1958, 56
    %v2187 = vpop.permute.xlu0 %2186
    %2188 = vrot.lane.b32.xlu0 %v1961, 56
    %v2189 = vpop.permute.xlu0 %2188
    %2190 = vrot.lane.b32.xlu0 %v1964, 56
    %v2191 = vpop.permute.xlu0 %2190
    %v2195 = vsel %vm350, %v2183, 0
    %v2198 = vsel %vm350, %v2184, 0
    %v2201 = vsel %vm350, %v2185, 0
    %v2203 = vsel %vm94, %v2191, 0
    %2205 = vmatpush.msra.mxu0 0.0
    %2206 = vmatpush.msra.mxu0 0.0
    %2207 = vmatpush.msra.mxu0 0.0
    %2208 = vmatpush.msra.mxu0 0.0
    %2209 = vmatpush.msra.mxu0 0.0
    %2210 = vmatpush.msra.mxu0 0.0
    %2211 = vmatpush.msra.mxu0 0.0
    %2212 = vmatpush.msra.mxu0 0.0
    %2213 = vmatpush.msra.mxu0 0.0
    %2214 = vmatpush.msra.mxu0 0.0
    %2215 = vmatpush.msra.mxu0 0.0
    %2216 = vmatpush.msra.mxu0 0.0
    %2217 = vmatpush.msra.mxu0 0.0
    %2218 = vmatpush.msra.mxu0 %v2203
    %2219 = vmatpush.msra.mxu0 %v2189
    %2220 = vmatpush.msra.mxu0 %v2187
    %2221 = vmatmul.f32.gmra.mxu0 %v2195
    %v2222 = vpop.f32.mrf.mxu0
    %v2223 = vadd.f32 0.0, %v2222
    %2224 = vmatmul.f32.gmra.mxu0 %v2198
    %v2225 = vpop.f32.mrf.mxu0
    %v2226 = vadd.f32 0.0, %v2225
    %2227 = vmatmul.f32.gmra.mxu0 %v2201
    %v2228 = vpop.f32.mrf.mxu0
    %v2229 = vadd.f32 0.0, %v2228
    %2230 = vdwg.mxu0
    %2231 = vrot.lane.b32.xlu0 %v1958, 112
    %v2232 = vpop.permute.xlu0 %2231
    %2233 = vrot.lane.b32.xlu0 %v1961, 112
    %v2234 = vpop.permute.xlu0 %2233
    %2235 = vrot.lane.b32.xlu0 %v1964, 112
    %v2236 = vpop.permute.xlu0 %2235
    %2237 = vrot.lane.b32.xlu0 %v1958, 80
    %v2238 = vpop.permute.xlu0 %2237
    %2239 = vrot.lane.b32.xlu0 %v1961, 80
    %v2240 = vpop.permute.xlu0 %2239
    %2241 = vrot.lane.b32.xlu0 %v1964, 80
    %v2242 = vpop.permute.xlu0 %2241
    %v2243 = vsel %vm308, %v2232, 0
    %v2245 = vsel %vm308, %v2234, 0
    %v2247 = vsel %vm308, %v2236, 0
    %v2249 = vsel %vm308, %v2238, 0
    %v2251 = vsel %vm308, %v2240, 0
    %v2253 = vsel %vm308, %v2242, 0
    %2255 = vmatpush.xpose.msra.mxu0 0.0
    %2256 = vmatpush.xpose.msra.mxu0 0.0
    %2257 = vmatpush.xpose.msra.mxu0 0.0
    %2258 = vmatpush.xpose.msra.mxu0 0.0
    %2259 = vmatpush.xpose.msra.mxu0 0.0
    %2260 = vmatpush.xpose.msra.mxu0 0.0
    %2261 = vmatpush.xpose.msra.mxu0 0.0
    %2262 = vmatpush.xpose.msra.mxu0 0.0
    %2263 = vmatpush.xpose.msra.mxu0 0.0
    %2264 = vmatpush.xpose.msra.mxu0 0.0
    %2265 = vmatpush.xpose.msra.mxu0 0.0
    %2266 = vmatpush.xpose.msra.mxu0 0.0
    %2267 = vmatpush.xpose.msra.mxu0 0.0
    %2268 = vmatpush.xpose.msra.mxu0 %v2253
    %2269 = vmatpush.xpose.msra.mxu0 %v2251
    %2270 = vmatpush.xpose.msra.mxu0 %v2249
    %2271 = vmatmul.f32.gmra.mxu0 %v2243
    %v2272 = vpop.f32.mrf.mxu0
    %v2273 = vadd.f32 0.0, %v2272
    %2274 = vmatmul.f32.gmra.mxu0 %v2245
    %v2275 = vpop.f32.mrf.mxu0
    %v2276 = vadd.f32 0.0, %v2275
    %2277 = vmatmul.f32.gmra.mxu0 %v2247
    %v2278 = vpop.f32.mrf.mxu0
    %v2279 = vadd.f32 0.0, %v2278
    %2280 = vdwg.mxu0
    %v2281 = vmul.f32 %v2273, 0.35355338
    %v2282 = vmul.f32 %v2276, 0.35355338
    %v2283 = vmul.f32 %v2279, 0.35355338
    %v2284 = vsel %vm350, %v2281, -inf
    %2285 = vmax.xlane.f32.xlu0 %v2284
    %v2286 = vpop.xlane.xlu0 %2285
    %v2287 = vsel %vm350, %v2282, -inf
    %2288 = vmax.xlane.f32.xlu0 %v2287
    %v2289 = vpop.xlane.xlu0 %2288
    %v2290 = vsel %vm357, %v2283, -inf
    %2291 = vmax.xlane.f32.xlu0 %v2290
    %v2292 = vpop.xlane.xlu0 %2291
    %v2293 = vsub.f32 %v2281, %v2286
    %v2294 = vsub.f32 %v2282, %v2289
    %v2295 = vsub.f32 %v2283, %v2292
    %v2296 = vmul.f32 %v2293, 1.442695
    %v2297 = vpow.pop %v2296
    %v2298 = vmul.f32 %v2294, 1.442695
    %v2299 = vpow.pop %v2298
    %v2300 = vmul.f32 %v2295, 1.442695
    %v2301 = vpow.pop %v2300
    %v2302 = vsel %vm350, %v2297, 0.0
    %2303 = vadd.xlane.f32.xlu0 %v2302
    %v2304 = vpop.xlane.xlu0 %2303
    %v2305 = vsel %vm350, %v2299, 0.0
    %2306 = vadd.xlane.f32.xlu0 %v2305
    %v2307 = vpop.xlane.xlu0 %2306
    %v2308 = vsel %vm357, %v2301, 0.0
    %2309 = vadd.xlane.f32.xlu0 %v2308
    %v2310 = vpop.xlane.xlu0 %2309
    %v2311 = vrcp.pop %v2304
    %v2312 = vrcp.pop %v2307
    %v2313 = vrcp.pop %v2310
    %v2314 = vmul.f32 %v2297, %v2311
    %v2315 = vmul.f32 %v2299, %v2312
    %v2316 = vmul.f32 %v2301, %v2313
    %2317 = vrot.lane.b32.xlu0 %v1958, 48
    %v2318 = vpop.permute.xlu0 %2317
    %2319 = vrot.lane.b32.xlu0 %v1961, 48
    %v2320 = vpop.permute.xlu0 %2319
    %2321 = vrot.lane.b32.xlu0 %v1964, 48
    %v2322 = vpop.permute.xlu0 %2321
    %v2326 = vsel %vm350, %v2314, 0
    %v2329 = vsel %vm350, %v2315, 0
    %v2332 = vsel %vm350, %v2316, 0
    %v2334 = vsel %vm94, %v2322, 0
    %2336 = vmatpush.msra.mxu0 0.0
    %2337 = vmatpush.msra.mxu0 0.0
    %2338 = vmatpush.msra.mxu0 0.0
    %2339 = vmatpush.msra.mxu0 0.0
    %2340 = vmatpush.msra.mxu0 0.0
    %2341 = vmatpush.msra.mxu0 0.0
    %2342 = vmatpush.msra.mxu0 0.0
    %2343 = vmatpush.msra.mxu0 0.0
    %2344 = vmatpush.msra.mxu0 0.0
    %2345 = vmatpush.msra.mxu0 0.0
    %2346 = vmatpush.msra.mxu0 0.0
    %2347 = vmatpush.msra.mxu0 0.0
    %2348 = vmatpush.msra.mxu0 0.0
    %2349 = vmatpush.msra.mxu0 %v2334
    %2350 = vmatpush.msra.mxu0 %v2320
    %2351 = vmatpush.msra.mxu0 %v2318
    %2352 = vmatmul.f32.gmra.mxu0 %v2326
    %v2353 = vpop.f32.mrf.mxu0
    %v2354 = vadd.f32 0.0, %v2353
    %2355 = vmatmul.f32.gmra.mxu0 %v2329
    %v2356 = vpop.f32.mrf.mxu0
    %v2357 = vadd.f32 0.0, %v2356
    %2358 = vmatmul.f32.gmra.mxu0 %v2332
    %v2359 = vpop.f32.mrf.mxu0
    %v2360 = vadd.f32 0.0, %v2359
    %2361 = vdwg.mxu0
    %2362 = vrot.lane.b32.xlu0 %v1958, 104
    %v2363 = vpop.permute.xlu0 %2362
    %2364 = vrot.lane.b32.xlu0 %v1961, 104
    %v2365 = vpop.permute.xlu0 %2364
    %2366 = vrot.lane.b32.xlu0 %v1964, 104
    %v2367 = vpop.permute.xlu0 %2366
    %2368 = vrot.lane.b32.xlu0 %v1958, 72
    %v2369 = vpop.permute.xlu0 %2368
    %2370 = vrot.lane.b32.xlu0 %v1961, 72
    %v2371 = vpop.permute.xlu0 %2370
    %2372 = vrot.lane.b32.xlu0 %v1964, 72
    %v2373 = vpop.permute.xlu0 %2372
    %v2374 = vsel %vm308, %v2363, 0
    %v2376 = vsel %vm308, %v2365, 0
    %v2378 = vsel %vm308, %v2367, 0
    %v2380 = vsel %vm308, %v2369, 0
    %v2382 = vsel %vm308, %v2371, 0
    %v2384 = vsel %vm308, %v2373, 0
    %2386 = vmatpush.xpose.msra.mxu0 0.0
    %2387 = vmatpush.xpose.msra.mxu0 0.0
    %2388 = vmatpush.xpose.msra.mxu0 0.0
    %2389 = vmatpush.xpose.msra.mxu0 0.0
    %2390 = vmatpush.xpose.msra.mxu0 0.0
    %2391 = vmatpush.xpose.msra.mxu0 0.0
    %2392 = vmatpush.xpose.msra.mxu0 0.0
    %2393 = vmatpush.xpose.msra.mxu0 0.0
    %2394 = vmatpush.xpose.msra.mxu0 0.0
    %2395 = vmatpush.xpose.msra.mxu0 0.0
    %2396 = vmatpush.xpose.msra.mxu0 0.0
    %2397 = vmatpush.xpose.msra.mxu0 0.0
    %2398 = vmatpush.xpose.msra.mxu0 0.0
    %2399 = vmatpush.xpose.msra.mxu0 %v2384
    %2400 = vmatpush.xpose.msra.mxu0 %v2382
    %2401 = vmatpush.xpose.msra.mxu0 %v2380
    %2402 = vmatmul.f32.gmra.mxu0 %v2374
    %v2403 = vpop.f32.mrf.mxu0
    %v2404 = vadd.f32 0.0, %v2403
    %2405 = vmatmul.f32.gmra.mxu0 %v2376
    %v2406 = vpop.f32.mrf.mxu0
    %v2407 = vadd.f32 0.0, %v2406
    %2408 = vmatmul.f32.gmra.mxu0 %v2378
    %v2409 = vpop.f32.mrf.mxu0
    %v2410 = vadd.f32 0.0, %v2409
    %2411 = vdwg.mxu0
    %v2412 = vmul.f32 %v2404, 0.35355338
    %v2413 = vmul.f32 %v2407, 0.35355338
    %v2414 = vmul.f32 %v2410, 0.35355338
    %v2415 = vsel %vm350, %v2412, -inf
    %2416 = vmax.xlane.f32.xlu0 %v2415
    %v2417 = vpop.xlane.xlu0 %2416
    %v2418 = vsel %vm350, %v2413, -inf
    %2419 = vmax.xlane.f32.xlu0 %v2418
    %v2420 = vpop.xlane.xlu0 %2419
    %v2421 = vsel %vm357, %v2414, -inf
    %2422 = vmax.xlane.f32.xlu0 %v2421
    %v2423 = vpop.xlane.xlu0 %2422
    %v2424 = vsub.f32 %v2412, %v2417
    %v2425 = vsub.f32 %v2413, %v2420
    %v2426 = vsub.f32 %v2414, %v2423
    %v2427 = vmul.f32 %v2424, 1.442695
    %v2428 = vpow.pop %v2427
    %v2429 = vmul.f32 %v2425, 1.442695
    %v2430 = vpow.pop %v2429
    %v2431 = vmul.f32 %v2426, 1.442695
    %v2432 = vpow.pop %v2431
    %v2433 = vsel %vm350, %v2428, 0.0
    %2434 = vadd.xlane.f32.xlu0 %v2433
    %v2435 = vpop.xlane.xlu0 %2434
    %v2436 = vsel %vm350, %v2430, 0.0
    %2437 = vadd.xlane.f32.xlu0 %v2436
    %v2438 = vpop.xlane.xlu0 %2437
    %v2439 = vsel %vm357, %v2432, 0.0
    %2440 = vadd.xlane.f32.xlu0 %v2439
    %v2441 = vpop.xlane.xlu0 %2440
    %v2442 = vrcp.pop %v2435
    %v2443 = vrcp.pop %v2438
    %v2444 = vrcp.pop %v2441
    %v2445 = vmul.f32 %v2428, %v2442
    %v2446 = vmul.f32 %v2430, %v2443
    %v2447 = vmul.f32 %v2432, %v2444
    %2448 = vrot.lane.b32.xlu0 %v1958, 40
    %v2449 = vpop.permute.xlu0 %2448
    %2450 = vrot.lane.b32.xlu0 %v1961, 40
    %v2451 = vpop.permute.xlu0 %2450
    %2452 = vrot.lane.b32.xlu0 %v1964, 40
    %v2453 = vpop.permute.xlu0 %2452
    %v2457 = vsel %vm350, %v2445, 0
    %v2460 = vsel %vm350, %v2446, 0
    %v2463 = vsel %vm350, %v2447, 0
    %v2465 = vsel %vm94, %v2453, 0
    %2467 = vmatpush.msra.mxu0 0.0
    %2468 = vmatpush.msra.mxu0 0.0
    %2469 = vmatpush.msra.mxu0 0.0
    %2470 = vmatpush.msra.mxu0 0.0
    %2471 = vmatpush.msra.mxu0 0.0
    %2472 = vmatpush.msra.mxu0 0.0
    %2473 = vmatpush.msra.mxu0 0.0
    %2474 = vmatpush.msra.mxu0 0.0
    %2475 = vmatpush.msra.mxu0 0.0
    %2476 = vmatpush.msra.mxu0 0.0
    %2477 = vmatpush.msra.mxu0 0.0
    %2478 = vmatpush.msra.mxu0 0.0
    %2479 = vmatpush.msra.mxu0 0.0
    %2480 = vmatpush.msra.mxu0 %v2465
    %2481 = vmatpush.msra.mxu0 %v2451
    %2482 = vmatpush.msra.mxu0 %v2449
    %2483 = vmatmul.f32.gmra.mxu0 %v2457
    %v2484 = vpop.f32.mrf.mxu0
    %v2485 = vadd.f32 0.0, %v2484
    %2486 = vmatmul.f32.gmra.mxu0 %v2460
    %v2487 = vpop.f32.mrf.mxu0
    %v2488 = vadd.f32 0.0, %v2487
    %2489 = vmatmul.f32.gmra.mxu0 %v2463
    %v2490 = vpop.f32.mrf.mxu0
    %v2491 = vadd.f32 0.0, %v2490
    %2492 = vdwg.mxu0
    %2496 = vrot.lane.b32.xlu0 %v2223, 8
    %v2497 = vpop.permute.xlu0 %2496
    %2498 = vrot.lane.b32.xlu0 %v2226, 8
    %v2499 = vpop.permute.xlu0 %2498
    %2500 = vrot.lane.b32.xlu0 %v2229, 8
    %v2501 = vpop.permute.xlu0 %2500
    %2508 = vrot.lane.b32.xlu0 %v2354, 16
    %v2509 = vpop.permute.xlu0 %2508
    %2510 = vrot.lane.b32.xlu0 %v2357, 16
    %v2511 = vpop.permute.xlu0 %2510
    %2512 = vrot.lane.b32.xlu0 %v2360, 16
    %v2513 = vpop.permute.xlu0 %2512
    %2520 = vrot.lane.b32.xlu0 %v2485, 24
    %v2521 = vpop.permute.xlu0 %2520
    %2522 = vrot.lane.b32.xlu0 %v2488, 24
    %v2523 = vpop.permute.xlu0 %2522
    %2524 = vrot.lane.b32.xlu0 %v2491, 24
    %v2525 = vpop.permute.xlu0 %2524
    %v2529 = vsel %vm308, %v2092, %v2497
    %v2530 = vsel %vm308, %v2095, %v2499
    %v2531 = vsel %vm308, %v2098, %v2501
    %v2532 = vsel %vm41, %v2529, %v2509
    %v2533 = vsel %vm41, %v2530, %v2511
    %v2534 = vsel %vm41, %v2531, %v2513
    %v2535 = vsel %vm865, %v2532, %v2521
    %v2536 = vsel %vm865, %v2533, %v2523
    %v2537 = vsel %vm865, %v2534, %v2525
    %v2540 = vrot.slane %v1964, 1
    %v2541 = vrot.slane %v1967, 1
    %v2542 = vsel %vm871, %v2540, %v2541
    %v2543 = vrot.slane %v1970, 1
    %v2544 = vsel %vm871, %v2541, %v2543
    %2545 = vrot.lane.b32.xlu0 %v2542, 96
    %v2546 = vpop.permute.xlu0 %2545
    %2547 = vrot.lane.b32.xlu0 %v2544, 96
    %v2548 = vpop.permute.xlu0 %2547
    %2549 = vrot.lane.b32.xlu0 %v2543, 96
    %v2550 = vpop.permute.xlu0 %2549
    %v2551 = vsel %vm308, %v2542, 0
    %v2553 = vsel %vm308, %v2544, 0
    %v2555 = vsel %vm308, %v2543, 0
    %v2557 = vsel %vm308, %v2546, 0
    %v2559 = vsel %vm308, %v2548, 0
    %v2561 = vsel %vm308, %v2550, 0
    %2563 = vmatpush.xpose.msra.mxu0 0.0
    %2564 = vmatpush.xpose.msra.mxu0 0.0
    %2565 = vmatpush.xpose.msra.mxu0 0.0
    %2566 = vmatpush.xpose.msra.mxu0 0.0
    %2567 = vmatpush.xpose.msra.mxu0 0.0
    %2568 = vmatpush.xpose.msra.mxu0 0.0
    %2569 = vmatpush.xpose.msra.mxu0 0.0
    %2570 = vmatpush.xpose.msra.mxu0 0.0
    %2571 = vmatpush.xpose.msra.mxu0 0.0
    %2572 = vmatpush.xpose.msra.mxu0 0.0
    %2573 = vmatpush.xpose.msra.mxu0 0.0
    %2574 = vmatpush.xpose.msra.mxu0 0.0
    %2575 = vmatpush.xpose.msra.mxu0 0.0
    %2576 = vmatpush.xpose.msra.mxu0 %v2561
    %2577 = vmatpush.xpose.msra.mxu0 %v2559
    %2578 = vmatpush.xpose.msra.mxu0 %v2557
    %2579 = vmatmul.f32.gmra.mxu0 %v2551
    %v2580 = vpop.f32.mrf.mxu0
    %v2581 = vadd.f32 0.0, %v2580
    %2582 = vmatmul.f32.gmra.mxu0 %v2553
    %v2583 = vpop.f32.mrf.mxu0
    %v2584 = vadd.f32 0.0, %v2583
    %2585 = vmatmul.f32.gmra.mxu0 %v2555
    %v2586 = vpop.f32.mrf.mxu0
    %v2587 = vadd.f32 0.0, %v2586
    %2588 = vdwg.mxu0
    %v2589 = vmul.f32 %v2581, 0.35355338
    %v2590 = vmul.f32 %v2584, 0.35355338
    %v2591 = vmul.f32 %v2587, 0.35355338
    %v2592 = vsel %vm350, %v2589, -inf
    %2593 = vmax.xlane.f32.xlu0 %v2592
    %v2594 = vpop.xlane.xlu0 %2593
    %v2595 = vsel %vm350, %v2590, -inf
    %2596 = vmax.xlane.f32.xlu0 %v2595
    %v2597 = vpop.xlane.xlu0 %2596
    %v2598 = vsel %vm357, %v2591, -inf
    %2599 = vmax.xlane.f32.xlu0 %v2598
    %v2600 = vpop.xlane.xlu0 %2599
    %v2601 = vsub.f32 %v2589, %v2594
    %v2602 = vsub.f32 %v2590, %v2597
    %v2603 = vsub.f32 %v2591, %v2600
    %v2604 = vmul.f32 %v2601, 1.442695
    %v2605 = vpow.pop %v2604
    %v2606 = vmul.f32 %v2602, 1.442695
    %v2607 = vpow.pop %v2606
    %v2608 = vmul.f32 %v2603, 1.442695
    %v2609 = vpow.pop %v2608
    %v2610 = vsel %vm350, %v2605, 0.0
    %2611 = vadd.xlane.f32.xlu0 %v2610
    %v2612 = vpop.xlane.xlu0 %2611
    %v2613 = vsel %vm350, %v2607, 0.0
    %2614 = vadd.xlane.f32.xlu0 %v2613
    %v2615 = vpop.xlane.xlu0 %2614
    %v2616 = vsel %vm357, %v2609, 0.0
    %2617 = vadd.xlane.f32.xlu0 %v2616
    %v2618 = vpop.xlane.xlu0 %2617
    %v2619 = vrcp.pop %v2612
    %v2620 = vrcp.pop %v2615
    %v2621 = vrcp.pop %v2618
    %v2622 = vmul.f32 %v2605, %v2619
    %v2623 = vmul.f32 %v2607, %v2620
    %v2624 = vmul.f32 %v2609, %v2621
    %2625 = vrot.lane.b32.xlu0 %v2542, 64
    %v2626 = vpop.permute.xlu0 %2625
    %2627 = vrot.lane.b32.xlu0 %v2544, 64
    %v2628 = vpop.permute.xlu0 %2627
    %2629 = vrot.lane.b32.xlu0 %v2543, 64
    %v2630 = vpop.permute.xlu0 %2629
    %v2634 = vsel %vm350, %v2622, 0
    %v2637 = vsel %vm350, %v2623, 0
    %v2640 = vsel %vm350, %v2624, 0
    %v2642 = vsel %vm94, %v2630, 0
    %2644 = vmatpush.msra.mxu0 0.0
    %2645 = vmatpush.msra.mxu0 0.0
    %2646 = vmatpush.msra.mxu0 0.0
    %2647 = vmatpush.msra.mxu0 0.0
    %2648 = vmatpush.msra.mxu0 0.0
    %2649 = vmatpush.msra.mxu0 0.0
    %2650 = vmatpush.msra.mxu0 0.0
    %2651 = vmatpush.msra.mxu0 0.0
    %2652 = vmatpush.msra.mxu0 0.0
    %2653 = vmatpush.msra.mxu0 0.0
    %2654 = vmatpush.msra.mxu0 0.0
    %2655 = vmatpush.msra.mxu0 0.0
    %2656 = vmatpush.msra.mxu0 0.0
    %2657 = vmatpush.msra.mxu0 %v2642
    %2658 = vmatpush.msra.mxu0 %v2628
    %2659 = vmatpush.msra.mxu0 %v2626
    %2660 = vmatmul.f32.gmra.mxu0 %v2634
    %v2661 = vpop.f32.mrf.mxu0
    %v2662 = vadd.f32 0.0, %v2661
    %2663 = vmatmul.f32.gmra.mxu0 %v2637
    %v2664 = vpop.f32.mrf.mxu0
    %v2665 = vadd.f32 0.0, %v2664
    %2666 = vmatmul.f32.gmra.mxu0 %v2640
    %v2667 = vpop.f32.mrf.mxu0
    %v2668 = vadd.f32 0.0, %v2667
    %2669 = vdwg.mxu0
    %2670 = vrot.lane.b32.xlu0 %v2542, 120
    %v2671 = vpop.permute.xlu0 %2670
    %2672 = vrot.lane.b32.xlu0 %v2544, 120
    %v2673 = vpop.permute.xlu0 %2672
    %2674 = vrot.lane.b32.xlu0 %v2543, 120
    %v2675 = vpop.permute.xlu0 %2674
    %2676 = vrot.lane.b32.xlu0 %v2542, 88
    %v2677 = vpop.permute.xlu0 %2676
    %2678 = vrot.lane.b32.xlu0 %v2544, 88
    %v2679 = vpop.permute.xlu0 %2678
    %2680 = vrot.lane.b32.xlu0 %v2543, 88
    %v2681 = vpop.permute.xlu0 %2680
    %v2682 = vsel %vm308, %v2671, 0
    %v2684 = vsel %vm308, %v2673, 0
    %v2686 = vsel %vm308, %v2675, 0
    %v2688 = vsel %vm308, %v2677, 0
    %v2690 = vsel %vm308, %v2679, 0
    %v2692 = vsel %vm308, %v2681, 0
    %2694 = vmatpush.xpose.msra.mxu0 0.0
    %2695 = vmatpush.xpose.msra.mxu0 0.0
    %2696 = vmatpush.xpose.msra.mxu0 0.0
    %2697 = vmatpush.xpose.msra.mxu0 0.0
    %2698 = vmatpush.xpose.msra.mxu0 0.0
    %2699 = vmatpush.xpose.msra.mxu0 0.0
    %2700 = vmatpush.xpose.msra.mxu0 0.0
    %2701 = vmatpush.xpose.msra.mxu0 0.0
    %2702 = vmatpush.xpose.msra.mxu0 0.0
    %2703 = vmatpush.xpose.msra.mxu0 0.0
    %2704 = vmatpush.xpose.msra.mxu0 0.0
    %2705 = vmatpush.xpose.msra.mxu0 0.0
    %2706 = vmatpush.xpose.msra.mxu0 0.0
    %2707 = vmatpush.xpose.msra.mxu0 %v2692
    %2708 = vmatpush.xpose.msra.mxu0 %v2690
    %2709 = vmatpush.xpose.msra.mxu0 %v2688
    %2710 = vmatmul.f32.gmra.mxu0 %v2682
    %v2711 = vpop.f32.mrf.mxu0
    %v2712 = vadd.f32 0.0, %v2711
    %2713 = vmatmul.f32.gmra.mxu0 %v2684
    %v2714 = vpop.f32.mrf.mxu0
    %v2715 = vadd.f32 0.0, %v2714
    %2716 = vmatmul.f32.gmra.mxu0 %v2686
    %v2717 = vpop.f32.mrf.mxu0
    %v2718 = vadd.f32 0.0, %v2717
    %2719 = vdwg.mxu0
    %v2720 = vmul.f32 %v2712, 0.35355338
    %v2721 = vmul.f32 %v2715, 0.35355338
    %v2722 = vmul.f32 %v2718, 0.35355338
    %v2723 = vsel %vm350, %v2720, -inf
    %2724 = vmax.xlane.f32.xlu0 %v2723
    %v2725 = vpop.xlane.xlu0 %2724
    %v2726 = vsel %vm350, %v2721, -inf
    %2727 = vmax.xlane.f32.xlu0 %v2726
    %v2728 = vpop.xlane.xlu0 %2727
    %v2729 = vsel %vm357, %v2722, -inf
    %2730 = vmax.xlane.f32.xlu0 %v2729
    %v2731 = vpop.xlane.xlu0 %2730
    %v2732 = vsub.f32 %v2720, %v2725
    %v2733 = vsub.f32 %v2721, %v2728
    %v2734 = vsub.f32 %v2722, %v2731
    %v2735 = vmul.f32 %v2732, 1.442695
    %v2736 = vpow.pop %v2735
    %v2737 = vmul.f32 %v2733, 1.442695
    %v2738 = vpow.pop %v2737
    %v2739 = vmul.f32 %v2734, 1.442695
    %v2740 = vpow.pop %v2739
    %v2741 = vsel %vm350, %v2736, 0.0
    %2742 = vadd.xlane.f32.xlu0 %v2741
    %v2743 = vpop.xlane.xlu0 %2742
    %v2744 = vsel %vm350, %v2738, 0.0
    %2745 = vadd.xlane.f32.xlu0 %v2744
    %v2746 = vpop.xlane.xlu0 %2745
    %v2747 = vsel %vm357, %v2740, 0.0
    %2748 = vadd.xlane.f32.xlu0 %v2747
    %v2749 = vpop.xlane.xlu0 %2748
    %v2750 = vrcp.pop %v2743
    %v2751 = vrcp.pop %v2746
    %v2752 = vrcp.pop %v2749
    %v2753 = vmul.f32 %v2736, %v2750
    %v2754 = vmul.f32 %v2738, %v2751
    %v2755 = vmul.f32 %v2740, %v2752
    %2756 = vrot.lane.b32.xlu0 %v2542, 56
    %v2757 = vpop.permute.xlu0 %2756
    %2758 = vrot.lane.b32.xlu0 %v2544, 56
    %v2759 = vpop.permute.xlu0 %2758
    %2760 = vrot.lane.b32.xlu0 %v2543, 56
    %v2761 = vpop.permute.xlu0 %2760
    %v2765 = vsel %vm350, %v2753, 0
    %v2768 = vsel %vm350, %v2754, 0
    %v2771 = vsel %vm350, %v2755, 0
    %v2773 = vsel %vm94, %v2761, 0
    %2775 = vmatpush.msra.mxu0 0.0
    %2776 = vmatpush.msra.mxu0 0.0
    %2777 = vmatpush.msra.mxu0 0.0
    %2778 = vmatpush.msra.mxu0 0.0
    %2779 = vmatpush.msra.mxu0 0.0
    %2780 = vmatpush.msra.mxu0 0.0
    %2781 = vmatpush.msra.mxu0 0.0
    %2782 = vmatpush.msra.mxu0 0.0
    %2783 = vmatpush.msra.mxu0 0.0
    %2784 = vmatpush.msra.mxu0 0.0
    %2785 = vmatpush.msra.mxu0 0.0
    %2786 = vmatpush.msra.mxu0 0.0
    %2787 = vmatpush.msra.mxu0 0.0
    %2788 = vmatpush.msra.mxu0 %v2773
    %2789 = vmatpush.msra.mxu0 %v2759
    %2790 = vmatpush.msra.mxu0 %v2757
    %2791 = vmatmul.f32.gmra.mxu0 %v2765
    %v2792 = vpop.f32.mrf.mxu0
    %v2793 = vadd.f32 0.0, %v2792
    %2794 = vmatmul.f32.gmra.mxu0 %v2768
    %v2795 = vpop.f32.mrf.mxu0
    %v2796 = vadd.f32 0.0, %v2795
    %2797 = vmatmul.f32.gmra.mxu0 %v2771
    %v2798 = vpop.f32.mrf.mxu0
    %v2799 = vadd.f32 0.0, %v2798
    %2800 = vdwg.mxu0
    %2801 = vrot.lane.b32.xlu0 %v2542, 112
    %v2802 = vpop.permute.xlu0 %2801
    %2803 = vrot.lane.b32.xlu0 %v2544, 112
    %v2804 = vpop.permute.xlu0 %2803
    %2805 = vrot.lane.b32.xlu0 %v2543, 112
    %v2806 = vpop.permute.xlu0 %2805
    %2807 = vrot.lane.b32.xlu0 %v2542, 80
    %v2808 = vpop.permute.xlu0 %2807
    %2809 = vrot.lane.b32.xlu0 %v2544, 80
    %v2810 = vpop.permute.xlu0 %2809
    %2811 = vrot.lane.b32.xlu0 %v2543, 80
    %v2812 = vpop.permute.xlu0 %2811
    %v2813 = vsel %vm308, %v2802, 0
    %v2815 = vsel %vm308, %v2804, 0
    %v2817 = vsel %vm308, %v2806, 0
    %v2819 = vsel %vm308, %v2808, 0
    %v2821 = vsel %vm308, %v2810, 0
    %v2823 = vsel %vm308, %v2812, 0
    %2825 = vmatpush.xpose.msra.mxu0 0.0
    %2826 = vmatpush.xpose.msra.mxu0 0.0
    %2827 = vmatpush.xpose.msra.mxu0 0.0
    %2828 = vmatpush.xpose.msra.mxu0 0.0
    %2829 = vmatpush.xpose.msra.mxu0 0.0
    %2830 = vmatpush.xpose.msra.mxu0 0.0
    %2831 = vmatpush.xpose.msra.mxu0 0.0
    %2832 = vmatpush.xpose.msra.mxu0 0.0
    %2833 = vmatpush.xpose.msra.mxu0 0.0
    %2834 = vmatpush.xpose.msra.mxu0 0.0
    %2835 = vmatpush.xpose.msra.mxu0 0.0
    %2836 = vmatpush.xpose.msra.mxu0 0.0
    %2837 = vmatpush.xpose.msra.mxu0 0.0
    %2838 = vmatpush.xpose.msra.mxu0 %v2823
    %2839 = vmatpush.xpose.msra.mxu0 %v2821
    %2840 = vmatpush.xpose.msra.mxu0 %v2819
    %2841 = vmatmul.f32.gmra.mxu0 %v2813
    %v2842 = vpop.f32.mrf.mxu0
    %v2843 = vadd.f32 0.0, %v2842
    %2844 = vmatmul.f32.gmra.mxu0 %v2815
    %v2845 = vpop.f32.mrf.mxu0
    %v2846 = vadd.f32 0.0, %v2845
    %2847 = vmatmul.f32.gmra.mxu0 %v2817
    %v2848 = vpop.f32.mrf.mxu0
    %v2849 = vadd.f32 0.0, %v2848
    %2850 = vdwg.mxu0
    %v2851 = vmul.f32 %v2843, 0.35355338
    %v2852 = vmul.f32 %v2846, 0.35355338
    %v2853 = vmul.f32 %v2849, 0.35355338
    %v2854 = vsel %vm350, %v2851, -inf
    %2855 = vmax.xlane.f32.xlu0 %v2854
    %v2856 = vpop.xlane.xlu0 %2855
    %v2857 = vsel %vm350, %v2852, -inf
    %2858 = vmax.xlane.f32.xlu0 %v2857
    %v2859 = vpop.xlane.xlu0 %2858
    %v2860 = vsel %vm357, %v2853, -inf
    %2861 = vmax.xlane.f32.xlu0 %v2860
    %v2862 = vpop.xlane.xlu0 %2861
    %v2863 = vsub.f32 %v2851, %v2856
    %v2864 = vsub.f32 %v2852, %v2859
    %v2865 = vsub.f32 %v2853, %v2862
    %v2866 = vmul.f32 %v2863, 1.442695
    %v2867 = vpow.pop %v2866
    %v2868 = vmul.f32 %v2864, 1.442695
    %v2869 = vpow.pop %v2868
    %v2870 = vmul.f32 %v2865, 1.442695
    %v2871 = vpow.pop %v2870
    %v2872 = vsel %vm350, %v2867, 0.0
    %2873 = vadd.xlane.f32.xlu0 %v2872
    %v2874 = vpop.xlane.xlu0 %2873
    %v2875 = vsel %vm350, %v2869, 0.0
    %2876 = vadd.xlane.f32.xlu0 %v2875
    %v2877 = vpop.xlane.xlu0 %2876
    %v2878 = vsel %vm357, %v2871, 0.0
    %2879 = vadd.xlane.f32.xlu0 %v2878
    %v2880 = vpop.xlane.xlu0 %2879
    %v2881 = vrcp.pop %v2874
    %v2882 = vrcp.pop %v2877
    %v2883 = vrcp.pop %v2880
    %v2884 = vmul.f32 %v2867, %v2881
    %v2885 = vmul.f32 %v2869, %v2882
    %v2886 = vmul.f32 %v2871, %v2883
    %2887 = vrot.lane.b32.xlu0 %v2542, 48
    %v2888 = vpop.permute.xlu0 %2887
    %2889 = vrot.lane.b32.xlu0 %v2544, 48
    %v2890 = vpop.permute.xlu0 %2889
    %2891 = vrot.lane.b32.xlu0 %v2543, 48
    %v2892 = vpop.permute.xlu0 %2891
    %v2896 = vsel %vm350, %v2884, 0
    %v2899 = vsel %vm350, %v2885, 0
    %v2902 = vsel %vm350, %v2886, 0
    %v2904 = vsel %vm94, %v2892, 0
    %2906 = vmatpush.msra.mxu0 0.0
    %2907 = vmatpush.msra.mxu0 0.0
    %2908 = vmatpush.msra.mxu0 0.0
    %2909 = vmatpush.msra.mxu0 0.0
    %2910 = vmatpush.msra.mxu0 0.0
    %2911 = vmatpush.msra.mxu0 0.0
    %2912 = vmatpush.msra.mxu0 0.0
    %2913 = vmatpush.msra.mxu0 0.0
    %2914 = vmatpush.msra.mxu0 0.0
    %2915 = vmatpush.msra.mxu0 0.0
    %2916 = vmatpush.msra.mxu0 0.0
    %2917 = vmatpush.msra.mxu0 0.0
    %2918 = vmatpush.msra.mxu0 0.0
    %2919 = vmatpush.msra.mxu0 %v2904
    %2920 = vmatpush.msra.mxu0 %v2890
    %2921 = vmatpush.msra.mxu0 %v2888
    %2922 = vmatmul.f32.gmra.mxu0 %v2896
    %v2923 = vpop.f32.mrf.mxu0
    %v2924 = vadd.f32 0.0, %v2923
    %2925 = vmatmul.f32.gmra.mxu0 %v2899
    %v2926 = vpop.f32.mrf.mxu0
    %v2927 = vadd.f32 0.0, %v2926
    %2928 = vmatmul.f32.gmra.mxu0 %v2902
    %v2929 = vpop.f32.mrf.mxu0
    %v2930 = vadd.f32 0.0, %v2929
    %2931 = vdwg.mxu0
    %2932 = vrot.lane.b32.xlu0 %v2542, 104
    %v2933 = vpop.permute.xlu0 %2932
    %2934 = vrot.lane.b32.xlu0 %v2544, 104
    %v2935 = vpop.permute.xlu0 %2934
    %2936 = vrot.lane.b32.xlu0 %v2543, 104
    %v2937 = vpop.permute.xlu0 %2936
    %2938 = vrot.lane.b32.xlu0 %v2542, 72
    %v2939 = vpop.permute.xlu0 %2938
    %2940 = vrot.lane.b32.xlu0 %v2544, 72
    %v2941 = vpop.permute.xlu0 %2940
    %2942 = vrot.lane.b32.xlu0 %v2543, 72
    %v2943 = vpop.permute.xlu0 %2942
    %v2944 = vsel %vm308, %v2933, 0
    %v2946 = vsel %vm308, %v2935, 0
    %v2948 = vsel %vm308, %v2937, 0
    %v2950 = vsel %vm308, %v2939, 0
    %v2952 = vsel %vm308, %v2941, 0
    %v2954 = vsel %vm308, %v2943, 0
    %2956 = vmatpush.xpose.msra.mxu0 0.0
    %2957 = vmatpush.xpose.msra.mxu0 0.0
    %2958 = vmatpush.xpose.msra.mxu0 0.0
    %2959 = vmatpush.xpose.msra.mxu0 0.0
    %2960 = vmatpush.xpose.msra.mxu0 0.0
    %2961 = vmatpush.xpose.msra.mxu0 0.0
    %2962 = vmatpush.xpose.msra.mxu0 0.0
    %2963 = vmatpush.xpose.msra.mxu0 0.0
    %2964 = vmatpush.xpose.msra.mxu0 0.0
    %2965 = vmatpush.xpose.msra.mxu0 0.0
    %2966 = vmatpush.xpose.msra.mxu0 0.0
    %2967 = vmatpush.xpose.msra.mxu0 0.0
    %2968 = vmatpush.xpose.msra.mxu0 0.0
    %2969 = vmatpush.xpose.msra.mxu0 %v2954
    %2970 = vmatpush.xpose.msra.mxu0 %v2952
    %2971 = vmatpush.xpose.msra.mxu0 %v2950
    %2972 = vmatmul.f32.gmra.mxu0 %v2944
    %v2973 = vpop.f32.mrf.mxu0
    %v2974 = vadd.f32 0.0, %v2973
    %2975 = vmatmul.f32.gmra.mxu0 %v2946
    %v2976 = vpop.f32.mrf.mxu0
    %v2977 = vadd.f32 0.0, %v2976
    %2978 = vmatmul.f32.gmra.mxu0 %v2948
    %v2979 = vpop.f32.mrf.mxu0
    %v2980 = vadd.f32 0.0, %v2979
    %2981 = vdwg.mxu0
    %v2982 = vmul.f32 %v2974, 0.35355338
    %v2983 = vmul.f32 %v2977, 0.35355338
    %v2984 = vmul.f32 %v2980, 0.35355338
    %v2985 = vsel %vm350, %v2982, -inf
    %2986 = vmax.xlane.f32.xlu0 %v2985
    %v2987 = vpop.xlane.xlu0 %2986
    %v2988 = vsel %vm350, %v2983, -inf
    %2989 = vmax.xlane.f32.xlu0 %v2988
    %v2990 = vpop.xlane.xlu0 %2989
    %v2991 = vsel %vm357, %v2984, -inf
    %2992 = vmax.xlane.f32.xlu0 %v2991
    %v2993 = vpop.xlane.xlu0 %2992
    %v2994 = vsub.f32 %v2982, %v2987
    %v2995 = vsub.f32 %v2983, %v2990
    %v2996 = vsub.f32 %v2984, %v2993
    %v2997 = vmul.f32 %v2994, 1.442695
    %v2998 = vpow.pop %v2997
    %v2999 = vmul.f32 %v2995, 1.442695
    %v3000 = vpow.pop %v2999
    %v3001 = vmul.f32 %v2996, 1.442695
    %v3002 = vpow.pop %v3001
    %v3003 = vsel %vm350, %v2998, 0.0
    %3004 = vadd.xlane.f32.xlu0 %v3003
    %v3005 = vpop.xlane.xlu0 %3004
    %v3006 = vsel %vm350, %v3000, 0.0
    %3007 = vadd.xlane.f32.xlu0 %v3006
    %v3008 = vpop.xlane.xlu0 %3007
    %v3009 = vsel %vm357, %v3002, 0.0
    %3010 = vadd.xlane.f32.xlu0 %v3009
    %v3011 = vpop.xlane.xlu0 %3010
    %v3012 = vrcp.pop %v3005
    %v3013 = vrcp.pop %v3008
    %v3014 = vrcp.pop %v3011
    %v3015 = vmul.f32 %v2998, %v3012
    %v3016 = vmul.f32 %v3000, %v3013
    %v3017 = vmul.f32 %v3002, %v3014
    %3018 = vrot.lane.b32.xlu0 %v2542, 40
    %v3019 = vpop.permute.xlu0 %3018
    %3020 = vrot.lane.b32.xlu0 %v2544, 40
    %v3021 = vpop.permute.xlu0 %3020
    %3022 = vrot.lane.b32.xlu0 %v2543, 40
    %v3023 = vpop.permute.xlu0 %3022
    %v3027 = vsel %vm350, %v3015, 0
    %v3030 = vsel %vm350, %v3016, 0
    %v3033 = vsel %vm350, %v3017, 0
    %v3035 = vsel %vm94, %v3023, 0
    %3037 = vmatpush.msra.mxu0 0.0
    %3038 = vmatpush.msra.mxu0 0.0
    %3039 = vmatpush.msra.mxu0 0.0
    %3040 = vmatpush.msra.mxu0 0.0
    %3041 = vmatpush.msra.mxu0 0.0
    %3042 = vmatpush.msra.mxu0 0.0
    %3043 = vmatpush.msra.mxu0 0.0
    %3044 = vmatpush.msra.mxu0 0.0
    %3045 = vmatpush.msra.mxu0 0.0
    %3046 = vmatpush.msra.mxu0 0.0
    %3047 = vmatpush.msra.mxu0 0.0
    %3048 = vmatpush.msra.mxu0 0.0
    %3049 = vmatpush.msra.mxu0 0.0
    %3050 = vmatpush.msra.mxu0 %v3035
    %3051 = vmatpush.msra.mxu0 %v3021
    %3052 = vmatpush.msra.mxu0 %v3019
    %3053 = vmatmul.f32.gmra.mxu0 %v3027
    %v3054 = vpop.f32.mrf.mxu0
    %v3055 = vadd.f32 0.0, %v3054
    %3056 = vmatmul.f32.gmra.mxu0 %v3030
    %v3057 = vpop.f32.mrf.mxu0
    %v3058 = vadd.f32 0.0, %v3057
    %3059 = vmatmul.f32.gmra.mxu0 %v3033
    %v3060 = vpop.f32.mrf.mxu0
    %v3061 = vadd.f32 0.0, %v3060
    %3062 = vdwg.mxu0
    %3066 = vrot.lane.b32.xlu0 %v2793, 8
    %v3067 = vpop.permute.xlu0 %3066
    %3068 = vrot.lane.b32.xlu0 %v2796, 8
    %v3069 = vpop.permute.xlu0 %3068
    %3070 = vrot.lane.b32.xlu0 %v2799, 8
    %v3071 = vpop.permute.xlu0 %3070
    %3078 = vrot.lane.b32.xlu0 %v2924, 16
    %v3079 = vpop.permute.xlu0 %3078
    %3080 = vrot.lane.b32.xlu0 %v2927, 16
    %v3081 = vpop.permute.xlu0 %3080
    %3082 = vrot.lane.b32.xlu0 %v2930, 16
    %v3083 = vpop.permute.xlu0 %3082
    %3090 = vrot.lane.b32.xlu0 %v3055, 24
    %v3091 = vpop.permute.xlu0 %3090
    %3092 = vrot.lane.b32.xlu0 %v3058, 24
    %v3093 = vpop.permute.xlu0 %3092
    %3094 = vrot.lane.b32.xlu0 %v3061, 24
    %v3095 = vpop.permute.xlu0 %3094
    %v3099 = vsel %vm308, %v2662, %v3067
    %v3100 = vsel %vm308, %v2665, %v3069
    %v3101 = vsel %vm308, %v2668, %v3071
    %v3102 = vsel %vm41, %v3099, %v3079
    %v3103 = vsel %vm41, %v3100, %v3081
    %v3104 = vsel %vm41, %v3101, %v3083
    %v3105 = vsel %vm865, %v3102, %v3091
    %v3106 = vsel %vm865, %v3103, %v3093
    %v3107 = vsel %vm865, %v3104, %v3095
    %v3111 = vrot.slane %v3105, 7
    %v3112 = vrot.slane %v3106, 7
    %v3113 = vsel %vm94, %v3111, %v3112
    %v3114 = vrot.slane %v3107, 7
    %v3115 = vsel %vm94, %v3112, %v3114
    %v3117 = vsel %vm94, %v2537, %v3111
    %s3118 = scalar_lea.vmem %s4, 32
    %v3119 = vld [vmem:[%s3118] sm:$0xff]
    %v3120 = vld [vmem:[%s3118 + $0x8] sm:$0xff]
    %v3121 = vld [vmem:[%s3118 + $0x10] sm:$0xff]
    %v3122 = vld [vmem:[%s3118 + $0x18] sm:$0xff]
    %v3124 = vsel %vm117, %v2535, 0
    %v3127 = vsel %vm117, %v2536, 0
    %v3130 = vsel %vm117, %v3117, 0
    %v3132 = vsel %vm117, %v3113, 0
    %v3134 = vsel %vm117, %v3115, 0
    %3136 = vmatpush.msra.mxu0 0.0
    %3137 = vmatpush.msra.mxu0 0.0
    %3138 = vmatpush.msra.mxu0 0.0
    %3139 = vmatpush.msra.mxu0 0.0
    %3140 = vmatpush.msra.mxu0 0.0
    %3141 = vmatpush.msra.mxu0 0.0
    %3142 = vmatpush.msra.mxu0 0.0
    %3143 = vmatpush.msra.mxu0 0.0
    %3144 = vmatpush.msra.mxu0 0.0
    %3145 = vmatpush.msra.mxu0 0.0
    %3146 = vmatpush.msra.mxu0 0.0
    %3147 = vmatpush.msra.mxu0 0.0
    %3148 = vmatpush.msra.mxu0 %v3122
    %3149 = vmatpush.msra.mxu0 %v3121
    %3150 = vmatpush.msra.mxu0 %v3120
    %3151 = vmatpush.msra.mxu0 %v3119
    %3152 = vmatmul.f32.gmra.mxu0 %v3124
    %v3153 = vpop.f32.mrf.mxu0
    %v3154 = vadd.f32 0.0, %v3153
    %3155 = vmatmul.f32.gmra.mxu0 %v3127
    %v3156 = vpop.f32.mrf.mxu0
    %v3157 = vadd.f32 0.0, %v3156
    %3158 = vmatmul.f32.gmra.mxu0 %v3130
    %v3159 = vpop.f32.mrf.mxu0
    %v3160 = vadd.f32 0.0, %v3159
    %3161 = vmatmul.f32.gmra.mxu0 %v3132
    %v3162 = vpop.f32.mrf.mxu0
    %v3163 = vadd.f32 0.0, %v3162
    %3164 = vmatmul.f32.gmra.mxu0 %v3134
    %v3165 = vpop.f32.mrf.mxu0
    %v3166 = vadd.f32 0.0, %v3165
    %3167 = vdwg.mxu0
    %v3168 = vadd.f32 %v1791, %v3154
    %v3169 = vadd.f32 %v1792, %v3157
    %v3170 = vadd.f32 %v1793, %v3160
    %v3171 = vadd.f32 %v1794, %v3163
    %v3172 = vadd.f32 %v1795, %v3166
    %v3173 = vperm.slane %v1797, 4
    %v3174 = vadd.f32 %v3168, %v3173
    %v3175 = vadd.f32 %v3169, %v3173
    %v3176 = vadd.f32 %v3170, %v3173
    %v3177 = vadd.f32 %v3171, %v3173
    %v3178 = vadd.f32 %v3172, %v3173
    %v3179 = vsel %vm117, %v3174, 0.0
    %3180 = vadd.xlane.f32.xlu0 %v3179
    %v3181 = vpop.xlane.xlu0 %3180
    %v3182 = vsel %vm117, %v3175, 0.0
    %3183 = vadd.xlane.f32.xlu0 %v3182
    %v3184 = vpop.xlane.xlu0 %3183
    %v3185 = vsel %vm117, %v3176, 0.0
    %3186 = vadd.xlane.f32.xlu0 %v3185
    %v3187 = vpop.xlane.xlu0 %3186
    %v3188 = vsel %vm117, %v3177, 0.0
    %3189 = vadd.xlane.f32.xlu0 %v3188
    %v3190 = vpop.xlane.xlu0 %3189
    %v3191 = vsel %vm130, %v3178, 0.0
    %3192 = vadd.xlane.f32.xlu0 %v3191
    %v3193 = vpop.xlane.xlu0 %3192
    %v3194 = vmul.f32 %v3181, %v140
    %v3195 = vmul.f32 %v3184, %v140
    %v3196 = vmul.f32 %v3187, %v140
    %v3197 = vmul.f32 %v3190, %v140
    %v3198 = vmul.f32 %v3193, %v140
    %v3199 = vsub.f32 %v3174, %v3194
    %v3200 = vsub.f32 %v3175, %v3195
    %v3201 = vsub.f32 %v3176, %v3196
    %v3202 = vsub.f32 %v3177, %v3197
    %v3203 = vsub.f32 %v3178, %v3198
    %v3204 = vmul.f32 %v3199, %v3199
    %v3205 = vmul.f32 %v3200, %v3200
    %v3206 = vmul.f32 %v3201, %v3201
    %v3207 = vmul.f32 %v3202, %v3202
    %v3208 = vmul.f32 %v3203, %v3203
    %v3209 = vsel %vm117, %v3204, 0.0
    %3210 = vadd.xlane.f32.xlu0 %v3209
    %v3211 = vpop.xlane.xlu0 %3210
    %v3212 = vsel %vm117, %v3205, 0.0
    %3213 = vadd.xlane.f32.xlu0 %v3212
    %v3214 = vpop.xlane.xlu0 %3213
    %v3215 = vsel %vm117, %v3206, 0.0
    %3216 = vadd.xlane.f32.xlu0 %v3215
    %v3217 = vpop.xlane.xlu0 %3216
    %v3218 = vsel %vm117, %v3207, 0.0
    %3219 = vadd.xlane.f32.xlu0 %v3218
    %v3220 = vpop.xlane.xlu0 %3219
    %v3221 = vsel %vm130, %v3208, 0.0
    %3222 = vadd.xlane.f32.xlu0 %v3221
    %v3223 = vpop.xlane.xlu0 %3222
    %v3224 = vmul.f32 %v3211, %v140
    %v3225 = vmul.f32 %v3214, %v140
    %v3226 = vmul.f32 %v3217, %v140
    %v3227 = vmul.f32 %v3220, %v140
    %v3228 = vmul.f32 %v3223, %v140
    %v3229 = vadd.f32 %v3224, 1e-05
    %v3230 = vadd.f32 %v3225, 1e-05
    %v3231 = vadd.f32 %v3226, 1e-05
    %v3232 = vadd.f32 %v3227, 1e-05
    %v3233 = vadd.f32 %v3228, 1e-05
    %v3234 = vrsqrt.pop %v3229
    %v3235 = vmul.f32 %v3234, %v3229
    %v3236 = vmul.f32 %v3235, %v3234
    %v3237 = vmul.f32 0.5, %v3236
    %v3238 = vsub.f32 1.5, %v3237
    %v3239 = vmul.f32 %v3234, %v3238
    %vm3240 = vweird.f32 %v3229
    %vm3241 = vweird.f32 %v3234
    %vm3242 = vmor %vm3240, %vm3241
    %v3243 = vsel %vm3242, %v3234, %v3239
    %v3244 = vrsqrt.pop %v3230
    %v3245 = vmul.f32 %v3244, %v3230
    %v3246 = vmul.f32 %v3245, %v3244
    %v3247 = vmul.f32 0.5, %v3246
    %v3248 = vsub.f32 1.5, %v3247
    %v3249 = vmul.f32 %v3244, %v3248
    %vm3250 = vweird.f32 %v3230
    %vm3251 = vweird.f32 %v3244
    %vm3252 = vmor %vm3250, %vm3251
    %v3253 = vsel %vm3252, %v3244, %v3249
    %v3254 = vrsqrt.pop %v3231
    %v3255 = vmul.f32 %v3254, %v3231
    %v3256 = vmul.f32 %v3255, %v3254
    %v3257 = vmul.f32 0.5, %v3256
    %v3258 = vsub.f32 1.5, %v3257
    %v3259 = vmul.f32 %v3254, %v3258
    %vm3260 = vweird.f32 %v3231
    %vm3261 = vweird.f32 %v3254
    %vm3262 = vmor %vm3260, %vm3261
    %v3263 = vsel %vm3262, %v3254, %v3259
    %v3264 = vrsqrt.pop %v3232
    %v3265 = vmul.f32 %v3264, %v3232
    %v3266 = vmul.f32 %v3265, %v3264
    %v3267 = vmul.f32 0.5, %v3266
    %v3268 = vsub.f32 1.5, %v3267
    %v3269 = vmul.f32 %v3264, %v3268
    %vm3270 = vweird.f32 %v3232
    %vm3271 = vweird.f32 %v3264
    %vm3272 = vmor %vm3270, %vm3271
    %v3273 = vsel %vm3272, %v3264, %v3269
    %v3274 = vrsqrt.pop %v3233
    %v3275 = vmul.f32 %v3274, %v3233
    %v3276 = vmul.f32 %v3275, %v3274
    %v3277 = vmul.f32 0.5, %v3276
    %v3278 = vsub.f32 1.5, %v3277
    %v3279 = vmul.f32 %v3274, %v3278
    %vm3280 = vweird.f32 %v3233
    %vm3281 = vweird.f32 %v3274
    %vm3282 = vmor %vm3280, %vm3281
    %v3283 = vsel %vm3282, %v3274, %v3279
    %v3284 = vmul.f32 %v3199, %v3243
    %v3285 = vmul.f32 %v3200, %v3253
    %v3286 = vmul.f32 %v3201, %v3263
    %v3287 = vmul.f32 %v3202, %v3273
    %v3288 = vmul.f32 %v3203, %v3283
    %v3289 = vperm.slane %v1797, 2
    %v3290 = vmul.f32 %v3284, %v3289
    %v3291 = vmul.f32 %v3285, %v3289
    %v3292 = vmul.f32 %v3286, %v3289
    %v3293 = vmul.f32 %v3287, %v3289
    %v3294 = vmul.f32 %v3288, %v3289
    %v3295 = vperm.slane %v1797, 3
    %v3296 = vadd.f32 %v3290, %v3295
    %v3297 = vadd.f32 %v3291, %v3295
    %v3298 = vadd.f32 %v3292, %v3295
    %v3299 = vadd.f32 %v3293, %v3295
    %v3300 = vadd.f32 %v3294, %v3295
    %s3301 = scalar_lea.vmem %s5, 32
    %v3302 = vld [vmem:[%s3301] sm:$0xff]
    %v3303 = vld [vmem:[%s3301 + $0x8] sm:$0xff]
    %v3304 = vld [vmem:[%s3301 + $0x10] sm:$0xff]
    %v3305 = vld [vmem:[%s3301 + $0x18] sm:$0xff]
    %v3306 = vperm.slane %v1797, 6
    %v3308 = vsel %vm117, %v3296, 0
    %v3311 = vsel %vm117, %v3297, 0
    %v3314 = vsel %vm117, %v3298, 0
    %v3317 = vsel %vm117, %v3299, 0
    %v3320 = vsel %vm117, %v3300, 0
    %3322 = vmatpush.msra.mxu0 0.0
    %3323 = vmatpush.msra.mxu0 0.0
    %3324 = vmatpush.msra.mxu0 0.0
    %3325 = vmatpush.msra.mxu0 0.0
    %3326 = vmatpush.msra.mxu0 0.0
    %3327 = vmatpush.msra.mxu0 0.0
    %3328 = vmatpush.msra.mxu0 0.0
    %3329 = vmatpush.msra.mxu0 0.0
    %3330 = vmatpush.msra.mxu0 0.0
    %3331 = vmatpush.msra.mxu0 0.0
    %3332 = vmatpush.msra.mxu0 0.0
    %3333 = vmatpush.msra.mxu0 0.0
    %3334 = vmatpush.msra.mxu0 %v3305
    %3335 = vmatpush.msra.mxu0 %v3304
    %3336 = vmatpush.msra.mxu0 %v3303
    %3337 = vmatpush.msra.mxu0 %v3302
    %3338 = vmatmul.f32.gmra.mxu0 %v3308
    %v3339 = vpop.f32.mrf.mxu0
    %v3340 = vadd.f32 %v3306, %v3339
    %3341 = vmatmul.f32.gmra.mxu0 %v3311
    %v3342 = vpop.f32.mrf.mxu0
    %v3343 = vadd.f32 %v3306, %v3342
    %3344 = vmatmul.f32.gmra.mxu0 %v3314
    %v3345 = vpop.f32.mrf.mxu0
    %v3346 = vadd.f32 %v3306, %v3345
    %3347 = vmatmul.f32.gmra.mxu0 %v3317
    %v3348 = vpop.f32.mrf.mxu0
    %v3349 = vadd.f32 %v3306, %v3348
    %3350 = vmatmul.f32.gmra.mxu0 %v3320
    %v3351 = vpop.f32.mrf.mxu0
    %v3352 = vadd.f32 %v3306, %v3351
    %3353 = vdwg.mxu0
    %v3354 = vmul.f32 %v3340, 0.5
    %v3355 = vmul.f32 %v3343, 0.5
    %v3356 = vmul.f32 %v3346, 0.5
    %v3357 = vmul.f32 %v3349, 0.5
    %v3358 = vmul.f32 %v3352, 0.5
    %v3359 = vmul.f32 %v3340, 0.044715
    %v3360 = vmul.f32 %v3343, 0.044715
    %v3361 = vmul.f32 %v3346, 0.044715
    %v3362 = vmul.f32 %v3349, 0.044715
    %v3363 = vmul.f32 %v3352, 0.044715
    %v3364 = vmul.f32 %v3359, %v3340
    %v3365 = vmul.f32 %v3360, %v3343
    %v3366 = vmul.f32 %v3361, %v3346
    %v3367 = vmul.f32 %v3362, %v3349
    %v3368 = vmul.f32 %v3363, %v3352
    %v3369 = vmul.f32 %v3364, %v3340
    %v3370 = vmul.f32 %v3365, %v3343
    %v3371 = vmul.f32 %v3366, %v3346
    %v3372 = vmul.f32 %v3367, %v3349
    %v3373 = vmul.f32 %v3368, %v3352
    %v3374 = vadd.f32 %v3340, %v3369
    %v3375 = vadd.f32 %v3343, %v3370
    %v3376 = vadd.f32 %v3346, %v3371
    %v3377 = vadd.f32 %v3349, %v3372
    %v3378 = vadd.f32 %v3352, %v3373
    %v3379 = vmul.f32 %v3374, 0.7978846
    %v3380 = vmul.f32 %v3375, 0.7978846
    %v3381 = vmul.f32 %v3376, 0.7978846
    %v3382 = vmul.f32 %v3377, 0.7978846
    %v3383 = vmul.f32 %v3378, 0.7978846
    %v3384 = vtanh.pop %v3379
    %v3385 = vtanh.pop %v3380
    %v3386 = vtanh.pop %v3381
    %v3387 = vtanh.pop %v3382
    %v3388 = vtanh.pop %v3383
    %v3389 = vadd.f32 %v3384, 1.0
    %v3390 = vadd.f32 %v3385, 1.0
    %v3391 = vadd.f32 %v3386, 1.0
    %v3392 = vadd.f32 %v3387, 1.0
    %v3393 = vadd.f32 %v3388, 1.0
    %v3394 = vmul.f32 %v3354, %v3389
    %v3395 = vmul.f32 %v3355, %v3390
    %v3396 = vmul.f32 %v3356, %v3391
    %v3397 = vmul.f32 %v3357, %v3392
    %v3398 = vmul.f32 %v3358, %v3393
    %s3399 = scalar_lea.vmem %s6, 64
    %v3400 = vld [vmem:[%s3399] sm:$0xff]
    %v3401 = vld [vmem:[%s3399 + $0x8] sm:$0xff]
    %v3402 = vld [vmem:[%s3399 + $0x10] sm:$0xff]
    %v3403 = vld [vmem:[%s3399 + $0x18] sm:$0xff]
    %v3404 = vld [vmem:[%s3399 + $0x20] sm:$0xff]
    %v3405 = vld [vmem:[%s3399 + $0x28] sm:$0xff]
    %v3406 = vld [vmem:[%s3399 + $0x30] sm:$0xff]
    %v3407 = vld [vmem:[%s3399 + $0x38] sm:$0xff]
    %v3409 = vsel %vm1737, %v3394, 0
    %v3412 = vsel %vm1737, %v3395, 0
    %v3415 = vsel %vm1737, %v3396, 0
    %v3418 = vsel %vm1737, %v3397, 0
    %v3421 = vsel %vm1737, %v3398, 0
    %3423 = vmatpush.msra.mxu0 0.0
    %3424 = vmatpush.msra.mxu0 0.0
    %3425 = vmatpush.msra.mxu0 0.0
    %3426 = vmatpush.msra.mxu0 0.0
    %3427 = vmatpush.msra.mxu0 0.0
    %3428 = vmatpush.msra.mxu0 0.0
    %3429 = vmatpush.msra.mxu0 0.0
    %3430 = vmatpush.msra.mxu0 0.0
    %3431 = vmatpush.msra.mxu0 %v3407
    %3432 = vmatpush.msra.mxu0 %v3406
    %3433 = vmatpush.msra.mxu0 %v3405
    %3434 = vmatpush.msra.mxu0 %v3404
    %3435 = vmatpush.msra.mxu0 %v3403
    %3436 = vmatpush.msra.mxu0 %v3402
    %3437 = vmatpush.msra.mxu0 %v3401
    %3438 = vmatpush.msra.mxu0 %v3400
    %3439 = vmatmul.f32.gmra.mxu0 %v3409
    %v3440 = vpop.f32.mrf.mxu0
    %v3441 = vadd.f32 0.0, %v3440
    %3442 = vmatmul.f32.gmra.mxu0 %v3412
    %v3443 = vpop.f32.mrf.mxu0
    %3444 = vmatmul.f32.gmra.mxu0 %v3415
    %v3445 = vpop.f32.mrf.mxu0
    %v3446 = vadd.f32 0.0, %v3445
    %3447 = vmatmul.f32.gmra.mxu0 %v3418
    %v3448 = vpop.f32.mrf.mxu0
    %3449 = vmatmul.f32.gmra.mxu0 %v3421
    %v3450 = vpop.f32.mrf.mxu0
    %3451 = vdwg.mxu0
    %v3452 = vadd.f32 %v3174, %v3441
    %v3453 = vadd.f32 %v3176, %v3446
    %v3454 = vperm.slane %v1797, 5
    %v3455 = vadd.f32 %v3452, %v3454
    %v3456 = vadd.f32 %v3453, %v3454
    %v3457 = vsel %vm94, %v3455, %v3456
    %v3458 = vld [vmem:[%s8 + $0x21] sm:$0x1]
    %v3459 = vld [vmem:[%s8 + $0x22] sm:$0x1]
    %v3460 = vsel %vm130, %v3457, 0.0
    %3461 = vadd.xlane.f32.xlu0 %v3460
    %v3462 = vpop.xlane.xlu0 %3461
    %v3463 = vmul.f32 %v3462, %v140
    %v3464 = vsub.f32 %v3457, %v3463
    %v3465 = vmul.f32 %v3464, %v3464
    %v3466 = vsel %vm130, %v3465, 0.0
    %3467 = vadd.xlane.f32.xlu0 %v3466
    %v3468 = vpop.xlane.xlu0 %3467
    %v3469 = vmul.f32 %v3468, %v140
    %v3470 = vadd.f32 %v3469, 1e-05
    %v3471 = vrsqrt.pop %v3470
    %v3472 = vmul.f32 %v3471, %v3470
    %v3473 = vmul.f32 %v3472, %v3471
    %v3474 = vmul.f32 0.5, %v3473
    %v3475 = vsub.f32 1.5, %v3474
    %v3476 = vmul.f32 %v3471, %v3475
    %vm3477 = vweird.f32 %v3470
    %vm3478 = vweird.f32 %v3471
    %vm3479 = vmor %vm3477, %vm3478
    %v3480 = vsel %vm3479, %v3471, %v3476
    %v3481 = vmul.f32 %v3464, %v3480
    %v3482 = vperm.slane %v3458, 0
    %v3483 = vmul.f32 %v3481, %v3482
    %v3484 = vperm.slane %v3459, 0
    %v3485 = vadd.f32 %v3483, %v3484
    %v3486 = vld [vmem:[%s8] sm:$0xff]
    %v3487 = vld [vmem:[%s8 + $0x8] sm:$0xff]
    %v3488 = vld [vmem:[%s8 + $0x10] sm:$0xff]
    %v3489 = vld [vmem:[%s8 + $0x18] sm:$0xff]
    %v3490 = vld [vmem:[%s8 + $0x20] sm:$0x1]
    %v3491 = vperm.slane %v3490, 0
    %v3493 = vsel %vm117, %v3485, 0
    %3495 = vmatpush.msra.mxu0 0.0
    %3496 = vmatpush.msra.mxu0 0.0
    %3497 = vmatpush.msra.mxu0 0.0
    %3498 = vmatpush.msra.mxu0 0.0
    %3499 = vmatpush.msra.mxu0 0.0
    %3500 = vmatpush.msra.mxu0 0.0
    %3501 = vmatpush.msra.mxu0 0.0
    %3502 = vmatpush.msra.mxu0 0.0
    %3503 = vmatpush.msra.mxu0 0.0
    %3504 = vmatpush.msra.mxu0 0.0
    %3505 = vmatpush.msra.mxu0 0.0
    %3506 = vmatpush.msra.mxu0 0.0
    %3507 = vmatpush.msra.mxu0 %v3489
    %3508 = vmatpush.msra.mxu0 %v3488
    %3509 = vmatpush.msra.mxu0 %v3487
    %3510 = vmatpush.msra.mxu0 %v3486
    %3511 = vmatmul.f32.gmra.mxu0 %v3493
    %v3512 = vpop.f32.mrf.mxu0
    %v3513 = vadd.f32 %v3491, %v3512
    %3514 = vdwg.mxu0
    %3515 = vst [vmem:[#allocation2] sm:$0x3] %v3513
    // Predicated region
    $region38: #{kwt_forward_pallas.1} parent=1 // pred_check
      _
    $region39: #{kwt_forward_pallas.1} parent=1 // pred_check_branch
      %3517 = sbr.rel (0) target = $region41
    $region40: #{kwt_forward_pallas.1} parent=1 // pred_region
      %3519 = vsyncadd [#allocation3], 0
      %s3521 = sshll.u32 [#allocation2], 4
      %s3522 = int_to_ptr.vmem [resolvable:$true] %s3521
      %s3523 = sshll.u32 %s9, 4
      %s3524 = int_to_ptr.hbm [resolvable:$true] %s3523
      %3526 = dma.vmem_to_hbm [thread:$0]  %s3522, 32, %s3524, [#allocation3]
    $region41: #{kwt_forward_pallas.1} parent=1 // pred_fallthru
      _
    // Predicated region
    $region42: #{kwt_forward_pallas.1} parent=1 // pred_check
      _
    $region43: #{kwt_forward_pallas.1} parent=1 // pred_check_branch
      %3528 = sbr.rel (0) target = $region45
    $region44: #{kwt_forward_pallas.1} parent=1 // pred_region
      %3530 = dma.done [#allocation3], 32
    $region45: #{kwt_forward_pallas.1} parent=1 // pred_fallthru
      _
    %3531 = vsyncpa [#allocation3], 1

</llo_original>
